<compile_context>
chip_gen: v5e
topology: v5e:2x2
jax: 0.10.0
libtpu: 0.0.40
codegen_flags: <defaults>
</compile_context>

<pallas_src>
import functools

import jax
import jax.numpy as jnp
import numpy as np
from jax.experimental import pallas as pl
from jax.experimental.pallas import tpu as pltpu


# ---------------------------------------------------------------------------
# One-time hardware probes (run eagerly at import time, outside any jit trace).
# ---------------------------------------------------------------------------
@functools.lru_cache(maxsize=None)
def _roll_probe():
    """Returns (pulls_lower_index, bf16_roll_ok).

    pulls_lower_index: True iff pltpu.roll follows jnp.roll semantics, i.e.
        roll(x, s, a)[..., i] == x[..., (i - s) % n].  Host-built edge masks are
        paired with the roll shifts according to this convention.
    bf16_roll_ok: True iff a static lane-axis roll of a bf16 array lowers on this
        jax/libtpu; if not, the pool chain falls back to f32 elementwise math.
    """
    def roll1(x_ref, o_ref):
        o_ref[...] = pltpu.roll(x_ref[...], 1, 1)

    pulls_lower, bf16_ok = True, True
    try:
        x = jnp.arange(8 * 128, dtype=jnp.int32).reshape(8, 128)
        out = pl.pallas_call(
            roll1, out_shape=jax.ShapeDtypeStruct((8, 128), jnp.int32))(x)
        pulls_lower = bool(out[0, 1] == 0)           # jnp.roll: out[0, 1] == x[0, 0]
    except Exception:
        pulls_lower = True
    try:
        xb = jnp.ones((16, 128), jnp.bfloat16)
        jax.block_until_ready(
            pl.pallas_call(
                roll1, out_shape=jax.ShapeDtypeStruct((16, 128), jnp.bfloat16))(xb))
    except Exception:
        bf16_ok = False
    return pulls_lower, bf16_ok


_ROLL_PULLS_LOWER, _BF16_ROLL_OK = _roll_probe()


def _select_pool_dtype():
    # bf16 pooling halves XLU/VPU work and the VMEM footprint of y0..y3 and is
    # numerically exact under max.  v5e has no native bf16 VPU: keep the pool
    # elementwise math in f32 there (the MXU still consumes bf16 operands).
    if not _BF16_ROLL_OK:
        return jnp.float32
    try:
        kind = jax.devices()[0].device_kind.lower()
    except Exception:
        return jnp.bfloat16
    if "v5 lite" in kind or "v5lite" in kind or "v5e" in kind:
        return jnp.float32
    return jnp.bfloat16


@functools.lru_cache(maxsize=None)
def _edge_bias(h, w, pulls_lower_index):
    """(8, 1, h*w) float32 additive pool masks: 0.0 where the element pulled in by
    the corresponding roll shift is a valid in-bounds 5x5-window neighbour, -inf
    where it is out-of-bounds padding / wrap-around.  Computed once on the host
    (becomes a jit constant) — no in-kernel iota / integer div-mod."""
    n = h * w
    r = np.arange(n) // w
    c = np.arange(n) % w
    # Kernel shift list:                 (1,  2, n-1, n-2 |  w, 2w, n-w, n-2w)
    # Spatial offset pulled in (jnp.roll): (-1, -2, +1, +2 | -1, -2,  +1,  +2)
    d = (-1, -2, 1, 2) if pulls_lower_index else (1, 2, -1, -2)
    masks = [(c + dd >= 0) & (c + dd < w) for dd in d]        # W pass (column offsets)
    masks += [(r + dd >= 0) & (r + dd < h) for dd in d]       # H pass (row offsets)
    bias = np.where(np.stack(masks), np.float32(0.0), np.float32(-np.inf))
    return bias.astype(np.float32).reshape(8, 1, n)


def _vmem_limit_bytes(n, c1, c2, c3, x_bytes, pool_bytes, out_bytes):
    """Size the scoped-VMEM limit from the actual per-image block footprint."""
    blk_in = 2 * n * c1 * x_bytes                     # double-buffered input block
    blk_out = 2 * n * c2 * out_bytes                  # double-buffered output block
    weights = 2 * ((c3 * c1 + 4 * c2 * c3) * 2 + (c3 + c2) * 4 + 8 * n * pool_bytes)
    interm = 4 * n * c3 * pool_bytes                  # y0..y3
    f32_tmp = 2 * n * max(c2, c3) * 4                 # cv1 / cv5 f32 epilogue temporaries
    est = int((blk_in + blk_out + weights + interm + f32_tmp) * 1.5) + (4 << 20)
    # v7x has 64 MiB physical VMEM; if this clamps, the map needs the H-strip
    # tiling flagged in the TODO above.
    return max(8 << 20, min(est, 96 << 20))


# ---------------------------------------------------------------------------
# Fused SPPELAN kernel.
# ---------------------------------------------------------------------------
def _sppelan_kernel(x_ref, w1_ref, b1_ref, w5_ref, b5_ref, bias_ref, o_ref,
                    *, H, W, pool_dtype):
    N = H * W

    # ---- cv1: 1x1 conv (+ folded BN) as (C3,C1)@(C1,N) bf16 MXU matmul with f32
    #      accumulation; bias + SiLU epilogue in f32.  x is cast in-kernel so the
    #      wrapper never spends an extra HBM pass on it.
    x = x_ref[...].astype(jnp.bfloat16)
    y0 = jnp.dot(w1_ref[...], x, preferred_element_type=jnp.float32)
    y0 = y0 + b1_ref[...]
    y0 = y0 * jax.nn.sigmoid(y0)
    y0 = y0.astype(pool_dtype)

    # ---- separable 5x5/s1/p2 max pool: lane rolls (XLU) + host-precomputed 0/-inf
    #      edge biases.  The (1, N) bias rows are already lane-dense; the sublane
    #      (channel) broadcast inside the add is handled by a replicated layout.
    shifts = (1, 2, N - 1, N - 2, W, 2 * W, N - W, N - 2 * W)
    biases = [bias_ref[k] for k in range(8)]     # hoisted once, reused by all 3 pools

    def pool5(y):
        t = y                                    # W pass: column offsets +-1, +-2
        for k in range(4):
            t = jnp.maximum(t, pltpu.roll(y, shifts[k], 1) + biases[k])
        o = t                                    # H pass: row offsets +-1, +-2
        for k in range(4, 8):
            o = jnp.maximum(o, pltpu.roll(t, shifts[k], 1) + biases[k])
        return o

    y1 = pool5(y0)
    y2 = pool5(y1)
    y3 = pool5(y2)

    # ---- cv5: 1x1 conv over concat([y0,y1,y2,y3], channels) WITHOUT materializing
    #      the 4*C3 concat: four accumulated (C2,C3)@(C3,N) bf16 matmuls, f32 accum.
    #      (Merging to K=2*C3 / 4*C3 matmuls is a small, lower-priority follow-up.)
    def mx(a):
        return a if a.dtype == jnp.bfloat16 else a.astype(jnp.bfloat16)

    acc = jnp.dot(w5_ref[0], mx(y0), preferred_element_type=jnp.float32)
    acc = acc + jnp.dot(w5_ref[1], mx(y1), preferred_element_type=jnp.float32)
    acc = acc + jnp.dot(w5_ref[2], mx(y2), preferred_element_type=jnp.float32)
    acc = acc + jnp.dot(w5_ref[3], mx(y3), preferred_element_type=jnp.float32)
    acc = acc + b5_ref[...]
    o_ref[...] = (acc * jax.nn.sigmoid(acc)).astype(o_ref.dtype)


# ---------------------------------------------------------------------------
# Parameter folding + wrapper
# ---------------------------------------------------------------------------
def fold_bn(conv_w_oihw, gamma, beta, mean, var, eps=1e-5):
    # (Cout, Cin, 1, 1) conv weight + eval-mode BN -> (Cin, Cout) matmul weight + bias
    scale = gamma / jnp.sqrt(var + eps)
    w_mat = conv_w_oihw[:, :, 0, 0].T                       # (Cin, Cout)
    return w_mat * scale[None, :], beta - mean * scale


def sppelan_forward(x_nchw, params, *, out_dtype=jnp.bfloat16):
    """Fused SPPELAN forward.  x_nchw: (B, C1, H, W); params: eval-mode folded
    1x1-conv weights/biases (see fold_bn).  Returns NCHW (B, C2, H, W) in
    `out_dtype` (bf16 by default to halve HBM writeback)."""
    b, c1, h, w = x_nchw.shape
    assert h >= 3 and w >= 3, "edge-bias construction assumes feature maps >= 3x3"
    n = h * w

    w1, b1 = params["w1"], params["b1"]          # (C1, C3), (C3,)
    w5, b5 = params["w5"], params["b5"]          # (4*C3, C2), (C2,)
    c3, c2 = w1.shape[1], w5.shape[1]
    assert w5.shape[0] == 4 * c3

    pool_dtype = _select_pool_dtype()

    # NCHW -> (B, C1, H*W): a pure reshape, no transpose / extra HBM pass.
    x_flat = x_nchw.reshape(b, c1, n)

    # Output-major ("transposed") folded weights so the kernel computes y^T = W @ x^T
    # directly in the NCHW-flat layout.
    w1_t = jnp.asarray(w1).T.astype(jnp.bfloat16)                               # (C3, C1)
    w5_t = (jnp.asarray(w5).T.reshape(c2, 4, c3)
            .transpose(1, 0, 2).astype(jnp.bfloat16))                           # (4, C2, C3)
    b1_r = jnp.asarray(b1).reshape(c3, 1).astype(jnp.float32)
    b5_r = jnp.asarray(b5).reshape(c2, 1).astype(jnp.float32)
    bias = jnp.asarray(_edge_bias(h, w, _ROLL_PULLS_LOWER)).astype(pool_dtype)   # (8,1,N)

    vmem_limit = _vmem_limit_bytes(
        n, c1, c2, c3,
        x_bytes=jnp.dtype(x_nchw.dtype).itemsize,
        pool_bytes=jnp.dtype(pool_dtype).itemsize,
        out_bytes=jnp.dtype(out_dtype).itemsize)

    kernel = functools.partial(_sppelan_kernel, H=h, W=w, pool_dtype=pool_dtype)
    out = pl.pallas_call(
        kernel,
        out_shape=jax.ShapeDtypeStruct((b, c2, n), out_dtype),
        grid=(b,),
        in_specs=[
            pl.BlockSpec((None, c1, n), lambda i: (i, 0, 0)),   # per-image activations
            pl.BlockSpec((c3, c1), lambda i: (0, 0)),           # cv1 folded weight (resident)
            pl.BlockSpec((c3, 1), lambda i: (0, 0)),            # cv1 folded bias
            pl.BlockSpec((4, c2, c3), lambda i: (0, 0, 0)),     # cv5 folded weight (resident)
            pl.BlockSpec((c2, 1), lambda i: (0, 0)),            # cv5 folded bias
            pl.BlockSpec((8, 1, n), lambda i: (0, 0, 0)),       # pool edge biases (0 / -inf)
        ],
        out_specs=pl.BlockSpec((None, c2, n), lambda i: (i, 0, 0)),
        compiler_params=pltpu.CompilerParams(
            dimension_semantics=("parallel",),                  # megacore over batch (v7x)
            vmem_limit_bytes=vmem_limit,
        ),
    )(x_flat, w1_t, b1_r, w5_t, b5_r, bias)

    # (B, C2, H*W) -> NCHW: a pure reshape (free), no transpose.
    return out.reshape(b, c2, h, w)


# ---------------------------------------------------------------------------
# Pure-JAX reference (mirrors the kernel's bf16 rounding of matmul inputs)
# ---------------------------------------------------------------------------
def reference_forward(x_nchw, params):
    def q(a):  # bf16-round matmul inputs exactly as the kernel does
        return a.astype(jnp.bfloat16).astype(jnp.float32)

    x = q(jnp.transpose(x_nchw, (0, 2, 3, 1)))
    w1, w5 = q(params["w1"]), q(params["w5"])
    b1 = params["b1"].astype(jnp.float32)
    b5 = params["b5"].astype(jnp.float32)

    def silu(y):
        return y * jax.nn.sigmoid(y)

    def pool(y):
        return jax.lax.reduce_window(
            y, -jnp.inf, jax.lax.max, (1, 5, 5, 1), (1, 1, 1, 1),
            padding=((0, 0), (2, 2), (2, 2), (0, 0)))

    y0 = q(silu(jnp.einsum("bhwi,io->bhwo", x, w1,
                           preferred_element_type=jnp.float32) + b1))
    y1 = pool(y0)
    y2 = pool(y1)
    y3 = pool(y2)
    cat = jnp.concatenate([y0, y1, y2, y3], axis=-1)
    out = silu(jnp.einsum("bhwi,io->bhwo", cat, w5,
                          preferred_element_type=jnp.float32) + b5)
    return jnp.transpose(out, (0, 3, 1, 2))


if __name__ == "__main__":
    # SPPELAN(c1=64, c2=128, c3=64, k=5) on a small 16x16 feature map.
    B, C1, C3, C2, H, W = 2, 64, 64, 128, 16, 16
    key = jax.random.PRNGKey(0)
    ks = jax.random.split(key, 11)

    x = jax.random.normal(ks[0], (B, C1, H, W), jnp.float32)

    # cv1: Conv2d(C1, C3, 1, bias=False) + BatchNorm2d(C3) + SiLU
    w1_oihw = jax.random.normal(ks[1], (C3, C1, 1, 1), jnp.float32) / jnp.sqrt(C1)
    g1 = 1.0 + 0.1 * jax.random.normal(ks[2], (C3,), jnp.float32)
    be1 = 0.1 * jax.random.normal(ks[3], (C3,), jnp.float32)
    mu1 = 0.1 * jax.random.normal(ks[4], (C3,), jnp.float32)
    v1 = jax.nn.softplus(jax.random.normal(ks[5], (C3,), jnp.float32)) + 0.5

    # cv5: Conv2d(4*C3, C2, 1, bias=False) + BatchNorm2d(C2) + SiLU
    w5_oihw = jax.random.normal(ks[6], (C2, 4 * C3, 1, 1), jnp.float32) / jnp.sqrt(4 * C3)
    g5 = 1.0 + 0.1 * jax.random.normal(ks[7], (C2,), jnp.float32)
    be5 = 0.1 * jax.random.normal(ks[8], (C2,), jnp.float32)
    mu5 = 0.1 * jax.random.normal(ks[9], (C2,), jnp.float32)
    v5 = jax.nn.softplus(jax.random.normal(ks[10], (C2,), jnp.float32)) + 0.5

    w1m, b1v = fold_bn(w1_oihw, g1, be1, mu1, v1)
    w5m, b5v = fold_bn(w5_oihw, g5, be5, mu5, v5)
    params = {"w1": w1m, "b1": b1v, "w5": w5m, "b5": b5v}

    out = jax.block_until_ready(jax.jit(sppelan_forward)(x, params))
    ref = reference_forward(x, params)

    assert out.shape == (B, C2, H, W), out.shape
    out_f32 = out.astype(jnp.float32)
    max_err = float(jnp.max(jnp.abs(out_f32 - ref)))
    assert jnp.allclose(out_f32, ref, atol=2e-2, rtol=2e-2), max_err
    print("KERNEL_OK")
</pallas_src>

<mosaic_0001>
module attributes {stable_mosaic.version = 11 : i64} {
  func.func @roll1(%arg0: memref<8x128xi32, #tpu.memory_space<vmem>>, %arg1: memref<8x128xi32, #tpu.memory_space<vmem>>) attributes {dimension_semantics = [], scalar_prefetch = 0 : i64, scratch_operands = 0 : i64, tpu.core_type = #tpu.core_type<tc>} {
    %c0 = arith.constant 0 : index
    %c0_0 = arith.constant 0 : index
    %0 = vector.load %arg0[%c0, %c0_0] : memref<8x128xi32, #tpu.memory_space<vmem>>, vector<8x128xi32>
    %c1_i32 = arith.constant 1 : i32
    %1 = tpu.dynamic_rotate %0 by %c1_i32 dim 1 : vector<8x128xi32>, i32 -> vector<8x128xi32>
    %c0_1 = arith.constant 0 : index
    %c0_2 = arith.constant 0 : index
    %2 = vector.load %arg1[%c0_1, %c0_2] : memref<8x128xi32, #tpu.memory_space<vmem>>, vector<8x128xi32>
    tpu.vector_store %arg1[%c0_1, %c0_2], %1 {strides = array<i32>} : memref<8x128xi32, #tpu.memory_space<vmem>>, vector<8x128xi32>,
    return
  }
}

module attributes {stable_mosaic.version = 11 : i64} {
  func.func @roll1(%arg0: memref<16x128xbf16, #tpu.memory_space<vmem>>, %arg1: memref<16x128xbf16, #tpu.memory_space<vmem>>) attributes {dimension_semantics = [], scalar_prefetch = 0 : i64, scratch_operands = 0 : i64, tpu.core_type = #tpu.core_type<tc>} {
    %c0 = arith.constant 0 : index
    %c0_0 = arith.constant 0 : index
    %0 = vector.load %arg0[%c0, %c0_0] : memref<16x128xbf16, #tpu.memory_space<vmem>>, vector<16x128xbf16>
    %c1_i32 = arith.constant 1 : i32
    %1 = tpu.dynamic_rotate %0 by %c1_i32 dim 1 : vector<16x128xbf16>, i32 -> vector<16x128xbf16>
    %c0_1 = arith.constant 0 : index
    %c0_2 = arith.constant 0 : index
    %2 = vector.load %arg1[%c0_1, %c0_2] : memref<16x128xbf16, #tpu.memory_space<vmem>>, vector<16x128xbf16>
    tpu.vector_store %arg1[%c0_1, %c0_2], %1 {strides = array<i32>} : memref<16x128xbf16, #tpu.memory_space<vmem>>, vector<16x128xbf16>,
    return
  }
}

module attributes {stable_mosaic.version = 11 : i64} {
  func.func @_sppelan_kernel(%arg0: i32, %arg1: memref<1x64x256xf32, #tpu.memory_space<vmem>>, %arg2: memref<64x64xbf16, #tpu.memory_space<vmem>>, %arg3: memref<64x1xf32, #tpu.memory_space<vmem>>, %arg4: memref<4x128x64xbf16, #tpu.memory_space<vmem>>, %arg5: memref<128x1xf32, #tpu.memory_space<vmem>>, %arg6: memref<8x1x256xf32, #tpu.memory_space<vmem>>, %arg7: memref<1x128x256xbf16, #tpu.memory_space<vmem>>) attributes {dimension_semantics = [#tpu.dimension_semantics<parallel>], iteration_bounds = array<i64: 2>, scalar_prefetch = 0 : i64, scratch_operands = 0 : i64, tpu.core_type = #tpu.core_type<tc>, window_params = [{transform_indices = @transform_0, window_bounds = array<i64: 1, 64, 256>}, {pipeline_mode = #tpu.pipeline_mode<synchronous>, transform_indices = @transform_1, window_bounds = array<i64: 64, 64>}, {pipeline_mode = #tpu.pipeline_mode<synchronous>, transform_indices = @transform_2, window_bounds = array<i64: 64, 1>}, {pipeline_mode = #tpu.pipeline_mode<synchronous>, transform_indices = @transform_3, window_bounds = array<i64: 4, 128, 64>}, {pipeline_mode = #tpu.pipeline_mode<synchronous>, transform_indices = @transform_4, window_bounds = array<i64: 128, 1>}, {pipeline_mode = #tpu.pipeline_mode<synchronous>, transform_indices = @transform_5, window_bounds = array<i64: 8, 1, 256>}, {transform_indices = @transform_6, window_bounds = array<i64: 1, 128, 256>}]} {
    %c0 = arith.constant 0 : index
    %c0_0 = arith.constant 0 : index
    %c0_1 = arith.constant 0 : index
    %0 = vector.load %arg1[%c0, %c0_0, %c0_1] : memref<1x64x256xf32, #tpu.memory_space<vmem>>, vector<1x64x256xf32>
    %1 = vector.shape_cast %0 : vector<1x64x256xf32> to vector<64x256xf32>
    %2 = arith.truncf %1 : vector<64x256xf32> to vector<64x256xbf16>
    %c0_2 = arith.constant 0 : index
    %c0_3 = arith.constant 0 : index
    %3 = vector.load %arg2[%c0_2, %c0_3] : memref<64x64xbf16, #tpu.memory_space<vmem>>, vector<64x64xbf16>
    %cst = arith.constant dense<0.000000e+00> : vector<64x256xf32>
    %4 = tpu.matmul %3, %2, %cst {dimension_numbers = #tpu.dot_dimension_numbers<[1], [0], [0], [1], [0, 0, 1, 1], [], []>} : vector<64x64xbf16>, vector<64x256xbf16>, vector<64x256xf32> -> vector<64x256xf32>
    %c0_4 = arith.constant 0 : index
    %c0_5 = arith.constant 0 : index
    %5 = vector.load %arg3[%c0_4, %c0_5] : memref<64x1xf32, #tpu.memory_space<vmem>>, vector<64x1xf32>
    %6 = vector.broadcast %5 : vector<64x1xf32> to vector<64x256xf32>
    %7 = arith.addf %4, %6 : vector<64x256xf32>
    %8 = arith.negf %7 : vector<64x256xf32>
    %9 = math.exp %8 : vector<64x256xf32>
    %cst_6 = arith.constant 1.000000e+00 : f32
    %10 = vector.broadcast %cst_6 : f32 to vector<64x256xf32>
    %11 = arith.addf %10, %9 : vector<64x256xf32>
    %12 = arith.divf %10, %11 : vector<64x256xf32>
    %13 = arith.mulf %7, %12 : vector<64x256xf32>
    %c0_7 = arith.constant 0 : index
    %c0_8 = arith.constant 0 : index
    %c0_9 = arith.constant 0 : index
    %14 = vector.load %arg6[%c0_7, %c0_8, %c0_9] : memref<8x1x256xf32, #tpu.memory_space<vmem>>, vector<1x1x256xf32>
    %15 = vector.shape_cast %14 : vector<1x1x256xf32> to vector<1x256xf32>
    %c1 = arith.constant 1 : index
    %c0_10 = arith.constant 0 : index
    %c0_11 = arith.constant 0 : index
    %16 = vector.load %arg6[%c1, %c0_10, %c0_11] : memref<8x1x256xf32, #tpu.memory_space<vmem>>, vector<1x1x256xf32>
    %17 = vector.shape_cast %16 : vector<1x1x256xf32> to vector<1x256xf32>
    %c2 = arith.constant 2 : index
    %c0_12 = arith.constant 0 : index
    %c0_13 = arith.constant 0 : index
    %18 = vector.load %arg6[%c2, %c0_12, %c0_13] : memref<8x1x256xf32, #tpu.memory_space<vmem>>, vector<1x1x256xf32>
    %19 = vector.shape_cast %18 : vector<1x1x256xf32> to vector<1x256xf32>
    %c3 = arith.constant 3 : index
    %c0_14 = arith.constant 0 : index
    %c0_15 = arith.constant 0 : index
    %20 = vector.load %arg6[%c3, %c0_14, %c0_15] : memref<8x1x256xf32, #tpu.memory_space<vmem>>, vector<1x1x256xf32>
    %21 = vector.shape_cast %20 : vector<1x1x256xf32> to vector<1x256xf32>
    %c4 = arith.constant 4 : index
    %c0_16 = arith.constant 0 : index
    %c0_17 = arith.constant 0 : index
    %22 = vector.load %arg6[%c4, %c0_16, %c0_17] : memref<8x1x256xf32, #tpu.memory_space<vmem>>, vector<1x1x256xf32>
    %23 = vector.shape_cast %22 : vector<1x1x256xf32> to vector<1x256xf32>
    %c5 = arith.constant 5 : index
    %c0_18 = arith.constant 0 : index
    %c0_19 = arith.constant 0 : index
    %24 = vector.load %arg6[%c5, %c0_18, %c0_19] : memref<8x1x256xf32, #tpu.memory_space<vmem>>, vector<1x1x256xf32>
    %25 = vector.shape_cast %24 : vector<1x1x256xf32> to vector<1x256xf32>
    %c6 = arith.constant 6 : index
    %c0_20 = arith.constant 0 : index
    %c0_21 = arith.constant 0 : index
    %26 = vector.load %arg6[%c6, %c0_20, %c0_21] : memref<8x1x256xf32, #tpu.memory_space<vmem>>, vector<1x1x256xf32>
    %27 = vector.shape_cast %26 : vector<1x1x256xf32> to vector<1x256xf32>
    %c7 = arith.constant 7 : index
    %c0_22 = arith.constant 0 : index
    %c0_23 = arith.constant 0 : index
    %28 = vector.load %arg6[%c7, %c0_22, %c0_23] : memref<8x1x256xf32, #tpu.memory_space<vmem>>, vector<1x1x256xf32>
    %29 = vector.shape_cast %28 : vector<1x1x256xf32> to vector<1x256xf32>
    %c1_i32 = arith.constant 1 : i32
    %30 = tpu.dynamic_rotate %13 by %c1_i32 dim 1 : vector<64x256xf32>, i32 -> vector<64x256xf32>
    %31 = vector.broadcast %15 : vector<1x256xf32> to vector<64x256xf32>
    %32 = arith.addf %30, %31 : vector<64x256xf32>
    %33 = arith.maximumf %13, %32 : vector<64x256xf32>
    %c2_i32 = arith.constant 2 : i32
    %34 = tpu.dynamic_rotate %13 by %c2_i32 dim 1 : vector<64x256xf32>, i32 -> vector<64x256xf32>
    %35 = vector.broadcast %17 : vector<1x256xf32> to vector<64x256xf32>
    %36 = arith.addf %34, %35 : vector<64x256xf32>
    %37 = arith.maximumf %33, %36 : vector<64x256xf32>
    %c255_i32 = arith.constant 255 : i32
    %38 = tpu.dynamic_rotate %13 by %c255_i32 dim 1 : vector<64x256xf32>, i32 -> vector<64x256xf32>
    %39 = vector.broadcast %19 : vector<1x256xf32> to vector<64x256xf32>
    %40 = arith.addf %38, %39 : vector<64x256xf32>
    %41 = arith.maximumf %37, %40 : vector<64x256xf32>
    %c254_i32 = arith.constant 254 : i32
    %42 = tpu.dynamic_rotate %13 by %c254_i32 dim 1 : vector<64x256xf32>, i32 -> vector<64x256xf32>
    %43 = vector.broadcast %21 : vector<1x256xf32> to vector<64x256xf32>
    %44 = arith.addf %42, %43 : vector<64x256xf32>
    %45 = arith.maximumf %41, %44 : vector<64x256xf32>
    %c16_i32 = arith.constant 16 : i32
    %46 = tpu.dynamic_rotate %45 by %c16_i32 dim 1 : vector<64x256xf32>, i32 -> vector<64x256xf32>
    %47 = vector.broadcast %23 : vector<1x256xf32> to vector<64x256xf32>
    %48 = arith.addf %46, %47 : vector<64x256xf32>
    %49 = arith.maximumf %45, %48 : vector<64x256xf32>
    %c32_i32 = arith.constant 32 : i32
    %50 = tpu.dynamic_rotate %45 by %c32_i32 dim 1 : vector<64x256xf32>, i32 -> vector<64x256xf32>
    %51 = vector.broadcast %25 : vector<1x256xf32> to vector<64x256xf32>
    %52 = arith.addf %50, %51 : vector<64x256xf32>
    %53 = arith.maximumf %49, %52 : vector<64x256xf32>
    %c240_i32 = arith.constant 240 : i32
    %54 = tpu.dynamic_rotate %45 by %c240_i32 dim 1 : vector<64x256xf32>, i32 -> vector<64x256xf32>
    %55 = vector.broadcast %27 : vector<1x256xf32> to vector<64x256xf32>
    %56 = arith.addf %54, %55 : vector<64x256xf32>
    %57 = arith.maximumf %53, %56 : vector<64x256xf32>
    %c224_i32 = arith.constant 224 : i32
    %58 = tpu.dynamic_rotate %45 by %c224_i32 dim 1 : vector<64x256xf32>, i32 -> vector<64x256xf32>
    %59 = vector.broadcast %29 : vector<1x256xf32> to vector<64x256xf32>
    %60 = arith.addf %58, %59 : vector<64x256xf32>
    %61 = arith.maximumf %57, %60 : vector<64x256xf32>
    %c1_i32_24 = arith.constant 1 : i32
    %62 = tpu.dynamic_rotate %61 by %c1_i32_24 dim 1 : vector<64x256xf32>, i32 -> vector<64x256xf32>
    %63 = vector.broadcast %15 : vector<1x256xf32> to vector<64x256xf32>
    %64 = arith.addf %62, %63 : vector<64x256xf32>
    %65 = arith.maximumf %61, %64 : vector<64x256xf32>
    %c2_i32_25 = arith.constant 2 : i32
    %66 = tpu.dynamic_rotate %61 by %c2_i32_25 dim 1 : vector<64x256xf32>, i32 -> vector<64x256xf32>
    %67 = vector.broadcast %17 : vector<1x256xf32> to vector<64x256xf32>
    %68 = arith.addf %66, %67 : vector<64x256xf32>
    %69 = arith.maximumf %65, %68 : vector<64x256xf32>
    %c255_i32_26 = arith.constant 255 : i32
    %70 = tpu.dynamic_rotate %61 by %c255_i32_26 dim 1 : vector<64x256xf32>, i32 -> vector<64x256xf32>
    %71 = vector.broadcast %19 : vector<1x256xf32> to vector<64x256xf32>
    %72 = arith.addf %70, %71 : vector<64x256xf32>
    %73 = arith.maximumf %69, %72 : vector<64x256xf32>
    %c254_i32_27 = arith.constant 254 : i32
    %74 = tpu.dynamic_rotate %61 by %c254_i32_27 dim 1 : vector<64x256xf32>, i32 -> vector<64x256xf32>
    %75 = vector.broadcast %21 : vector<1x256xf32> to vector<64x256xf32>
    %76 = arith.addf %74, %75 : vector<64x256xf32>
    %77 = arith.maximumf %73, %76 : vector<64x256xf32>
    %c16_i32_28 = arith.constant 16 : i32
    %78 = tpu.dynamic_rotate %77 by %c16_i32_28 dim 1 : vector<64x256xf32>, i32 -> vector<64x256xf32>
    %79 = vector.broadcast %23 : vector<1x256xf32> to vector<64x256xf32>
    %80 = arith.addf %78, %79 : vector<64x256xf32>
    %81 = arith.maximumf %77, %80 : vector<64x256xf32>
    %c32_i32_29 = arith.constant 32 : i32
    %82 = tpu.dynamic_rotate %77 by %c32_i32_29 dim 1 : vector<64x256xf32>, i32 -> vector<64x256xf32>
    %83 = vector.broadcast %25 : vector<1x256xf32> to vector<64x256xf32>
    %84 = arith.addf %82, %83 : vector<64x256xf32>
    %85 = arith.maximumf %81, %84 : vector<64x256xf32>
    %c240_i32_30 = arith.constant 240 : i32
    %86 = tpu.dynamic_rotate %77 by %c240_i32_30 dim 1 : vector<64x256xf32>, i32 -> vector<64x256xf32>
    %87 = vector.broadcast %27 : vector<1x256xf32> to vector<64x256xf32>
    %88 = arith.addf %86, %87 : vector<64x256xf32>
    %89 = arith.maximumf %85, %88 : vector<64x256xf32>
    %c224_i32_31 = arith.constant 224 : i32
    %90 = tpu.dynamic_rotate %77 by %c224_i32_31 dim 1 : vector<64x256xf32>, i32 -> vector<64x256xf32>
    %91 = vector.broadcast %29 : vector<1x256xf32> to vector<64x256xf32>
    %92 = arith.addf %90, %91 : vector<64x256xf32>
    %93 = arith.maximumf %89, %92 : vector<64x256xf32>
    %c1_i32_32 = arith.constant 1 : i32
    %94 = tpu.dynamic_rotate %93 by %c1_i32_32 dim 1 : vector<64x256xf32>, i32 -> vector<64x256xf32>
    %95 = vector.broadcast %15 : vector<1x256xf32> to vector<64x256xf32>
    %96 = arith.addf %94, %95 : vector<64x256xf32>
    %97 = arith.maximumf %93, %96 : vector<64x256xf32>
    %c2_i32_33 = arith.constant 2 : i32
    %98 = tpu.dynamic_rotate %93 by %c2_i32_33 dim 1 : vector<64x256xf32>, i32 -> vector<64x256xf32>
    %99 = vector.broadcast %17 : vector<1x256xf32> to vector<64x256xf32>
    %100 = arith.addf %98, %99 : vector<64x256xf32>
    %101 = arith.maximumf %97, %100 : vector<64x256xf32>
    %c255_i32_34 = arith.constant 255 : i32
    %102 = tpu.dynamic_rotate %93 by %c255_i32_34 dim 1 : vector<64x256xf32>, i32 -> vector<64x256xf32>
    %103 = vector.broadcast %19 : vector<1x256xf32> to vector<64x256xf32>
    %104 = arith.addf %102, %103 : vector<64x256xf32>
    %105 = arith.maximumf %101, %104 : vector<64x256xf32>
    %c254_i32_35 = arith.constant 254 : i32
    %106 = tpu.dynamic_rotate %93 by %c254_i32_35 dim 1 : vector<64x256xf32>, i32 -> vector<64x256xf32>
    %107 = vector.broadcast %21 : vector<1x256xf32> to vector<64x256xf32>
    %108 = arith.addf %106, %107 : vector<64x256xf32>
    %109 = arith.maximumf %105, %108 : vector<64x256xf32>
    %c16_i32_36 = arith.constant 16 : i32
    %110 = tpu.dynamic_rotate %109 by %c16_i32_36 dim 1 : vector<64x256xf32>, i32 -> vector<64x256xf32>
    %111 = vector.broadcast %23 : vector<1x256xf32> to vector<64x256xf32>
    %112 = arith.addf %110, %111 : vector<64x256xf32>
    %113 = arith.maximumf %109, %112 : vector<64x256xf32>
    %c32_i32_37 = arith.constant 32 : i32
    %114 = tpu.dynamic_rotate %109 by %c32_i32_37 dim 1 : vector<64x256xf32>, i32 -> vector<64x256xf32>
    %115 = vector.broadcast %25 : vector<1x256xf32> to vector<64x256xf32>
    %116 = arith.addf %114, %115 : vector<64x256xf32>
    %117 = arith.maximumf %113, %116 : vector<64x256xf32>
    %c240_i32_38 = arith.constant 240 : i32
    %118 = tpu.dynamic_rotate %109 by %c240_i32_38 dim 1 : vector<64x256xf32>, i32 -> vector<64x256xf32>
    %119 = vector.broadcast %27 : vector<1x256xf32> to vector<64x256xf32>
    %120 = arith.addf %118, %119 : vector<64x256xf32>
    %121 = arith.maximumf %117, %120 : vector<64x256xf32>
    %c224_i32_39 = arith.constant 224 : i32
    %122 = tpu.dynamic_rotate %109 by %c224_i32_39 dim 1 : vector<64x256xf32>, i32 -> vector<64x256xf32>
    %123 = vector.broadcast %29 : vector<1x256xf32> to vector<64x256xf32>
    %124 = arith.addf %122, %123 : vector<64x256xf32>
    %125 = arith.maximumf %121, %124 : vector<64x256xf32>
    %c0_40 = arith.constant 0 : index
    %c0_41 = arith.constant 0 : index
    %c0_42 = arith.constant 0 : index
    %126 = vector.load %arg4[%c0_40, %c0_41, %c0_42] : memref<4x128x64xbf16, #tpu.memory_space<vmem>>, vector<1x128x64xbf16>
    %127 = vector.shape_cast %126 : vector<1x128x64xbf16> to vector<128x64xbf16>
    %128 = arith.truncf %13 : vector<64x256xf32> to vector<64x256xbf16>
    %cst_43 = arith.constant dense<0.000000e+00> : vector<128x256xf32>
    %129 = tpu.matmul %127, %128, %cst_43 {dimension_numbers = #tpu.dot_dimension_numbers<[1], [0], [0], [1], [0, 0, 1, 1], [], []>} : vector<128x64xbf16>, vector<64x256xbf16>, vector<128x256xf32> -> vector<128x256xf32>
    %c1_44 = arith.constant 1 : index
    %c0_45 = arith.constant 0 : index
    %c0_46 = arith.constant 0 : index
    %130 = vector.load %arg4[%c1_44, %c0_45, %c0_46] : memref<4x128x64xbf16, #tpu.memory_space<vmem>>, vector<1x128x64xbf16>
    %131 = vector.shape_cast %130 : vector<1x128x64xbf16> to vector<128x64xbf16>
    %132 = arith.truncf %61 : vector<64x256xf32> to vector<64x256xbf16>
    %cst_47 = arith.constant dense<0.000000e+00> : vector<128x256xf32>
    %133 = tpu.matmul %131, %132, %cst_47 {dimension_numbers = #tpu.dot_dimension_numbers<[1], [0], [0], [1], [0, 0, 1, 1], [], []>} : vector<128x64xbf16>, vector<64x256xbf16>, vector<128x256xf32> -> vector<128x256xf32>
    %134 = arith.addf %129, %133 : vector<128x256xf32>
    %c2_48 = arith.constant 2 : index
    %c0_49 = arith.constant 0 : index
    %c0_50 = arith.constant 0 : index
    %135 = vector.load %arg4[%c2_48, %c0_49, %c0_50] : memref<4x128x64xbf16, #tpu.memory_space<vmem>>, vector<1x128x64xbf16>
    %136 = vector.shape_cast %135 : vector<1x128x64xbf16> to vector<128x64xbf16>
    %137 = arith.truncf %93 : vector<64x256xf32> to vector<64x256xbf16>
    %cst_51 = arith.constant dense<0.000000e+00> : vector<128x256xf32>
    %138 = tpu.matmul %136, %137, %cst_51 {dimension_numbers = #tpu.dot_dimension_numbers<[1], [0], [0], [1], [0, 0, 1, 1], [], []>} : vector<128x64xbf16>, vector<64x256xbf16>, vector<128x256xf32> -> vector<128x256xf32>
    %139 = arith.addf %134, %138 : vector<128x256xf32>
    %c3_52 = arith.constant 3 : index
    %c0_53 = arith.constant 0 : index
    %c0_54 = arith.constant 0 : index
    %140 = vector.load %arg4[%c3_52, %c0_53, %c0_54] : memref<4x128x64xbf16, #tpu.memory_space<vmem>>, vector<1x128x64xbf16>
    %141 = vector.shape_cast %140 : vector<1x128x64xbf16> to vector<128x64xbf16>
    %142 = arith.truncf %125 : vector<64x256xf32> to vector<64x256xbf16>
    %cst_55 = arith.constant dense<0.000000e+00> : vector<128x256xf32>
    %143 = tpu.matmul %141, %142, %cst_55 {dimension_numbers = #tpu.dot_dimension_numbers<[1], [0], [0], [1], [0, 0, 1, 1], [], []>} : vector<128x64xbf16>, vector<64x256xbf16>, vector<128x256xf32> -> vector<128x256xf32>
    %144 = arith.addf %139, %143 : vector<128x256xf32>
    %c0_56 = arith.constant 0 : index
    %c0_57 = arith.constant 0 : index
    %145 = vector.load %arg5[%c0_56, %c0_57] : memref<128x1xf32, #tpu.memory_space<vmem>>, vector<128x1xf32>
    %146 = vector.broadcast %145 : vector<128x1xf32> to vector<128x256xf32>
    %147 = arith.addf %144, %146 : vector<128x256xf32>
    %148 = arith.negf %147 : vector<128x256xf32>
    %149 = math.exp %148 : vector<128x256xf32>
    %cst_58 = arith.constant 1.000000e+00 : f32
    %150 = vector.broadcast %cst_58 : f32 to vector<128x256xf32>
    %151 = arith.addf %150, %149 : vector<128x256xf32>
    %152 = arith.divf %150, %151 : vector<128x256xf32>
    %153 = arith.mulf %147, %152 : vector<128x256xf32>
    %154 = arith.truncf %153 : vector<128x256xf32> to vector<128x256xbf16>
    %c0_59 = arith.constant 0 : index
    %c0_60 = arith.constant 0 : index
    %c0_61 = arith.constant 0 : index
    %155 = vector.load %arg7[%c0_59, %c0_60, %c0_61] : memref<1x128x256xbf16, #tpu.memory_space<vmem>>, vector<1x128x256xbf16>
    %156 = vector.shape_cast %155 : vector<1x128x256xbf16> to vector<128x256xbf16>
    %157 = vector.shape_cast %154 : vector<128x256xbf16> to vector<1x128x256xbf16>
    tpu.vector_store %arg7[%c0_59, %c0_60, %c0_61], %157 {strides = array<i32>} : memref<1x128x256xbf16, #tpu.memory_space<vmem>>, vector<1x128x256xbf16>,
    return
  }
  func.func @transform_0(%arg0: i32) -> (i32, i32, i32) {
    %c0_i32 = arith.constant 0 : i32
    %c0_i32_0 = arith.constant 0 : i32
    %c0_i32_1 = arith.constant 0 : i32
    return %arg0, %c0_i32, %c0_i32_0 : i32, i32, i32
  }
  func.func @transform_1(%arg0: i32) -> (i32, i32) {
    %c0_i32 = arith.constant 0 : i32
    %c0_i32_0 = arith.constant 0 : i32
    %c0_i32_1 = arith.constant 0 : i32
    return %c0_i32, %c0_i32_0 : i32, i32
  }
  func.func @transform_2(%arg0: i32) -> (i32, i32) {
    %c0_i32 = arith.constant 0 : i32
    %c0_i32_0 = arith.constant 0 : i32
    %c0_i32_1 = arith.constant 0 : i32
    return %c0_i32, %c0_i32_0 : i32, i32
  }
  func.func @transform_3(%arg0: i32) -> (i32, i32, i32) {
    %c0_i32 = arith.constant 0 : i32
    %c0_i32_0 = arith.constant 0 : i32
    %c0_i32_1 = arith.constant 0 : i32
    %c0_i32_2 = arith.constant 0 : i32
    return %c0_i32, %c0_i32_0, %c0_i32_1 : i32, i32, i32
  }
  func.func @transform_4(%arg0: i32) -> (i32, i32) {
    %c0_i32 = arith.constant 0 : i32
    %c0_i32_0 = arith.constant 0 : i32
    %c0_i32_1 = arith.constant 0 : i32
    return %c0_i32, %c0_i32_0 : i32, i32
  }
  func.func @transform_5(%arg0: i32) -> (i32, i32, i32) {
    %c0_i32 = arith.constant 0 : i32
    %c0_i32_0 = arith.constant 0 : i32
    %c0_i32_1 = arith.constant 0 : i32
    %c0_i32_2 = arith.constant 0 : i32
    return %c0_i32, %c0_i32_0, %c0_i32_1 : i32, i32, i32
  }
  func.func @transform_6(%arg0: i32) -> (i32, i32, i32) {
    %c0_i32 = arith.constant 0 : i32
    %c0_i32_0 = arith.constant 0 : i32
    %c0_i32_1 = arith.constant 0 : i32
    return %arg0, %c0_i32, %c0_i32_0 : i32, i32, i32
  }
}

</mosaic_0001>

<llo_original>
// kernel: tpu_custom_call.1
$region0: #{tpu_custom_call.1}
  #allocation0 [shape = 'u32[]', space=smem, size = 0x4, offset = 0x4, fixed_abs, tag = 'smem constant byte address 0x4 - core index']
  #allocation1 [shape = 'u32[72,128]{1,0:T(1,128)}', space=vmem, size = 0x9000, scoped, tag = 'internal scratch']
  %s0 = inlined_call_operand.hbm [shape: s32[8,128], index: 0, kind: input, shape index: {}]
  %s1 = inlined_call_operand.hbm [shape: s32[8,128], index: 1, kind: output, shape index: {}]
  %s2 = sld [smem:[#allocation0]]
  $region18: #{tpu_custom_call.1} parent=0
    _
  %s4 = ssub.s32 1, %s2
  %s5 = scalar_select 0, %s4, %s2
  $region1: #{tpu_custom_call.1} parent=0
    #allocation2 [shape = 'u8[4096]{0}', space=vmem, size = 0x1000, scoped, tag = 'input window, operand 0, single buffered']
    #allocation3 [shape = 's32[1]{0}', space=sflag, size = 0x4, scoped, tag = 'scoped memory for tpu_custom_call.1']
    #allocation4 [shape = 's32[1]{0}', space=sflag, size = 0x4, scoped, tag = 'scoped memory for tpu_custom_call.1']
    #allocation5 [shape = 'u8[4096]{0}', space=vmem, size = 0x1000, scoped, tag = 'output window, operand 0, single buffered']
    %6 = vsyncpa [#allocation3], 0
    %7 = vsyncpa [#allocation4], 0
    // Predicated region
    $region2: #{tpu_custom_call.1} parent=1 // pred_check
      _
    $region3: #{tpu_custom_call.1} parent=1 // pred_check_branch
      %9 = sbr.rel (0) target = $region5
    $region4: #{tpu_custom_call.1} parent=1 // pred_region
      %11 = vsyncadd [#allocation3], 0
      %s13 = sshll.u32 %s0, 4
      %s14 = int_to_ptr.hbm [resolvable:$true] %s13
      %s15 = sshll.u32 [#allocation2], 4
      %s16 = int_to_ptr.vmem [resolvable:$true] %s15
      %18 = dma.hbm_to_vmem [thread:$0]  %s14, 128, %s16, [#allocation3]
    $region5: #{tpu_custom_call.1} parent=1 // pred_fallthru
      _
    // Predicated region
    $region6: #{tpu_custom_call.1} parent=1 // pred_check
      _
    $region7: #{tpu_custom_call.1} parent=1 // pred_check_branch
      %20 = sbr.rel (0) target = $region9
    $region8: #{tpu_custom_call.1} parent=1 // pred_region
      %22 = dma.done [#allocation3], 128
    $region9: #{tpu_custom_call.1} parent=1 // pred_fallthru
      _
    %v23 = vld [vmem:[#allocation2] sm:$0xff]
    %24 = vrot.lane.b32.xlu0 %v23, 1
    %v25 = vpop.permute.xlu0 %24
    %26 = vst [vmem:[#allocation5] sm:$0xff] %v25
    // Predicated region
    $region10: #{tpu_custom_call.1} parent=1 // pred_check
      _
    $region11: #{tpu_custom_call.1} parent=1 // pred_check_branch
      %28 = sbr.rel (0) target = $region13
    $region12: #{tpu_custom_call.1} parent=1 // pred_region
      %30 = vsyncadd [#allocation4], 0
      %s32 = sshll.u32 [#allocation5], 4
      %s33 = int_to_ptr.vmem [resolvable:$true] %s32
      %s34 = sshll.u32 %s1, 4
      %s35 = int_to_ptr.hbm [resolvable:$true] %s34
      %37 = dma.vmem_to_hbm [thread:$0]  %s33, 128, %s35, [#allocation4]
    $region13: #{tpu_custom_call.1} parent=1 // pred_fallthru
      _
    // Predicated region
    $region14: #{tpu_custom_call.1} parent=1 // pred_check
      _
    $region15: #{tpu_custom_call.1} parent=1 // pred_check_branch
      %39 = sbr.rel (0) target = $region17
    $region16: #{tpu_custom_call.1} parent=1 // pred_region
      %41 = dma.done [#allocation4], 128
    $region17: #{tpu_custom_call.1} parent=1 // pred_fallthru
      _
    %42 = vsyncpa [#allocation3], 1
    %43 = vsyncpa [#allocation4], 1

// kernel: sppelan_forward.1
$region0: #{sppelan_forward.1}
  #allocation0 [shape = 'u32[]', space=smem, size = 0x4, offset = 0x4, fixed_abs, tag = 'smem constant byte address 0x4 - core index']
  #allocation1 [shape = 'u32[72,128]{1,0:T(1,128)}', space=vmem, size = 0x9000, scoped, tag = 'internal scratch']
  %s0 = inlined_call_operand.vmem [shape: f32[2,64,256], index: 0, kind: input, shape index: {}]
  %s1 = inlined_call_operand.vmem [shape: bf16[64,64], index: 1, kind: input, shape index: {}]
  %s2 = inlined_call_operand.vmem [shape: f32[64,1], index: 2, kind: input, shape index: {}]
  %s3 = inlined_call_operand.vmem [shape: bf16[4,128,64], index: 3, kind: input, shape index: {}]
  %s4 = inlined_call_operand.vmem [shape: f32[128,1], index: 4, kind: input, shape index: {}]
  %s5 = inlined_call_operand.vmem [shape: f32[8,1,256], index: 5, kind: input, shape index: {}]
  %s6 = inlined_call_operand.vmem [shape: bf16[2,128,256], index: 6, kind: output, shape index: {}]
  %s7 = sld [smem:[#allocation0]]
  $region57: #{sppelan_forward.1} parent=0
    _
  %s9 = ssub.s32 1, %s7
  %s10 = scalar_select 0, %s9, %s7
  loop: start=0, step=1, limit=4
  $region2: #{sppelan_forward.1} parent=0 // loop_pre_header
    _
  $region3: #{sppelan_forward.1} parent=0 // loop_header
    %s12 = sphi 0, %s16
    %p13 = scmp.ge.s32.totalorder %s12, 4
    %s22 = sphi 0, %s24
    %s25 = sphi 0, %s22
    %s26 = sphi 0, %s25
    %s42 = sphi 0, %s26
    %s46 = sphi 0, %s46
    %s48 = sphi 0, %s46
    %s49 = sphi 0, %s48
    %s63 = sphi 0, %s49
    %s67 = sphi 0, %s67
    %s69 = sphi 0, %s67
    %s70 = sphi 0, %s69
    %s84 = sphi 0, %s70
    %s88 = sphi 0, %s88
    %s90 = sphi 0, %s88
    %s91 = sphi 0, %s90
    %s105 = sphi 0, %s91
    %s109 = sphi 0, %s109
    %s111 = sphi 0, %s109
    %s112 = sphi 0, %s111
    %s126 = sphi 0, %s112
    %s130 = sphi 0, %s130
    %s132 = sphi 0, %s130
    %s133 = sphi 0, %s132
    %s147 = sphi 0, %s133
    %s153 = sphi 0, %s155
    %s156 = sphi 0, %s153
    %s157 = sphi 0, %s156
    %s173 = sphi 0, %s157
  $region4: #{sppelan_forward.1} parent=0 // loop_header_branch
    %15 = sbr.rel (%p13) target = $region8
  $region5: #{sppelan_forward.1} parent=0 // loop_body
    %s17 = ssub.s32 %s12, 1
    %s18 = ssub.s32 %s12, 2
    %s19 = sadd.s32 %s12, 1
    %s20 = ssub.s32 %s12, %s19
    %p21 = scmp.eq.s32.totalorder %s20, 0
    %s23 = sadd.s32 %s22, 1
    %s24 = scalar_select %p21, %s22, %s23
    %p27 = pneg %p21
    %p28 = scmp.eq.s32.totalorder %s12, 1
    %p29 = por %p27, %p28
    %p30 = scmp.ne.s32.totalorder %s22, %s25
    %p31 = scmp.eq.s32.totalorder %s12, 0
    %p32 = por %p30, %p31
    %p33 = scmp.ne.s32.totalorder %s22, %s25
    %p34 = scmp.eq.s32.totalorder %s17, 1
    %p35 = por %p33, %p34
    %p36 = scmp.ne.s32.totalorder %s25, %s26
    %p37 = scmp.eq.s32.totalorder %s17, 0
    %p38 = por %p36, %p37
    %p39 = scmp.ne.s32.totalorder %s25, %s26
    %p40 = scmp.eq.s32.totalorder %s18, 1
    %p41 = por %p39, %p40
    %p43 = scmp.ne.s32.totalorder %s26, %s42
    %p44 = scmp.eq.s32.totalorder %s18, 0
    %p45 = por %p43, %p44
    %s47 = sadd.s32 %s46, 1
    %p50 = scmp.eq.s32.totalorder %s12, 1
    %p51 = scmp.ne.s32.totalorder %s46, %s48
    %p52 = scmp.eq.s32.totalorder %s12, 0
    %p53 = por %p51, %p52
    %p54 = scmp.ne.s32.totalorder %s46, %s48
    %p55 = scmp.eq.s32.totalorder %s17, 1
    %p56 = por %p54, %p55
    %p57 = scmp.ne.s32.totalorder %s48, %s49
    %p58 = scmp.eq.s32.totalorder %s17, 0
    %p59 = por %p57, %p58
    %p60 = scmp.ne.s32.totalorder %s48, %s49
    %p61 = scmp.eq.s32.totalorder %s18, 1
    %p62 = por %p60, %p61
    %p64 = scmp.ne.s32.totalorder %s49, %s63
    %p65 = scmp.eq.s32.totalorder %s18, 0
    %p66 = por %p64, %p65
    %s68 = sadd.s32 %s67, 1
    %p71 = scmp.eq.s32.totalorder %s12, 1
    %p72 = scmp.ne.s32.totalorder %s67, %s69
    %p73 = scmp.eq.s32.totalorder %s12, 0
    %p74 = por %p72, %p73
    %p75 = scmp.ne.s32.totalorder %s67, %s69
    %p76 = scmp.eq.s32.totalorder %s17, 1
    %p77 = por %p75, %p76
    %p78 = scmp.ne.s32.totalorder %s69, %s70
    %p79 = scmp.eq.s32.totalorder %s17, 0
    %p80 = por %p78, %p79
    %p81 = scmp.ne.s32.totalorder %s69, %s70
    %p82 = scmp.eq.s32.totalorder %s18, 1
    %p83 = por %p81, %p82
    %p85 = scmp.ne.s32.totalorder %s70, %s84
    %p86 = scmp.eq.s32.totalorder %s18, 0
    %p87 = por %p85, %p86
    %s89 = sadd.s32 %s88, 1
    %p92 = scmp.eq.s32.totalorder %s12, 1
    %p93 = scmp.ne.s32.totalorder %s88, %s90
    %p94 = scmp.eq.s32.totalorder %s12, 0
    %p95 = por %p93, %p94
    %p96 = scmp.ne.s32.totalorder %s88, %s90
    %p97 = scmp.eq.s32.totalorder %s17, 1
    %p98 = por %p96, %p97
    %p99 = scmp.ne.s32.totalorder %s90, %s91
    %p100 = scmp.eq.s32.totalorder %s17, 0
    %p101 = por %p99, %p100
    %p102 = scmp.ne.s32.totalorder %s90, %s91
    %p103 = scmp.eq.s32.totalorder %s18, 1
    %p104 = por %p102, %p103
    %p106 = scmp.ne.s32.totalorder %s91, %s105
    %p107 = scmp.eq.s32.totalorder %s18, 0
    %p108 = por %p106, %p107
    %s110 = sadd.s32 %s109, 1
    %p113 = scmp.eq.s32.totalorder %s12, 1
    %p114 = scmp.ne.s32.totalorder %s109, %s111
    %p115 = scmp.eq.s32.totalorder %s12, 0
    %p116 = por %p114, %p115
    %p117 = scmp.ne.s32.totalorder %s109, %s111
    %p118 = scmp.eq.s32.totalorder %s17, 1
    %p119 = por %p117, %p118
    %p120 = scmp.ne.s32.totalorder %s111, %s112
    %p121 = scmp.eq.s32.totalorder %s17, 0
    %p122 = por %p120, %p121
    %p123 = scmp.ne.s32.totalorder %s111, %s112
    %p124 = scmp.eq.s32.totalorder %s18, 1
    %p125 = por %p123, %p124
    %p127 = scmp.ne.s32.totalorder %s112, %s126
    %p128 = scmp.eq.s32.totalorder %s18, 0
    %p129 = por %p127, %p128
    %s131 = sadd.s32 %s130, 1
    %p134 = scmp.eq.s32.totalorder %s12, 1
    %p135 = scmp.ne.s32.totalorder %s130, %s132
    %p136 = scmp.eq.s32.totalorder %s12, 0
    %p137 = por %p135, %p136
    %p138 = scmp.ne.s32.totalorder %s130, %s132
    %p139 = scmp.eq.s32.totalorder %s17, 1
    %p140 = por %p138, %p139
    %p141 = scmp.ne.s32.totalorder %s132, %s133
    %p142 = scmp.eq.s32.totalorder %s17, 0
    %p143 = por %p141, %p142
    %p144 = scmp.ne.s32.totalorder %s132, %s133
    %p145 = scmp.eq.s32.totalorder %s18, 1
    %p146 = por %p144, %p145
    %p148 = scmp.ne.s32.totalorder %s133, %s147
    %p149 = scmp.eq.s32.totalorder %s18, 0
    %p150 = por %p148, %p149
    %s151 = ssub.s32 %s12, %s19
    %p152 = scmp.eq.s32.totalorder %s151, 0
    %s154 = sadd.s32 %s153, 1
    %s155 = scalar_select %p152, %s153, %s154
    %p158 = pneg %p152
    %p159 = scmp.eq.s32.totalorder %s12, 1
    %p160 = por %p158, %p159
    %p161 = scmp.ne.s32.totalorder %s153, %s156
    %p162 = scmp.eq.s32.totalorder %s12, 0
    %p163 = por %p161, %p162
    %p164 = scmp.ne.s32.totalorder %s153, %s156
    %p165 = scmp.eq.s32.totalorder %s17, 1
    %p166 = por %p164, %p165
    %p167 = scmp.ne.s32.totalorder %s156, %s157
    %p168 = scmp.eq.s32.totalorder %s17, 0
    %p169 = por %p167, %p168
    %p170 = scmp.ne.s32.totalorder %s156, %s157
    %p171 = scmp.eq.s32.totalorder %s18, 1
    %p172 = por %p170, %p171
    %p174 = scmp.ne.s32.totalorder %s157, %s173
    %p175 = scmp.eq.s32.totalorder %s18, 0
    %p176 = por %p174, %p175
    %p177 = scmp.le.s32.totalorder 1, %s12
    %p178 = scmp.lt.s32.totalorder %s12, 3
    %p179 = pnand %p177, %p178
    %p180 = pneg %p179
    // Predicated region
    $region9: #{sppelan_forward.1} parent=5 // pred_check
      _
    $region10: #{sppelan_forward.1} parent=5 // pred_check_branch
      %182 = sbr.rel (%p179) target = $region12
    $region11: #{sppelan_forward.1} parent=5 // pred_region
      %s183 = ssub.s32 %s12, 1
      // Predicated region
      $region13: #{sppelan_forward.1} parent=11 // pred_check
        %p184 = pneg %p59
      $region14: #{sppelan_forward.1} parent=11 // pred_check_branch
        %186 = sbr.rel (%p184) target = $region16
      $region15: #{sppelan_forward.1} parent=11 // pred_region
        _
      $region16: #{sppelan_forward.1} parent=11 // pred_fallthru
        _
      // Predicated region
      $region17: #{sppelan_forward.1} parent=11 // pred_check
        %p187 = pneg %p80
      $region18: #{sppelan_forward.1} parent=11 // pred_check_branch
        %189 = sbr.rel (%p187) target = $region20
      $region19: #{sppelan_forward.1} parent=11 // pred_region
        _
      $region20: #{sppelan_forward.1} parent=11 // pred_fallthru
        _
      // Predicated region
      $region21: #{sppelan_forward.1} parent=11 // pred_check
        %p190 = pneg %p101
      $region22: #{sppelan_forward.1} parent=11 // pred_check_branch
        %192 = sbr.rel (%p190) target = $region24
      $region23: #{sppelan_forward.1} parent=11 // pred_region
        _
      $region24: #{sppelan_forward.1} parent=11 // pred_fallthru
        _
      // Predicated region
      $region25: #{sppelan_forward.1} parent=11 // pred_check
        %p193 = pneg %p122
      $region26: #{sppelan_forward.1} parent=11 // pred_check_branch
        %195 = sbr.rel (%p193) target = $region28
      $region27: #{sppelan_forward.1} parent=11 // pred_region
        _
      $region28: #{sppelan_forward.1} parent=11 // pred_fallthru
        _
      // Predicated region
      $region29: #{sppelan_forward.1} parent=11 // pred_check
        %p196 = pneg %p143
      $region30: #{sppelan_forward.1} parent=11 // pred_check_branch
        %198 = sbr.rel (%p196) target = $region32
      $region31: #{sppelan_forward.1} parent=11 // pred_region
        _
      $region32: #{sppelan_forward.1} parent=11 // pred_fallthru
        _
    $region12: #{sppelan_forward.1} parent=5 // pred_fallthru
      _
    %p199 = scmp.lt.s32.totalorder %s12, 2
    // Predicated region
    $region33: #{sppelan_forward.1} parent=5 // pred_check
      %p200 = pneg %p199
    $region34: #{sppelan_forward.1} parent=5 // pred_check_branch
      %202 = sbr.rel (%p200) target = $region36
    $region35: #{sppelan_forward.1} parent=5 // pred_region
      // Predicated region
      $region37: #{sppelan_forward.1} parent=35 // pred_check
        %p203 = pneg %p32
      $region38: #{sppelan_forward.1} parent=35 // pred_check_branch
        %205 = sbr.rel (%p203) target = $region40
      $region39: #{sppelan_forward.1} parent=35 // pred_region
        %p206 = scmp.lt.s32.totalorder %s12, 1
        %s207 = scalar_select %p206, %s12, 1
        %s208 = smul.addr %s207, 16
        %s209 = smul.addr %s208, 8
        %s210 = scalar_lea.vmem %s0, %s209
      $region40: #{sppelan_forward.1} parent=35 // pred_fallthru
        _
    $region36: #{sppelan_forward.1} parent=5 // pred_fallthru
      _
    %p211 = scmp.le.s32.totalorder 1, %s12
    %p212 = scmp.lt.s32.totalorder %s12, 3
    %p213 = pnand %p211, %p212
    %p214 = pneg %p213
    // Predicated region
    $region41: #{sppelan_forward.1} parent=5 // pred_check
      _
    $region42: #{sppelan_forward.1} parent=5 // pred_check_branch
      %216 = sbr.rel (%p213) target = $region44
    $region43: #{sppelan_forward.1} parent=5 // pred_region
      %s217 = ssub.s32 %s12, 1
      %p218 = scmp.lt.s32.totalorder %s17, 1
      %s219 = scalar_select %p218, %s17, 1
      %s220 = smul.addr %s219, 16
      %s221 = smul.addr %s220, 8
      %s222 = scalar_lea.vmem %s0, %s221
      %p223 = pneg %p38
      %p224 = pneg %p35
      %p225 = pneg %p59
      %p226 = pneg %p56
      %p227 = pneg %p80
      %p228 = pneg %p77
      %p229 = pneg %p101
      %p230 = pneg %p98
      %p231 = pneg %p122
      %p232 = pneg %p119
      %p233 = pneg %p143
      %p234 = pneg %p140
      %p235 = pneg %p169
      %p236 = pneg %p166
      %p237 = scmp.lt.s32.totalorder %s17, 1
      %s238 = scalar_select %p237, %s17, 1
      %s239 = smul.addr %s238, 32
      %s240 = smul.addr %s239, 4
      %s241 = scalar_lea.vmem %s6, %s240
      %p242 = scmp.lt.s32.totalorder %s17, 1
      %s243 = scalar_select %p242, %s17, 1
      %s244 = smul.addr %s243, 16
      %s245 = smul.addr %s244, 8
      %s246 = scalar_lea.vmem %s0, %s245
      %p247 = scmp.lt.s32.totalorder %s17, 1
      %s248 = scalar_select %p247, %s17, 1
      %s249 = smul.addr %s248, 32
      %s250 = smul.addr %s249, 4
      %s251 = scalar_lea.vmem %s6, %s250
      %v253 = vld [vmem:[%s246] sm:$0xff]
      %v254 = vld [vmem:[%s246 + $0x8] sm:$0xff]
      %v255 = vld [vmem:[%s246 + $0x10] sm:$0xff]
      %v256 = vld [vmem:[%s246 + $0x18] sm:$0xff]
      %v257 = vld [vmem:[%s246 + $0x20] sm:$0xff]
      %v258 = vld [vmem:[%s246 + $0x28] sm:$0xff]
      %v259 = vld [vmem:[%s246 + $0x30] sm:$0xff]
      %v260 = vld [vmem:[%s246 + $0x38] sm:$0xff]
      %v261 = vld [vmem:[%s246 + $0x40] sm:$0xff]
      %v262 = vld [vmem:[%s246 + $0x48] sm:$0xff]
      %v263 = vld [vmem:[%s246 + $0x50] sm:$0xff]
      %v264 = vld [vmem:[%s246 + $0x58] sm:$0xff]
      %v265 = vld [vmem:[%s246 + $0x60] sm:$0xff]
      %v266 = vld [vmem:[%s246 + $0x68] sm:$0xff]
      %v267 = vld [vmem:[%s246 + $0x70] sm:$0xff]
      %v268 = vld [vmem:[%s246 + $0x78] sm:$0xff]
      %v269 = vpack.c.bf16 %v255, %v253
      %v270 = vpack.c.bf16 %v256, %v254
      %v271 = vpack.c.bf16 %v259, %v257
      %v272 = vpack.c.bf16 %v260, %v258
      %v273 = vpack.c.bf16 %v263, %v261
      %v274 = vpack.c.bf16 %v264, %v262
      %v275 = vpack.c.bf16 %v267, %v265
      %v276 = vpack.c.bf16 %v268, %v266
      %v277 = vld [vmem:[%s1] sm:$0xf]
      %v278 = vld [vmem:[%s1 + $0x4] sm:$0xf]
      %v279 = vld [vmem:[%s1 + $0x8] sm:$0xf]
      %v280 = vld [vmem:[%s1 + $0xc] sm:$0xf]
      %v281 = vld [vmem:[%s1 + $0x10] sm:$0xf]
      %v282 = vld [vmem:[%s1 + $0x14] sm:$0xf]
      %v283 = vld [vmem:[%s1 + $0x18] sm:$0xf]
      %v284 = vld [vmem:[%s1 + $0x1c] sm:$0xf]
      %v285 = vld [vmem:[%s2] sm:$0xff]
      %v286 = vld [vmem:[%s2 + $0x8] sm:$0xff]
      %v287 = vld [vmem:[%s2 + $0x10] sm:$0xff]
      %v288 = vld [vmem:[%s2 + $0x18] sm:$0xff]
      %v289 = vld [vmem:[%s2 + $0x20] sm:$0xff]
      %v290 = vld [vmem:[%s2 + $0x28] sm:$0xff]
      %v291 = vld [vmem:[%s2 + $0x30] sm:$0xff]
      %v292 = vld [vmem:[%s2 + $0x38] sm:$0xff]
      %294 = vset.pattern.permute.xlu0 0
      %295 = vperm.xlu0 %294, %v285
      %v296 = vpop.permute.xlu0 %295
      %299 = vset.pattern.permute.xlu0 0
      %300 = vperm.xlu0 %299, %v286
      %v301 = vpop.permute.xlu0 %300
      %304 = vset.pattern.permute.xlu0 0
      %305 = vperm.xlu0 %304, %v287
      %v306 = vpop.permute.xlu0 %305
      %309 = vset.pattern.permute.xlu0 0
      %310 = vperm.xlu0 %309, %v288
      %v311 = vpop.permute.xlu0 %310
      %314 = vset.pattern.permute.xlu0 0
      %315 = vperm.xlu0 %314, %v289
      %v316 = vpop.permute.xlu0 %315
      %319 = vset.pattern.permute.xlu0 0
      %320 = vperm.xlu0 %319, %v290
      %v321 = vpop.permute.xlu0 %320
      %324 = vset.pattern.permute.xlu0 0
      %325 = vperm.xlu0 %324, %v291
      %v326 = vpop.permute.xlu0 %325
      %329 = vset.pattern.permute.xlu0 0
      %330 = vperm.xlu0 %329, %v292
      %v331 = vpop.permute.xlu0 %330
      %v341 = vunpack.c.l.b16 %v277
      %v342 = vunpack.c.l.b16 %v278
      %v343 = vunpack.c.l.b16 %v279
      %v344 = vunpack.c.l.b16 %v280
      %v345 = vunpack.c.l.b16 %v281
      %v346 = vunpack.c.l.b16 %v282
      %v347 = vunpack.c.l.b16 %v283
      %v348 = vunpack.c.l.b16 %v284
      %v349 = vpack.c.b16 %v342, %v341
      %v350 = vpack.c.b16 %v344, %v343
      %v351 = vpack.c.b16 %v346, %v345
      %v352 = vpack.c.b16 %v348, %v347
      %vm353 = vcmask 523264
      %v355 = vsel %vm353, %v349, 0
      %v358 = vsel %vm353, %v350, 0
      %v361 = vsel %vm353, %v351, 0
      %v364 = vsel %vm353, %v352, 0
      %366 = vmatpush.bf16.msra.mxu0 0
      %367 = vmatpush.bf16.msra.mxu0 0
      %368 = vmatpush.bf16.msra.mxu0 0
      %369 = vmatpush.bf16.msra.mxu0 0
      %370 = vmatpush.bf16.msra.mxu0 %v275
      %371 = vmatpush.bf16.msra.mxu0 %v273
      %372 = vmatpush.bf16.msra.mxu0 %v271
      %373 = vmatpush.bf16.msra.mxu0 %v269
      %374 = vmatmul.bf16.gmra.mxu0 %v355
      %v375 = vpop.f32.mrf.mxu0
      %v376 = vadd.f32 %v296, %v375
      %v377 = vpop.f32.mrf.mxu0
      %v378 = vadd.f32 %v301, %v377
      %379 = vmatmul.bf16.gmra.mxu0 %v358
      %v380 = vpop.f32.mrf.mxu0
      %v381 = vadd.f32 %v306, %v380
      %v382 = vpop.f32.mrf.mxu0
      %v383 = vadd.f32 %v311, %v382
      %384 = vmatmul.bf16.gmra.mxu0 %v361
      %v385 = vpop.f32.mrf.mxu0
      %v386 = vadd.f32 %v316, %v385
      %v387 = vpop.f32.mrf.mxu0
      %v388 = vadd.f32 %v321, %v387
      %389 = vmatmul.bf16.gmra.mxu0 %v364
      %v390 = vpop.f32.mrf.mxu0
      %v391 = vadd.f32 %v326, %v390
      %v392 = vpop.f32.mrf.mxu0
      %v393 = vadd.f32 %v331, %v392
      %394 = vdwg.mxu0
      %395 = vmatpush.bf16.msra.mxu0 0
      %396 = vmatpush.bf16.msra.mxu0 0
      %397 = vmatpush.bf16.msra.mxu0 0
      %398 = vmatpush.bf16.msra.mxu0 0
      %399 = vmatpush.bf16.msra.mxu0 %v276
      %400 = vmatpush.bf16.msra.mxu0 %v274
      %401 = vmatpush.bf16.msra.mxu0 %v272
      %402 = vmatpush.bf16.msra.mxu0 %v270
      %403 = vmatmul.bf16.gmra.mxu0 %v355
      %v404 = vpop.f32.mrf.mxu0
      %v405 = vadd.f32 %v296, %v404
      %v406 = vpop.f32.mrf.mxu0
      %v407 = vadd.f32 %v301, %v406
      %408 = vmatmul.bf16.gmra.mxu0 %v358
      %v409 = vpop.f32.mrf.mxu0
      %v410 = vadd.f32 %v306, %v409
      %v411 = vpop.f32.mrf.mxu0
      %v412 = vadd.f32 %v311, %v411
      %413 = vmatmul.bf16.gmra.mxu0 %v361
      %v414 = vpop.f32.mrf.mxu0
      %v415 = vadd.f32 %v316, %v414
      %v416 = vpop.f32.mrf.mxu0
      %v417 = vadd.f32 %v321, %v416
      %418 = vmatmul.bf16.gmra.mxu0 %v364
      %v419 = vpop.f32.mrf.mxu0
      %v420 = vadd.f32 %v326, %v419
      %v421 = vpop.f32.mrf.mxu0
      %v422 = vadd.f32 %v331, %v421
      %423 = vdwg.mxu0
      %v424 = vxor.u32 %v376, 2147483648
      %v425 = vxor.u32 %v405, 2147483648
      %v426 = vxor.u32 %v378, 2147483648
      %v427 = vxor.u32 %v407, 2147483648
      %v428 = vxor.u32 %v381, 2147483648
      %v429 = vxor.u32 %v410, 2147483648
      %v430 = vxor.u32 %v383, 2147483648
      %v431 = vxor.u32 %v412, 2147483648
      %v432 = vxor.u32 %v386, 2147483648
      %v433 = vxor.u32 %v415, 2147483648
      %v434 = vxor.u32 %v388, 2147483648
      %v435 = vxor.u32 %v417, 2147483648
      %v436 = vxor.u32 %v391, 2147483648
      %v437 = vxor.u32 %v420, 2147483648
      %v438 = vxor.u32 %v393, 2147483648
      %v439 = vxor.u32 %v422, 2147483648
      %v440 = vmul.f32 %v424, 1.442695
      %v441 = vpow.pop %v440
      %v442 = vmul.f32 %v425, 1.442695
      %v443 = vpow.pop %v442
      %v444 = vmul.f32 %v426, 1.442695
      %v445 = vpow.pop %v444
      %v446 = vmul.f32 %v427, 1.442695
      %v447 = vpow.pop %v446
      %v448 = vmul.f32 %v428, 1.442695
      %v449 = vpow.pop %v448
      %v450 = vmul.f32 %v429, 1.442695
      %v451 = vpow.pop %v450
      %v452 = vmul.f32 %v430, 1.442695
      %v453 = vpow.pop %v452
      %v454 = vmul.f32 %v431, 1.442695
      %v455 = vpow.pop %v454
      %v456 = vmul.f32 %v432, 1.442695
      %v457 = vpow.pop %v456
      %v458 = vmul.f32 %v433, 1.442695
      %v459 = vpow.pop %v458
      %v460 = vmul.f32 %v434, 1.442695
      %v461 = vpow.pop %v460
      %v462 = vmul.f32 %v435, 1.442695
      %v463 = vpow.pop %v462
      %v464 = vmul.f32 %v436, 1.442695
      %v465 = vpow.pop %v464
      %v466 = vmul.f32 %v437, 1.442695
      %v467 = vpow.pop %v466
      %v468 = vmul.f32 %v438, 1.442695
      %v469 = vpow.pop %v468
      %v470 = vmul.f32 %v439, 1.442695
      %v471 = vpow.pop %v470
      %v472 = vadd.f32 %v441, 1.0
      %v473 = vadd.f32 %v443, 1.0
      %v474 = vadd.f32 %v445, 1.0
      %v475 = vadd.f32 %v447, 1.0
      %v476 = vadd.f32 %v449, 1.0
      %v477 = vadd.f32 %v451, 1.0
      %v478 = vadd.f32 %v453, 1.0
      %v479 = vadd.f32 %v455, 1.0
      %v480 = vadd.f32 %v457, 1.0
      %v481 = vadd.f32 %v459, 1.0
      %v482 = vadd.f32 %v461, 1.0
      %v483 = vadd.f32 %v463, 1.0
      %v484 = vadd.f32 %v465, 1.0
      %v485 = vadd.f32 %v467, 1.0
      %v486 = vadd.f32 %v469, 1.0
      %v487 = vadd.f32 %v471, 1.0
      %v488 = vrcp.pop %v472
      %v489 = vmul.f32 %v472, %v488
      %v490 = vsub.f32 1.0, %v489
      %v491 = vmul.f32 %v488, %v490
      %v492 = vadd.f32 %v488, %v491
      %vm493 = vweird.f32 %v472
      %vm494 = vweird.f32 %v488
      %vm495 = vmor %vm493, %vm494
      %v496 = vsel %vm495, %v488, %v492
      %v497 = vand.u32 2147483647, %v472
      %vm498 = vcmp.eq.f32.partialorder %v497, 8.507059e+37
      %v499 = vand.u32 %v472, 2147483648
      %v500 = vor.u32 1.1754944e-38, %v499
      %v501 = vsel %vm498, %v500, %v496
      %v502 = vmul.f32 1.0, %v501
      %v503 = vrcp.pop %v473
      %v504 = vmul.f32 %v473, %v503
      %v505 = vsub.f32 1.0, %v504
      %v506 = vmul.f32 %v503, %v505
      %v507 = vadd.f32 %v503, %v506
      %vm508 = vweird.f32 %v473
      %vm509 = vweird.f32 %v503
      %vm510 = vmor %vm508, %vm509
      %v511 = vsel %vm510, %v503, %v507
      %v512 = vand.u32 2147483647, %v473
      %vm513 = vcmp.eq.f32.partialorder %v512, 8.507059e+37
      %v514 = vand.u32 %v473, 2147483648
      %v515 = vor.u32 1.1754944e-38, %v514
      %v516 = vsel %vm513, %v515, %v511
      %v517 = vmul.f32 1.0, %v516
      %v518 = vrcp.pop %v474
      %v519 = vmul.f32 %v474, %v518
      %v520 = vsub.f32 1.0, %v519
      %v521 = vmul.f32 %v518, %v520
      %v522 = vadd.f32 %v518, %v521
      %vm523 = vweird.f32 %v474
      %vm524 = vweird.f32 %v518
      %vm525 = vmor %vm523, %vm524
      %v526 = vsel %vm525, %v518, %v522
      %v527 = vand.u32 2147483647, %v474
      %vm528 = vcmp.eq.f32.partialorder %v527, 8.507059e+37
      %v529 = vand.u32 %v474, 2147483648
      %v530 = vor.u32 1.1754944e-38, %v529
      %v531 = vsel %vm528, %v530, %v526
      %v532 = vmul.f32 1.0, %v531
      %v533 = vrcp.pop %v475
      %v534 = vmul.f32 %v475, %v533
      %v535 = vsub.f32 1.0, %v534
      %v536 = vmul.f32 %v533, %v535
      %v537 = vadd.f32 %v533, %v536
      %vm538 = vweird.f32 %v475
      %vm539 = vweird.f32 %v533
      %vm540 = vmor %vm538, %vm539
      %v541 = vsel %vm540, %v533, %v537
      %v542 = vand.u32 2147483647, %v475
      %vm543 = vcmp.eq.f32.partialorder %v542, 8.507059e+37
      %v544 = vand.u32 %v475, 2147483648
      %v545 = vor.u32 1.1754944e-38, %v544
      %v546 = vsel %vm543, %v545, %v541
      %v547 = vmul.f32 1.0, %v546
      %v548 = vrcp.pop %v476
      %v549 = vmul.f32 %v476, %v548
      %v550 = vsub.f32 1.0, %v549
      %v551 = vmul.f32 %v548, %v550
      %v552 = vadd.f32 %v548, %v551
      %vm553 = vweird.f32 %v476
      %vm554 = vweird.f32 %v548
      %vm555 = vmor %vm553, %vm554
      %v556 = vsel %vm555, %v548, %v552
      %v557 = vand.u32 2147483647, %v476
      %vm558 = vcmp.eq.f32.partialorder %v557, 8.507059e+37
      %v559 = vand.u32 %v476, 2147483648
      %v560 = vor.u32 1.1754944e-38, %v559
      %v561 = vsel %vm558, %v560, %v556
      %v562 = vmul.f32 1.0, %v561
      %v563 = vrcp.pop %v477
      %v564 = vmul.f32 %v477, %v563
      %v565 = vsub.f32 1.0, %v564
      %v566 = vmul.f32 %v563, %v565
      %v567 = vadd.f32 %v563, %v566
      %vm568 = vweird.f32 %v477
      %vm569 = vweird.f32 %v563
      %vm570 = vmor %vm568, %vm569
      %v571 = vsel %vm570, %v563, %v567
      %v572 = vand.u32 2147483647, %v477
      %vm573 = vcmp.eq.f32.partialorder %v572, 8.507059e+37
      %v574 = vand.u32 %v477, 2147483648
      %v575 = vor.u32 1.1754944e-38, %v574
      %v576 = vsel %vm573, %v575, %v571
      %v577 = vmul.f32 1.0, %v576
      %v578 = vrcp.pop %v478
      %v579 = vmul.f32 %v478, %v578
      %v580 = vsub.f32 1.0, %v579
      %v581 = vmul.f32 %v578, %v580
      %v582 = vadd.f32 %v578, %v581
      %vm583 = vweird.f32 %v478
      %vm584 = vweird.f32 %v578
      %vm585 = vmor %vm583, %vm584
      %v586 = vsel %vm585, %v578, %v582
      %v587 = vand.u32 2147483647, %v478
      %vm588 = vcmp.eq.f32.partialorder %v587, 8.507059e+37
      %v589 = vand.u32 %v478, 2147483648
      %v590 = vor.u32 1.1754944e-38, %v589
      %v591 = vsel %vm588, %v590, %v586
      %v592 = vmul.f32 1.0, %v591
      %v593 = vrcp.pop %v479
      %v594 = vmul.f32 %v479, %v593
      %v595 = vsub.f32 1.0, %v594
      %v596 = vmul.f32 %v593, %v595
      %v597 = vadd.f32 %v593, %v596
      %vm598 = vweird.f32 %v479
      %vm599 = vweird.f32 %v593
      %vm600 = vmor %vm598, %vm599
      %v601 = vsel %vm600, %v593, %v597
      %v602 = vand.u32 2147483647, %v479
      %vm603 = vcmp.eq.f32.partialorder %v602, 8.507059e+37
      %v604 = vand.u32 %v479, 2147483648
      %v605 = vor.u32 1.1754944e-38, %v604
      %v606 = vsel %vm603, %v605, %v601
      %v607 = vmul.f32 1.0, %v606
      %v608 = vrcp.pop %v480
      %v609 = vmul.f32 %v480, %v608
      %v610 = vsub.f32 1.0, %v609
      %v611 = vmul.f32 %v608, %v610
      %v612 = vadd.f32 %v608, %v611
      %vm613 = vweird.f32 %v480
      %vm614 = vweird.f32 %v608
      %vm615 = vmor %vm613, %vm614
      %v616 = vsel %vm615, %v608, %v612
      %v617 = vand.u32 2147483647, %v480
      %vm618 = vcmp.eq.f32.partialorder %v617, 8.507059e+37
      %v619 = vand.u32 %v480, 2147483648
      %v620 = vor.u32 1.1754944e-38, %v619
      %v621 = vsel %vm618, %v620, %v616
      %v622 = vmul.f32 1.0, %v621
      %v623 = vrcp.pop %v481
      %v624 = vmul.f32 %v481, %v623
      %v625 = vsub.f32 1.0, %v624
      %v626 = vmul.f32 %v623, %v625
      %v627 = vadd.f32 %v623, %v626
      %vm628 = vweird.f32 %v481
      %vm629 = vweird.f32 %v623
      %vm630 = vmor %vm628, %vm629
      %v631 = vsel %vm630, %v623, %v627
      %v632 = vand.u32 2147483647, %v481
      %vm633 = vcmp.eq.f32.partialorder %v632, 8.507059e+37
      %v634 = vand.u32 %v481, 2147483648
      %v635 = vor.u32 1.1754944e-38, %v634
      %v636 = vsel %vm633, %v635, %v631
      %v637 = vmul.f32 1.0, %v636
      %v638 = vrcp.pop %v482
      %v639 = vmul.f32 %v482, %v638
      %v640 = vsub.f32 1.0, %v639
      %v641 = vmul.f32 %v638, %v640
      %v642 = vadd.f32 %v638, %v641
      %vm643 = vweird.f32 %v482
      %vm644 = vweird.f32 %v638
      %vm645 = vmor %vm643, %vm644
      %v646 = vsel %vm645, %v638, %v642
      %v647 = vand.u32 2147483647, %v482
      %vm648 = vcmp.eq.f32.partialorder %v647, 8.507059e+37
      %v649 = vand.u32 %v482, 2147483648
      %v650 = vor.u32 1.1754944e-38, %v649
      %v651 = vsel %vm648, %v650, %v646
      %v652 = vmul.f32 1.0, %v651
      %v653 = vrcp.pop %v483
      %v654 = vmul.f32 %v483, %v653
      %v655 = vsub.f32 1.0, %v654
      %v656 = vmul.f32 %v653, %v655
      %v657 = vadd.f32 %v653, %v656
      %vm658 = vweird.f32 %v483
      %vm659 = vweird.f32 %v653
      %vm660 = vmor %vm658, %vm659
      %v661 = vsel %vm660, %v653, %v657
      %v662 = vand.u32 2147483647, %v483
      %vm663 = vcmp.eq.f32.partialorder %v662, 8.507059e+37
      %v664 = vand.u32 %v483, 2147483648
      %v665 = vor.u32 1.1754944e-38, %v664
      %v666 = vsel %vm663, %v665, %v661
      %v667 = vmul.f32 1.0, %v666
      %v668 = vrcp.pop %v484
      %v669 = vmul.f32 %v484, %v668
      %v670 = vsub.f32 1.0, %v669
      %v671 = vmul.f32 %v668, %v670
      %v672 = vadd.f32 %v668, %v671
      %vm673 = vweird.f32 %v484
      %vm674 = vweird.f32 %v668
      %vm675 = vmor %vm673, %vm674
      %v676 = vsel %vm675, %v668, %v672
      %v677 = vand.u32 2147483647, %v484
      %vm678 = vcmp.eq.f32.partialorder %v677, 8.507059e+37
      %v679 = vand.u32 %v484, 2147483648
      %v680 = vor.u32 1.1754944e-38, %v679
      %v681 = vsel %vm678, %v680, %v676
      %v682 = vmul.f32 1.0, %v681
      %v683 = vrcp.pop %v485
      %v684 = vmul.f32 %v485, %v683
      %v685 = vsub.f32 1.0, %v684
      %v686 = vmul.f32 %v683, %v685
      %v687 = vadd.f32 %v683, %v686
      %vm688 = vweird.f32 %v485
      %vm689 = vweird.f32 %v683
      %vm690 = vmor %vm688, %vm689
      %v691 = vsel %vm690, %v683, %v687
      %v692 = vand.u32 2147483647, %v485
      %vm693 = vcmp.eq.f32.partialorder %v692, 8.507059e+37
      %v694 = vand.u32 %v485, 2147483648
      %v695 = vor.u32 1.1754944e-38, %v694
      %v696 = vsel %vm693, %v695, %v691
      %v697 = vmul.f32 1.0, %v696
      %v698 = vrcp.pop %v486
      %v699 = vmul.f32 %v486, %v698
      %v700 = vsub.f32 1.0, %v699
      %v701 = vmul.f32 %v698, %v700
      %v702 = vadd.f32 %v698, %v701
      %vm703 = vweird.f32 %v486
      %vm704 = vweird.f32 %v698
      %vm705 = vmor %vm703, %vm704
      %v706 = vsel %vm705, %v698, %v702
      %v707 = vand.u32 2147483647, %v486
      %vm708 = vcmp.eq.f32.partialorder %v707, 8.507059e+37
      %v709 = vand.u32 %v486, 2147483648
      %v710 = vor.u32 1.1754944e-38, %v709
      %v711 = vsel %vm708, %v710, %v706
      %v712 = vmul.f32 1.0, %v711
      %v713 = vrcp.pop %v487
      %v714 = vmul.f32 %v487, %v713
      %v715 = vsub.f32 1.0, %v714
      %v716 = vmul.f32 %v713, %v715
      %v717 = vadd.f32 %v713, %v716
      %vm718 = vweird.f32 %v487
      %vm719 = vweird.f32 %v713
      %vm720 = vmor %vm718, %vm719
      %v721 = vsel %vm720, %v713, %v717
      %v722 = vand.u32 2147483647, %v487
      %vm723 = vcmp.eq.f32.partialorder %v722, 8.507059e+37
      %v724 = vand.u32 %v487, 2147483648
      %v725 = vor.u32 1.1754944e-38, %v724
      %v726 = vsel %vm723, %v725, %v721
      %v727 = vmul.f32 1.0, %v726
      %v728 = vmul.f32 %v376, %v502
      %v729 = vmul.f32 %v405, %v517
      %v730 = vmul.f32 %v378, %v532
      %v731 = vmul.f32 %v407, %v547
      %v732 = vmul.f32 %v381, %v562
      %v733 = vmul.f32 %v410, %v577
      %v734 = vmul.f32 %v383, %v592
      %v735 = vmul.f32 %v412, %v607
      %v736 = vmul.f32 %v386, %v622
      %v737 = vmul.f32 %v415, %v637
      %v738 = vmul.f32 %v388, %v652
      %v739 = vmul.f32 %v417, %v667
      %v740 = vmul.f32 %v391, %v682
      %v741 = vmul.f32 %v420, %v697
      %v742 = vmul.f32 %v393, %v712
      %v743 = vmul.f32 %v422, %v727
      %v744 = vld [vmem:[%s5] sm:$0x3]
      %s745 = scalar_lea.vmem %s5, 2
      %v746 = vld [vmem:[%s745] sm:$0x3]
      %s747 = scalar_lea.vmem %s5, 4
      %v748 = vld [vmem:[%s747] sm:$0x3]
      %s749 = scalar_lea.vmem %s5, 6
      %v750 = vld [vmem:[%s749] sm:$0x3]
      %s751 = scalar_lea.vmem %s5, 8
      %v752 = vld [vmem:[%s751] sm:$0x3]
      %s753 = scalar_lea.vmem %s5, 10
      %v754 = vld [vmem:[%s753] sm:$0x3]
      %s755 = scalar_lea.vmem %s5, 12
      %v756 = vld [vmem:[%s755] sm:$0x3]
      %s757 = scalar_lea.vmem %s5, 14
      %v758 = vld [vmem:[%s757] sm:$0x3]
      %759 = vrot.lane.b32.xlu0 %v728, 1
      %v760 = vpop.permute.xlu0 %759
      %761 = vrot.lane.b32.xlu0 %v730, 1
      %v762 = vpop.permute.xlu0 %761
      %763 = vrot.lane.b32.xlu0 %v732, 1
      %v764 = vpop.permute.xlu0 %763
      %765 = vrot.lane.b32.xlu0 %v734, 1
      %v766 = vpop.permute.xlu0 %765
      %767 = vrot.lane.b32.xlu0 %v736, 1
      %v768 = vpop.permute.xlu0 %767
      %769 = vrot.lane.b32.xlu0 %v738, 1
      %v770 = vpop.permute.xlu0 %769
      %771 = vrot.lane.b32.xlu0 %v740, 1
      %v772 = vpop.permute.xlu0 %771
      %773 = vrot.lane.b32.xlu0 %v742, 1
      %v774 = vpop.permute.xlu0 %773
      %775 = vrot.lane.b32.xlu0 %v729, 1
      %v776 = vpop.permute.xlu0 %775
      %777 = vrot.lane.b32.xlu0 %v731, 1
      %v778 = vpop.permute.xlu0 %777
      %779 = vrot.lane.b32.xlu0 %v733, 1
      %v780 = vpop.permute.xlu0 %779
      %781 = vrot.lane.b32.xlu0 %v735, 1
      %v782 = vpop.permute.xlu0 %781
      %783 = vrot.lane.b32.xlu0 %v737, 1
      %v784 = vpop.permute.xlu0 %783
      %785 = vrot.lane.b32.xlu0 %v739, 1
      %v786 = vpop.permute.xlu0 %785
      %787 = vrot.lane.b32.xlu0 %v741, 1
      %v788 = vpop.permute.xlu0 %787
      %789 = vrot.lane.b32.xlu0 %v743, 1
      %v790 = vpop.permute.xlu0 %789
      %v791 = vlaneseq
      %v792 = vand.u32 %v791, 127
      %vm793 = vcmp.lt.s32.totalorder %v792, 1
      %v794 = vsel %vm793, %v760, %v776
      %v795 = vsel %vm793, %v762, %v778
      %v796 = vsel %vm793, %v764, %v780
      %v797 = vsel %vm793, %v766, %v782
      %v798 = vsel %vm793, %v768, %v784
      %v799 = vsel %vm793, %v770, %v786
      %v800 = vsel %vm793, %v772, %v788
      %v801 = vsel %vm793, %v774, %v790
      %v802 = vsel %vm793, %v776, %v760
      %v803 = vsel %vm793, %v778, %v762
      %v804 = vsel %vm793, %v780, %v764
      %v805 = vsel %vm793, %v782, %v766
      %v806 = vsel %vm793, %v784, %v768
      %v807 = vsel %vm793, %v786, %v770
      %v808 = vsel %vm793, %v788, %v772
      %v809 = vsel %vm793, %v790, %v774
      %v811 = vperm.slane %v744, 0
      %v812 = vperm.slane %v744, 1
      %v815 = vadd.f32 %v802, %v811
      %v816 = vadd.f32 %v794, %v812
      %v817 = vadd.f32 %v803, %v811
      %v818 = vadd.f32 %v795, %v812
      %v819 = vadd.f32 %v804, %v811
      %v820 = vadd.f32 %v796, %v812
      %v821 = vadd.f32 %v805, %v811
      %v822 = vadd.f32 %v797, %v812
      %v823 = vadd.f32 %v806, %v811
      %v824 = vadd.f32 %v798, %v812
      %v825 = vadd.f32 %v807, %v811
      %v826 = vadd.f32 %v799, %v812
      %v827 = vadd.f32 %v808, %v811
      %v828 = vadd.f32 %v800, %v812
      %v829 = vadd.f32 %v809, %v811
      %v830 = vadd.f32 %v801, %v812
      %v831 = vmax.f32 %v728, %v815
      %v832 = vmax.f32 %v729, %v816
      %v833 = vmax.f32 %v730, %v817
      %v834 = vmax.f32 %v731, %v818
      %v835 = vmax.f32 %v732, %v819
      %v836 = vmax.f32 %v733, %v820
      %v837 = vmax.f32 %v734, %v821
      %v838 = vmax.f32 %v735, %v822
      %v839 = vmax.f32 %v736, %v823
      %v840 = vmax.f32 %v737, %v824
      %v841 = vmax.f32 %v738, %v825
      %v842 = vmax.f32 %v739, %v826
      %v843 = vmax.f32 %v740, %v827
      %v844 = vmax.f32 %v741, %v828
      %v845 = vmax.f32 %v742, %v829
      %v846 = vmax.f32 %v743, %v830
      %847 = vrot.lane.b32.xlu0 %v728, 2
      %v848 = vpop.permute.xlu0 %847
      %849 = vrot.lane.b32.xlu0 %v730, 2
      %v850 = vpop.permute.xlu0 %849
      %851 = vrot.lane.b32.xlu0 %v732, 2
      %v852 = vpop.permute.xlu0 %851
      %853 = vrot.lane.b32.xlu0 %v734, 2
      %v854 = vpop.permute.xlu0 %853
      %855 = vrot.lane.b32.xlu0 %v736, 2
      %v856 = vpop.permute.xlu0 %855
      %857 = vrot.lane.b32.xlu0 %v738, 2
      %v858 = vpop.permute.xlu0 %857
      %859 = vrot.lane.b32.xlu0 %v740, 2
      %v860 = vpop.permute.xlu0 %859
      %861 = vrot.lane.b32.xlu0 %v742, 2
      %v862 = vpop.permute.xlu0 %861
      %863 = vrot.lane.b32.xlu0 %v729, 2
      %v864 = vpop.permute.xlu0 %863
      %865 = vrot.lane.b32.xlu0 %v731, 2
      %v866 = vpop.permute.xlu0 %865
      %867 = vrot.lane.b32.xlu0 %v733, 2
      %v868 = vpop.permute.xlu0 %867
      %869 = vrot.lane.b32.xlu0 %v735, 2
      %v870 = vpop.permute.xlu0 %869
      %871 = vrot.lane.b32.xlu0 %v737, 2
      %v872 = vpop.permute.xlu0 %871
      %873 = vrot.lane.b32.xlu0 %v739, 2
      %v874 = vpop.permute.xlu0 %873
      %875 = vrot.lane.b32.xlu0 %v741, 2
      %v876 = vpop.permute.xlu0 %875
      %877 = vrot.lane.b32.xlu0 %v743, 2
      %v878 = vpop.permute.xlu0 %877
      %vm879 = vcmp.lt.s32.totalorder %v792, 2
      %v880 = vsel %vm879, %v848, %v864
      %v881 = vsel %vm879, %v850, %v866
      %v882 = vsel %vm879, %v852, %v868
      %v883 = vsel %vm879, %v854, %v870
      %v884 = vsel %vm879, %v856, %v872
      %v885 = vsel %vm879, %v858, %v874
      %v886 = vsel %vm879, %v860, %v876
      %v887 = vsel %vm879, %v862, %v878
      %v888 = vsel %vm879, %v864, %v848
      %v889 = vsel %vm879, %v866, %v850
      %v890 = vsel %vm879, %v868, %v852
      %v891 = vsel %vm879, %v870, %v854
      %v892 = vsel %vm879, %v872, %v856
      %v893 = vsel %vm879, %v874, %v858
      %v894 = vsel %vm879, %v876, %v860
      %v895 = vsel %vm879, %v878, %v862
      %v897 = vperm.slane %v746, 0
      %v898 = vperm.slane %v746, 1
      %v901 = vadd.f32 %v888, %v897
      %v902 = vadd.f32 %v880, %v898
      %v903 = vadd.f32 %v889, %v897
      %v904 = vadd.f32 %v881, %v898
      %v905 = vadd.f32 %v890, %v897
      %v906 = vadd.f32 %v882, %v898
      %v907 = vadd.f32 %v891, %v897
      %v908 = vadd.f32 %v883, %v898
      %v909 = vadd.f32 %v892, %v897
      %v910 = vadd.f32 %v884, %v898
      %v911 = vadd.f32 %v893, %v897
      %v912 = vadd.f32 %v885, %v898
      %v913 = vadd.f32 %v894, %v897
      %v914 = vadd.f32 %v886, %v898
      %v915 = vadd.f32 %v895, %v897
      %v916 = vadd.f32 %v887, %v898
      %v917 = vmax.f32 %v831, %v901
      %v918 = vmax.f32 %v832, %v902
      %v919 = vmax.f32 %v833, %v903
      %v920 = vmax.f32 %v834, %v904
      %v921 = vmax.f32 %v835, %v905
      %v922 = vmax.f32 %v836, %v906
      %v923 = vmax.f32 %v837, %v907
      %v924 = vmax.f32 %v838, %v908
      %v925 = vmax.f32 %v839, %v909
      %v926 = vmax.f32 %v840, %v910
      %v927 = vmax.f32 %v841, %v911
      %v928 = vmax.f32 %v842, %v912
      %v929 = vmax.f32 %v843, %v913
      %v930 = vmax.f32 %v844, %v914
      %v931 = vmax.f32 %v845, %v915
      %v932 = vmax.f32 %v846, %v916
      %933 = vrot.lane.b32.xlu0 %v728, 127
      %v934 = vpop.permute.xlu0 %933
      %935 = vrot.lane.b32.xlu0 %v730, 127
      %v936 = vpop.permute.xlu0 %935
      %937 = vrot.lane.b32.xlu0 %v732, 127
      %v938 = vpop.permute.xlu0 %937
      %939 = vrot.lane.b32.xlu0 %v734, 127
      %v940 = vpop.permute.xlu0 %939
      %941 = vrot.lane.b32.xlu0 %v736, 127
      %v942 = vpop.permute.xlu0 %941
      %943 = vrot.lane.b32.xlu0 %v738, 127
      %v944 = vpop.permute.xlu0 %943
      %945 = vrot.lane.b32.xlu0 %v740, 127
      %v946 = vpop.permute.xlu0 %945
      %947 = vrot.lane.b32.xlu0 %v742, 127
      %v948 = vpop.permute.xlu0 %947
      %949 = vrot.lane.b32.xlu0 %v729, 127
      %v950 = vpop.permute.xlu0 %949
      %951 = vrot.lane.b32.xlu0 %v731, 127
      %v952 = vpop.permute.xlu0 %951
      %953 = vrot.lane.b32.xlu0 %v733, 127
      %v954 = vpop.permute.xlu0 %953
      %955 = vrot.lane.b32.xlu0 %v735, 127
      %v956 = vpop.permute.xlu0 %955
      %957 = vrot.lane.b32.xlu0 %v737, 127
      %v958 = vpop.permute.xlu0 %957
      %959 = vrot.lane.b32.xlu0 %v739, 127
      %v960 = vpop.permute.xlu0 %959
      %961 = vrot.lane.b32.xlu0 %v741, 127
      %v962 = vpop.permute.xlu0 %961
      %963 = vrot.lane.b32.xlu0 %v743, 127
      %v964 = vpop.permute.xlu0 %963
      %vm965 = vcmp.lt.s32.totalorder %v792, 127
      %v966 = vsel %vm965, %v934, %v950
      %v967 = vsel %vm965, %v936, %v952
      %v968 = vsel %vm965, %v938, %v954
      %v969 = vsel %vm965, %v940, %v956
      %v970 = vsel %vm965, %v942, %v958
      %v971 = vsel %vm965, %v944, %v960
      %v972 = vsel %vm965, %v946, %v962
      %v973 = vsel %vm965, %v948, %v964
      %v974 = vsel %vm965, %v950, %v934
      %v975 = vsel %vm965, %v952, %v936
      %v976 = vsel %vm965, %v954, %v938
      %v977 = vsel %vm965, %v956, %v940
      %v978 = vsel %vm965, %v958, %v942
      %v979 = vsel %vm965, %v960, %v944
      %v980 = vsel %vm965, %v962, %v946
      %v981 = vsel %vm965, %v964, %v948
      %v983 = vperm.slane %v748, 0
      %v984 = vperm.slane %v748, 1
      %v987 = vadd.f32 %v966, %v983
      %v988 = vadd.f32 %v974, %v984
      %v989 = vadd.f32 %v967, %v983
      %v990 = vadd.f32 %v975, %v984
      %v991 = vadd.f32 %v968, %v983
      %v992 = vadd.f32 %v976, %v984
      %v993 = vadd.f32 %v969, %v983
      %v994 = vadd.f32 %v977, %v984
      %v995 = vadd.f32 %v970, %v983
      %v996 = vadd.f32 %v978, %v984
      %v997 = vadd.f32 %v971, %v983
      %v998 = vadd.f32 %v979, %v984
      %v999 = vadd.f32 %v972, %v983
      %v1000 = vadd.f32 %v980, %v984
      %v1001 = vadd.f32 %v973, %v983
      %v1002 = vadd.f32 %v981, %v984
      %v1003 = vmax.f32 %v917, %v987
      %v1004 = vmax.f32 %v918, %v988
      %v1005 = vmax.f32 %v919, %v989
      %v1006 = vmax.f32 %v920, %v990
      %v1007 = vmax.f32 %v921, %v991
      %v1008 = vmax.f32 %v922, %v992
      %v1009 = vmax.f32 %v923, %v993
      %v1010 = vmax.f32 %v924, %v994
      %v1011 = vmax.f32 %v925, %v995
      %v1012 = vmax.f32 %v926, %v996
      %v1013 = vmax.f32 %v927, %v997
      %v1014 = vmax.f32 %v928, %v998
      %v1015 = vmax.f32 %v929, %v999
      %v1016 = vmax.f32 %v930, %v1000
      %v1017 = vmax.f32 %v931, %v1001
      %v1018 = vmax.f32 %v932, %v1002
      %1019 = vrot.lane.b32.xlu0 %v728, 126
      %v1020 = vpop.permute.xlu0 %1019
      %1021 = vrot.lane.b32.xlu0 %v730, 126
      %v1022 = vpop.permute.xlu0 %1021
      %1023 = vrot.lane.b32.xlu0 %v732, 126
      %v1024 = vpop.permute.xlu0 %1023
      %1025 = vrot.lane.b32.xlu0 %v734, 126
      %v1026 = vpop.permute.xlu0 %1025
      %1027 = vrot.lane.b32.xlu0 %v736, 126
      %v1028 = vpop.permute.xlu0 %1027
      %1029 = vrot.lane.b32.xlu0 %v738, 126
      %v1030 = vpop.permute.xlu0 %1029
      %1031 = vrot.lane.b32.xlu0 %v740, 126
      %v1032 = vpop.permute.xlu0 %1031
      %1033 = vrot.lane.b32.xlu0 %v742, 126
      %v1034 = vpop.permute.xlu0 %1033
      %1035 = vrot.lane.b32.xlu0 %v729, 126
      %v1036 = vpop.permute.xlu0 %1035
      %1037 = vrot.lane.b32.xlu0 %v731, 126
      %v1038 = vpop.permute.xlu0 %1037
      %1039 = vrot.lane.b32.xlu0 %v733, 126
      %v1040 = vpop.permute.xlu0 %1039
      %1041 = vrot.lane.b32.xlu0 %v735, 126
      %v1042 = vpop.permute.xlu0 %1041
      %1043 = vrot.lane.b32.xlu0 %v737, 126
      %v1044 = vpop.permute.xlu0 %1043
      %1045 = vrot.lane.b32.xlu0 %v739, 126
      %v1046 = vpop.permute.xlu0 %1045
      %1047 = vrot.lane.b32.xlu0 %v741, 126
      %v1048 = vpop.permute.xlu0 %1047
      %1049 = vrot.lane.b32.xlu0 %v743, 126
      %v1050 = vpop.permute.xlu0 %1049
      %vm1051 = vcmp.lt.s32.totalorder %v792, 126
      %v1052 = vsel %vm1051, %v1020, %v1036
      %v1053 = vsel %vm1051, %v1022, %v1038
      %v1054 = vsel %vm1051, %v1024, %v1040
      %v1055 = vsel %vm1051, %v1026, %v1042
      %v1056 = vsel %vm1051, %v1028, %v1044
      %v1057 = vsel %vm1051, %v1030, %v1046
      %v1058 = vsel %vm1051, %v1032, %v1048
      %v1059 = vsel %vm1051, %v1034, %v1050
      %v1060 = vsel %vm1051, %v1036, %v1020
      %v1061 = vsel %vm1051, %v1038, %v1022
      %v1062 = vsel %vm1051, %v1040, %v1024
      %v1063 = vsel %vm1051, %v1042, %v1026
      %v1064 = vsel %vm1051, %v1044, %v1028
      %v1065 = vsel %vm1051, %v1046, %v1030
      %v1066 = vsel %vm1051, %v1048, %v1032
      %v1067 = vsel %vm1051, %v1050, %v1034
      %v1069 = vperm.slane %v750, 0
      %v1070 = vperm.slane %v750, 1
      %v1073 = vadd.f32 %v1052, %v1069
      %v1074 = vadd.f32 %v1060, %v1070
      %v1075 = vadd.f32 %v1053, %v1069
      %v1076 = vadd.f32 %v1061, %v1070
      %v1077 = vadd.f32 %v1054, %v1069
      %v1078 = vadd.f32 %v1062, %v1070
      %v1079 = vadd.f32 %v1055, %v1069
      %v1080 = vadd.f32 %v1063, %v1070
      %v1081 = vadd.f32 %v1056, %v1069
      %v1082 = vadd.f32 %v1064, %v1070
      %v1083 = vadd.f32 %v1057, %v1069
      %v1084 = vadd.f32 %v1065, %v1070
      %v1085 = vadd.f32 %v1058, %v1069
      %v1086 = vadd.f32 %v1066, %v1070
      %v1087 = vadd.f32 %v1059, %v1069
      %v1088 = vadd.f32 %v1067, %v1070
      %v1089 = vmax.f32 %v1003, %v1073
      %v1090 = vmax.f32 %v1004, %v1074
      %v1091 = vmax.f32 %v1005, %v1075
      %v1092 = vmax.f32 %v1006, %v1076
      %v1093 = vmax.f32 %v1007, %v1077
      %v1094 = vmax.f32 %v1008, %v1078
      %v1095 = vmax.f32 %v1009, %v1079
      %v1096 = vmax.f32 %v1010, %v1080
      %v1097 = vmax.f32 %v1011, %v1081
      %v1098 = vmax.f32 %v1012, %v1082
      %v1099 = vmax.f32 %v1013, %v1083
      %v1100 = vmax.f32 %v1014, %v1084
      %v1101 = vmax.f32 %v1015, %v1085
      %v1102 = vmax.f32 %v1016, %v1086
      %v1103 = vmax.f32 %v1017, %v1087
      %v1104 = vmax.f32 %v1018, %v1088
      %1105 = vrot.lane.b32.xlu0 %v1089, 16
      %v1106 = vpop.permute.xlu0 %1105
      %1107 = vrot.lane.b32.xlu0 %v1091, 16
      %v1108 = vpop.permute.xlu0 %1107
      %1109 = vrot.lane.b32.xlu0 %v1093, 16
      %v1110 = vpop.permute.xlu0 %1109
      %1111 = vrot.lane.b32.xlu0 %v1095, 16
      %v1112 = vpop.permute.xlu0 %1111
      %1113 = vrot.lane.b32.xlu0 %v1097, 16
      %v1114 = vpop.permute.xlu0 %1113
      %1115 = vrot.lane.b32.xlu0 %v1099, 16
      %v1116 = vpop.permute.xlu0 %1115
      %1117 = vrot.lane.b32.xlu0 %v1101, 16
      %v1118 = vpop.permute.xlu0 %1117
      %1119 = vrot.lane.b32.xlu0 %v1103, 16
      %v1120 = vpop.permute.xlu0 %1119
      %1121 = vrot.lane.b32.xlu0 %v1090, 16
      %v1122 = vpop.permute.xlu0 %1121
      %1123 = vrot.lane.b32.xlu0 %v1092, 16
      %v1124 = vpop.permute.xlu0 %1123
      %1125 = vrot.lane.b32.xlu0 %v1094, 16
      %v1126 = vpop.permute.xlu0 %1125
      %1127 = vrot.lane.b32.xlu0 %v1096, 16
      %v1128 = vpop.permute.xlu0 %1127
      %1129 = vrot.lane.b32.xlu0 %v1098, 16
      %v1130 = vpop.permute.xlu0 %1129
      %1131 = vrot.lane.b32.xlu0 %v1100, 16
      %v1132 = vpop.permute.xlu0 %1131
      %1133 = vrot.lane.b32.xlu0 %v1102, 16
      %v1134 = vpop.permute.xlu0 %1133
      %1135 = vrot.lane.b32.xlu0 %v1104, 16
      %v1136 = vpop.permute.xlu0 %1135
      %vm1137 = vcmp.lt.s32.totalorder %v792, 16
      %v1138 = vsel %vm1137, %v1106, %v1122
      %v1139 = vsel %vm1137, %v1108, %v1124
      %v1140 = vsel %vm1137, %v1110, %v1126
      %v1141 = vsel %vm1137, %v1112, %v1128
      %v1142 = vsel %vm1137, %v1114, %v1130
      %v1143 = vsel %vm1137, %v1116, %v1132
      %v1144 = vsel %vm1137, %v1118, %v1134
      %v1145 = vsel %vm1137, %v1120, %v1136
      %v1146 = vsel %vm1137, %v1122, %v1106
      %v1147 = vsel %vm1137, %v1124, %v1108
      %v1148 = vsel %vm1137, %v1126, %v1110
      %v1149 = vsel %vm1137, %v1128, %v1112
      %v1150 = vsel %vm1137, %v1130, %v1114
      %v1151 = vsel %vm1137, %v1132, %v1116
      %v1152 = vsel %vm1137, %v1134, %v1118
      %v1153 = vsel %vm1137, %v1136, %v1120
      %v1155 = vperm.slane %v752, 0
      %v1156 = vperm.slane %v752, 1
      %v1159 = vadd.f32 %v1146, %v1155
      %v1160 = vadd.f32 %v1138, %v1156
      %v1161 = vadd.f32 %v1147, %v1155
      %v1162 = vadd.f32 %v1139, %v1156
      %v1163 = vadd.f32 %v1148, %v1155
      %v1164 = vadd.f32 %v1140, %v1156
      %v1165 = vadd.f32 %v1149, %v1155
      %v1166 = vadd.f32 %v1141, %v1156
      %v1167 = vadd.f32 %v1150, %v1155
      %v1168 = vadd.f32 %v1142, %v1156
      %v1169 = vadd.f32 %v1151, %v1155
      %v1170 = vadd.f32 %v1143, %v1156
      %v1171 = vadd.f32 %v1152, %v1155
      %v1172 = vadd.f32 %v1144, %v1156
      %v1173 = vadd.f32 %v1153, %v1155
      %v1174 = vadd.f32 %v1145, %v1156
      %v1175 = vmax.f32 %v1089, %v1159
      %v1176 = vmax.f32 %v1090, %v1160
      %v1177 = vmax.f32 %v1091, %v1161
      %v1178 = vmax.f32 %v1092, %v1162
      %v1179 = vmax.f32 %v1093, %v1163
      %v1180 = vmax.f32 %v1094, %v1164
      %v1181 = vmax.f32 %v1095, %v1165
      %v1182 = vmax.f32 %v1096, %v1166
      %v1183 = vmax.f32 %v1097, %v1167
      %v1184 = vmax.f32 %v1098, %v1168
      %v1185 = vmax.f32 %v1099, %v1169
      %v1186 = vmax.f32 %v1100, %v1170
      %v1187 = vmax.f32 %v1101, %v1171
      %v1188 = vmax.f32 %v1102, %v1172
      %v1189 = vmax.f32 %v1103, %v1173
      %v1190 = vmax.f32 %v1104, %v1174
      %1191 = vrot.lane.b32.xlu0 %v1089, 32
      %v1192 = vpop.permute.xlu0 %1191
      %1193 = vrot.lane.b32.xlu0 %v1091, 32
      %v1194 = vpop.permute.xlu0 %1193
      %1195 = vrot.lane.b32.xlu0 %v1093, 32
      %v1196 = vpop.permute.xlu0 %1195
      %1197 = vrot.lane.b32.xlu0 %v1095, 32
      %v1198 = vpop.permute.xlu0 %1197
      %1199 = vrot.lane.b32.xlu0 %v1097, 32
      %v1200 = vpop.permute.xlu0 %1199
      %1201 = vrot.lane.b32.xlu0 %v1099, 32
      %v1202 = vpop.permute.xlu0 %1201
      %1203 = vrot.lane.b32.xlu0 %v1101, 32
      %v1204 = vpop.permute.xlu0 %1203
      %1205 = vrot.lane.b32.xlu0 %v1103, 32
      %v1206 = vpop.permute.xlu0 %1205
      %1207 = vrot.lane.b32.xlu0 %v1090, 32
      %v1208 = vpop.permute.xlu0 %1207
      %1209 = vrot.lane.b32.xlu0 %v1092, 32
      %v1210 = vpop.permute.xlu0 %1209
      %1211 = vrot.lane.b32.xlu0 %v1094, 32
      %v1212 = vpop.permute.xlu0 %1211
      %1213 = vrot.lane.b32.xlu0 %v1096, 32
      %v1214 = vpop.permute.xlu0 %1213
      %1215 = vrot.lane.b32.xlu0 %v1098, 32
      %v1216 = vpop.permute.xlu0 %1215
      %1217 = vrot.lane.b32.xlu0 %v1100, 32
      %v1218 = vpop.permute.xlu0 %1217
      %1219 = vrot.lane.b32.xlu0 %v1102, 32
      %v1220 = vpop.permute.xlu0 %1219
      %1221 = vrot.lane.b32.xlu0 %v1104, 32
      %v1222 = vpop.permute.xlu0 %1221
      %vm1223 = vcmp.lt.s32.totalorder %v792, 32
      %v1224 = vsel %vm1223, %v1192, %v1208
      %v1225 = vsel %vm1223, %v1194, %v1210
      %v1226 = vsel %vm1223, %v1196, %v1212
      %v1227 = vsel %vm1223, %v1198, %v1214
      %v1228 = vsel %vm1223, %v1200, %v1216
      %v1229 = vsel %vm1223, %v1202, %v1218
      %v1230 = vsel %vm1223, %v1204, %v1220
      %v1231 = vsel %vm1223, %v1206, %v1222
      %v1232 = vsel %vm1223, %v1208, %v1192
      %v1233 = vsel %vm1223, %v1210, %v1194
      %v1234 = vsel %vm1223, %v1212, %v1196
      %v1235 = vsel %vm1223, %v1214, %v1198
      %v1236 = vsel %vm1223, %v1216, %v1200
      %v1237 = vsel %vm1223, %v1218, %v1202
      %v1238 = vsel %vm1223, %v1220, %v1204
      %v1239 = vsel %vm1223, %v1222, %v1206
      %v1241 = vperm.slane %v754, 0
      %v1242 = vperm.slane %v754, 1
      %v1245 = vadd.f32 %v1232, %v1241
      %v1246 = vadd.f32 %v1224, %v1242
      %v1247 = vadd.f32 %v1233, %v1241
      %v1248 = vadd.f32 %v1225, %v1242
      %v1249 = vadd.f32 %v1234, %v1241
      %v1250 = vadd.f32 %v1226, %v1242
      %v1251 = vadd.f32 %v1235, %v1241
      %v1252 = vadd.f32 %v1227, %v1242
      %v1253 = vadd.f32 %v1236, %v1241
      %v1254 = vadd.f32 %v1228, %v1242
      %v1255 = vadd.f32 %v1237, %v1241
      %v1256 = vadd.f32 %v1229, %v1242
      %v1257 = vadd.f32 %v1238, %v1241
      %v1258 = vadd.f32 %v1230, %v1242
      %v1259 = vadd.f32 %v1239, %v1241
      %v1260 = vadd.f32 %v1231, %v1242
      %v1261 = vmax.f32 %v1175, %v1245
      %v1262 = vmax.f32 %v1176, %v1246
      %v1263 = vmax.f32 %v1177, %v1247
      %v1264 = vmax.f32 %v1178, %v1248
      %v1265 = vmax.f32 %v1179, %v1249
      %v1266 = vmax.f32 %v1180, %v1250
      %v1267 = vmax.f32 %v1181, %v1251
      %v1268 = vmax.f32 %v1182, %v1252
      %v1269 = vmax.f32 %v1183, %v1253
      %v1270 = vmax.f32 %v1184, %v1254
      %v1271 = vmax.f32 %v1185, %v1255
      %v1272 = vmax.f32 %v1186, %v1256
      %v1273 = vmax.f32 %v1187, %v1257
      %v1274 = vmax.f32 %v1188, %v1258
      %v1275 = vmax.f32 %v1189, %v1259
      %v1276 = vmax.f32 %v1190, %v1260
      %1277 = vrot.lane.b32.xlu0 %v1089, 112
      %v1278 = vpop.permute.xlu0 %1277
      %1279 = vrot.lane.b32.xlu0 %v1091, 112
      %v1280 = vpop.permute.xlu0 %1279
      %1281 = vrot.lane.b32.xlu0 %v1093, 112
      %v1282 = vpop.permute.xlu0 %1281
      %1283 = vrot.lane.b32.xlu0 %v1095, 112
      %v1284 = vpop.permute.xlu0 %1283
      %1285 = vrot.lane.b32.xlu0 %v1097, 112
      %v1286 = vpop.permute.xlu0 %1285
      %1287 = vrot.lane.b32.xlu0 %v1099, 112
      %v1288 = vpop.permute.xlu0 %1287
      %1289 = vrot.lane.b32.xlu0 %v1101, 112
      %v1290 = vpop.permute.xlu0 %1289
      %1291 = vrot.lane.b32.xlu0 %v1103, 112
      %v1292 = vpop.permute.xlu0 %1291
      %1293 = vrot.lane.b32.xlu0 %v1090, 112
      %v1294 = vpop.permute.xlu0 %1293
      %1295 = vrot.lane.b32.xlu0 %v1092, 112
      %v1296 = vpop.permute.xlu0 %1295
      %1297 = vrot.lane.b32.xlu0 %v1094, 112
      %v1298 = vpop.permute.xlu0 %1297
      %1299 = vrot.lane.b32.xlu0 %v1096, 112
      %v1300 = vpop.permute.xlu0 %1299
      %1301 = vrot.lane.b32.xlu0 %v1098, 112
      %v1302 = vpop.permute.xlu0 %1301
      %1303 = vrot.lane.b32.xlu0 %v1100, 112
      %v1304 = vpop.permute.xlu0 %1303
      %1305 = vrot.lane.b32.xlu0 %v1102, 112
      %v1306 = vpop.permute.xlu0 %1305
      %1307 = vrot.lane.b32.xlu0 %v1104, 112
      %v1308 = vpop.permute.xlu0 %1307
      %vm1309 = vcmp.lt.s32.totalorder %v792, 112
      %v1310 = vsel %vm1309, %v1278, %v1294
      %v1311 = vsel %vm1309, %v1280, %v1296
      %v1312 = vsel %vm1309, %v1282, %v1298
      %v1313 = vsel %vm1309, %v1284, %v1300
      %v1314 = vsel %vm1309, %v1286, %v1302
      %v1315 = vsel %vm1309, %v1288, %v1304
      %v1316 = vsel %vm1309, %v1290, %v1306
      %v1317 = vsel %vm1309, %v1292, %v1308
      %v1318 = vsel %vm1309, %v1294, %v1278
      %v1319 = vsel %vm1309, %v1296, %v1280
      %v1320 = vsel %vm1309, %v1298, %v1282
      %v1321 = vsel %vm1309, %v1300, %v1284
      %v1322 = vsel %vm1309, %v1302, %v1286
      %v1323 = vsel %vm1309, %v1304, %v1288
      %v1324 = vsel %vm1309, %v1306, %v1290
      %v1325 = vsel %vm1309, %v1308, %v1292
      %v1327 = vperm.slane %v756, 0
      %v1328 = vperm.slane %v756, 1
      %v1331 = vadd.f32 %v1310, %v1327
      %v1332 = vadd.f32 %v1318, %v1328
      %v1333 = vadd.f32 %v1311, %v1327
      %v1334 = vadd.f32 %v1319, %v1328
      %v1335 = vadd.f32 %v1312, %v1327
      %v1336 = vadd.f32 %v1320, %v1328
      %v1337 = vadd.f32 %v1313, %v1327
      %v1338 = vadd.f32 %v1321, %v1328
      %v1339 = vadd.f32 %v1314, %v1327
      %v1340 = vadd.f32 %v1322, %v1328
      %v1341 = vadd.f32 %v1315, %v1327
      %v1342 = vadd.f32 %v1323, %v1328
      %v1343 = vadd.f32 %v1316, %v1327
      %v1344 = vadd.f32 %v1324, %v1328
      %v1345 = vadd.f32 %v1317, %v1327
      %v1346 = vadd.f32 %v1325, %v1328
      %v1347 = vmax.f32 %v1261, %v1331
      %v1348 = vmax.f32 %v1262, %v1332
      %v1349 = vmax.f32 %v1263, %v1333
      %v1350 = vmax.f32 %v1264, %v1334
      %v1351 = vmax.f32 %v1265, %v1335
      %v1352 = vmax.f32 %v1266, %v1336
      %v1353 = vmax.f32 %v1267, %v1337
      %v1354 = vmax.f32 %v1268, %v1338
      %v1355 = vmax.f32 %v1269, %v1339
      %v1356 = vmax.f32 %v1270, %v1340
      %v1357 = vmax.f32 %v1271, %v1341
      %v1358 = vmax.f32 %v1272, %v1342
      %v1359 = vmax.f32 %v1273, %v1343
      %v1360 = vmax.f32 %v1274, %v1344
      %v1361 = vmax.f32 %v1275, %v1345
      %v1362 = vmax.f32 %v1276, %v1346
      %1363 = vrot.lane.b32.xlu0 %v1089, 96
      %v1364 = vpop.permute.xlu0 %1363
      %1365 = vrot.lane.b32.xlu0 %v1091, 96
      %v1366 = vpop.permute.xlu0 %1365
      %1367 = vrot.lane.b32.xlu0 %v1093, 96
      %v1368 = vpop.permute.xlu0 %1367
      %1369 = vrot.lane.b32.xlu0 %v1095, 96
      %v1370 = vpop.permute.xlu0 %1369
      %1371 = vrot.lane.b32.xlu0 %v1097, 96
      %v1372 = vpop.permute.xlu0 %1371
      %1373 = vrot.lane.b32.xlu0 %v1099, 96
      %v1374 = vpop.permute.xlu0 %1373
      %1375 = vrot.lane.b32.xlu0 %v1101, 96
      %v1376 = vpop.permute.xlu0 %1375
      %1377 = vrot.lane.b32.xlu0 %v1103, 96
      %v1378 = vpop.permute.xlu0 %1377
      %1379 = vrot.lane.b32.xlu0 %v1090, 96
      %v1380 = vpop.permute.xlu0 %1379
      %1381 = vrot.lane.b32.xlu0 %v1092, 96
      %v1382 = vpop.permute.xlu0 %1381
      %1383 = vrot.lane.b32.xlu0 %v1094, 96
      %v1384 = vpop.permute.xlu0 %1383
      %1385 = vrot.lane.b32.xlu0 %v1096, 96
      %v1386 = vpop.permute.xlu0 %1385
      %1387 = vrot.lane.b32.xlu0 %v1098, 96
      %v1388 = vpop.permute.xlu0 %1387
      %1389 = vrot.lane.b32.xlu0 %v1100, 96
      %v1390 = vpop.permute.xlu0 %1389
      %1391 = vrot.lane.b32.xlu0 %v1102, 96
      %v1392 = vpop.permute.xlu0 %1391
      %1393 = vrot.lane.b32.xlu0 %v1104, 96
      %v1394 = vpop.permute.xlu0 %1393
      %vm1395 = vcmp.lt.s32.totalorder %v792, 96
      %v1396 = vsel %vm1395, %v1364, %v1380
      %v1397 = vsel %vm1395, %v1366, %v1382
      %v1398 = vsel %vm1395, %v1368, %v1384
      %v1399 = vsel %vm1395, %v1370, %v1386
      %v1400 = vsel %vm1395, %v1372, %v1388
      %v1401 = vsel %vm1395, %v1374, %v1390
      %v1402 = vsel %vm1395, %v1376, %v1392
      %v1403 = vsel %vm1395, %v1378, %v1394
      %v1404 = vsel %vm1395, %v1380, %v1364
      %v1405 = vsel %vm1395, %v1382, %v1366
      %v1406 = vsel %vm1395, %v1384, %v1368
      %v1407 = vsel %vm1395, %v1386, %v1370
      %v1408 = vsel %vm1395, %v1388, %v1372
      %v1409 = vsel %vm1395, %v1390, %v1374
      %v1410 = vsel %vm1395, %v1392, %v1376
      %v1411 = vsel %vm1395, %v1394, %v1378
      %v1413 = vperm.slane %v758, 0
      %v1414 = vperm.slane %v758, 1
      %v1417 = vadd.f32 %v1396, %v1413
      %v1418 = vadd.f32 %v1404, %v1414
      %v1419 = vadd.f32 %v1397, %v1413
      %v1420 = vadd.f32 %v1405, %v1414
      %v1421 = vadd.f32 %v1398, %v1413
      %v1422 = vadd.f32 %v1406, %v1414
      %v1423 = vadd.f32 %v1399, %v1413
      %v1424 = vadd.f32 %v1407, %v1414
      %v1425 = vadd.f32 %v1400, %v1413
      %v1426 = vadd.f32 %v1408, %v1414
      %v1427 = vadd.f32 %v1401, %v1413
      %v1428 = vadd.f32 %v1409, %v1414
      %v1429 = vadd.f32 %v1402, %v1413
      %v1430 = vadd.f32 %v1410, %v1414
      %v1431 = vadd.f32 %v1403, %v1413
      %v1432 = vadd.f32 %v1411, %v1414
      %v1433 = vmax.f32 %v1347, %v1417
      %v1434 = vmax.f32 %v1348, %v1418
      %v1435 = vmax.f32 %v1349, %v1419
      %v1436 = vmax.f32 %v1350, %v1420
      %v1437 = vmax.f32 %v1351, %v1421
      %v1438 = vmax.f32 %v1352, %v1422
      %v1439 = vmax.f32 %v1353, %v1423
      %v1440 = vmax.f32 %v1354, %v1424
      %v1441 = vmax.f32 %v1355, %v1425
      %v1442 = vmax.f32 %v1356, %v1426
      %v1443 = vmax.f32 %v1357, %v1427
      %v1444 = vmax.f32 %v1358, %v1428
      %v1445 = vmax.f32 %v1359, %v1429
      %v1446 = vmax.f32 %v1360, %v1430
      %v1447 = vmax.f32 %v1361, %v1431
      %v1448 = vmax.f32 %v1362, %v1432
      %1449 = vrot.lane.b32.xlu0 %v1433, 1
      %v1450 = vpop.permute.xlu0 %1449
      %1451 = vrot.lane.b32.xlu0 %v1435, 1
      %v1452 = vpop.permute.xlu0 %1451
      %1453 = vrot.lane.b32.xlu0 %v1437, 1
      %v1454 = vpop.permute.xlu0 %1453
      %1455 = vrot.lane.b32.xlu0 %v1439, 1
      %v1456 = vpop.permute.xlu0 %1455
      %1457 = vrot.lane.b32.xlu0 %v1441, 1
      %v1458 = vpop.permute.xlu0 %1457
      %1459 = vrot.lane.b32.xlu0 %v1443, 1
      %v1460 = vpop.permute.xlu0 %1459
      %1461 = vrot.lane.b32.xlu0 %v1445, 1
      %v1462 = vpop.permute.xlu0 %1461
      %1463 = vrot.lane.b32.xlu0 %v1447, 1
      %v1464 = vpop.permute.xlu0 %1463
      %1465 = vrot.lane.b32.xlu0 %v1434, 1
      %v1466 = vpop.permute.xlu0 %1465
      %1467 = vrot.lane.b32.xlu0 %v1436, 1
      %v1468 = vpop.permute.xlu0 %1467
      %1469 = vrot.lane.b32.xlu0 %v1438, 1
      %v1470 = vpop.permute.xlu0 %1469
      %1471 = vrot.lane.b32.xlu0 %v1440, 1
      %v1472 = vpop.permute.xlu0 %1471
      %1473 = vrot.lane.b32.xlu0 %v1442, 1
      %v1474 = vpop.permute.xlu0 %1473
      %1475 = vrot.lane.b32.xlu0 %v1444, 1
      %v1476 = vpop.permute.xlu0 %1475
      %1477 = vrot.lane.b32.xlu0 %v1446, 1
      %v1478 = vpop.permute.xlu0 %1477
      %1479 = vrot.lane.b32.xlu0 %v1448, 1
      %v1480 = vpop.permute.xlu0 %1479
      %v1481 = vsel %vm793, %v1450, %v1466
      %v1482 = vsel %vm793, %v1452, %v1468
      %v1483 = vsel %vm793, %v1454, %v1470
      %v1484 = vsel %vm793, %v1456, %v1472
      %v1485 = vsel %vm793, %v1458, %v1474
      %v1486 = vsel %vm793, %v1460, %v1476
      %v1487 = vsel %vm793, %v1462, %v1478
      %v1488 = vsel %vm793, %v1464, %v1480
      %v1489 = vsel %vm793, %v1466, %v1450
      %v1490 = vsel %vm793, %v1468, %v1452
      %v1491 = vsel %vm793, %v1470, %v1454
      %v1492 = vsel %vm793, %v1472, %v1456
      %v1493 = vsel %vm793, %v1474, %v1458
      %v1494 = vsel %vm793, %v1476, %v1460
      %v1495 = vsel %vm793, %v1478, %v1462
      %v1496 = vsel %vm793, %v1480, %v1464
      %v1497 = vadd.f32 %v1489, %v811
      %v1498 = vadd.f32 %v1481, %v812
      %v1499 = vadd.f32 %v1490, %v811
      %v1500 = vadd.f32 %v1482, %v812
      %v1501 = vadd.f32 %v1491, %v811
      %v1502 = vadd.f32 %v1483, %v812
      %v1503 = vadd.f32 %v1492, %v811
      %v1504 = vadd.f32 %v1484, %v812
      %v1505 = vadd.f32 %v1493, %v811
      %v1506 = vadd.f32 %v1485, %v812
      %v1507 = vadd.f32 %v1494, %v811
      %v1508 = vadd.f32 %v1486, %v812
      %v1509 = vadd.f32 %v1495, %v811
      %v1510 = vadd.f32 %v1487, %v812
      %v1511 = vadd.f32 %v1496, %v811
      %v1512 = vadd.f32 %v1488, %v812
      %v1513 = vmax.f32 %v1433, %v1497
      %v1514 = vmax.f32 %v1434, %v1498
      %v1515 = vmax.f32 %v1435, %v1499
      %v1516 = vmax.f32 %v1436, %v1500
      %v1517 = vmax.f32 %v1437, %v1501
      %v1518 = vmax.f32 %v1438, %v1502
      %v1519 = vmax.f32 %v1439, %v1503
      %v1520 = vmax.f32 %v1440, %v1504
      %v1521 = vmax.f32 %v1441, %v1505
      %v1522 = vmax.f32 %v1442, %v1506
      %v1523 = vmax.f32 %v1443, %v1507
      %v1524 = vmax.f32 %v1444, %v1508
      %v1525 = vmax.f32 %v1445, %v1509
      %v1526 = vmax.f32 %v1446, %v1510
      %v1527 = vmax.f32 %v1447, %v1511
      %v1528 = vmax.f32 %v1448, %v1512
      %1529 = vrot.lane.b32.xlu0 %v1433, 2
      %v1530 = vpop.permute.xlu0 %1529
      %1531 = vrot.lane.b32.xlu0 %v1435, 2
      %v1532 = vpop.permute.xlu0 %1531
      %1533 = vrot.lane.b32.xlu0 %v1437, 2
      %v1534 = vpop.permute.xlu0 %1533
      %1535 = vrot.lane.b32.xlu0 %v1439, 2
      %v1536 = vpop.permute.xlu0 %1535
      %1537 = vrot.lane.b32.xlu0 %v1441, 2
      %v1538 = vpop.permute.xlu0 %1537
      %1539 = vrot.lane.b32.xlu0 %v1443, 2
      %v1540 = vpop.permute.xlu0 %1539
      %1541 = vrot.lane.b32.xlu0 %v1445, 2
      %v1542 = vpop.permute.xlu0 %1541
      %1543 = vrot.lane.b32.xlu0 %v1447, 2
      %v1544 = vpop.permute.xlu0 %1543
      %1545 = vrot.lane.b32.xlu0 %v1434, 2
      %v1546 = vpop.permute.xlu0 %1545
      %1547 = vrot.lane.b32.xlu0 %v1436, 2
      %v1548 = vpop.permute.xlu0 %1547
      %1549 = vrot.lane.b32.xlu0 %v1438, 2
      %v1550 = vpop.permute.xlu0 %1549
      %1551 = vrot.lane.b32.xlu0 %v1440, 2
      %v1552 = vpop.permute.xlu0 %1551
      %1553 = vrot.lane.b32.xlu0 %v1442, 2
      %v1554 = vpop.permute.xlu0 %1553
      %1555 = vrot.lane.b32.xlu0 %v1444, 2
      %v1556 = vpop.permute.xlu0 %1555
      %1557 = vrot.lane.b32.xlu0 %v1446, 2
      %v1558 = vpop.permute.xlu0 %1557
      %1559 = vrot.lane.b32.xlu0 %v1448, 2
      %v1560 = vpop.permute.xlu0 %1559
      %v1561 = vsel %vm879, %v1530, %v1546
      %v1562 = vsel %vm879, %v1532, %v1548
      %v1563 = vsel %vm879, %v1534, %v1550
      %v1564 = vsel %vm879, %v1536, %v1552
      %v1565 = vsel %vm879, %v1538, %v1554
      %v1566 = vsel %vm879, %v1540, %v1556
      %v1567 = vsel %vm879, %v1542, %v1558
      %v1568 = vsel %vm879, %v1544, %v1560
      %v1569 = vsel %vm879, %v1546, %v1530
      %v1570 = vsel %vm879, %v1548, %v1532
      %v1571 = vsel %vm879, %v1550, %v1534
      %v1572 = vsel %vm879, %v1552, %v1536
      %v1573 = vsel %vm879, %v1554, %v1538
      %v1574 = vsel %vm879, %v1556, %v1540
      %v1575 = vsel %vm879, %v1558, %v1542
      %v1576 = vsel %vm879, %v1560, %v1544
      %v1577 = vadd.f32 %v1569, %v897
      %v1578 = vadd.f32 %v1561, %v898
      %v1579 = vadd.f32 %v1570, %v897
      %v1580 = vadd.f32 %v1562, %v898
      %v1581 = vadd.f32 %v1571, %v897
      %v1582 = vadd.f32 %v1563, %v898
      %v1583 = vadd.f32 %v1572, %v897
      %v1584 = vadd.f32 %v1564, %v898
      %v1585 = vadd.f32 %v1573, %v897
      %v1586 = vadd.f32 %v1565, %v898
      %v1587 = vadd.f32 %v1574, %v897
      %v1588 = vadd.f32 %v1566, %v898
      %v1589 = vadd.f32 %v1575, %v897
      %v1590 = vadd.f32 %v1567, %v898
      %v1591 = vadd.f32 %v1576, %v897
      %v1592 = vadd.f32 %v1568, %v898
      %v1593 = vmax.f32 %v1513, %v1577
      %v1594 = vmax.f32 %v1514, %v1578
      %v1595 = vmax.f32 %v1515, %v1579
      %v1596 = vmax.f32 %v1516, %v1580
      %v1597 = vmax.f32 %v1517, %v1581
      %v1598 = vmax.f32 %v1518, %v1582
      %v1599 = vmax.f32 %v1519, %v1583
      %v1600 = vmax.f32 %v1520, %v1584
      %v1601 = vmax.f32 %v1521, %v1585
      %v1602 = vmax.f32 %v1522, %v1586
      %v1603 = vmax.f32 %v1523, %v1587
      %v1604 = vmax.f32 %v1524, %v1588
      %v1605 = vmax.f32 %v1525, %v1589
      %v1606 = vmax.f32 %v1526, %v1590
      %v1607 = vmax.f32 %v1527, %v1591
      %v1608 = vmax.f32 %v1528, %v1592
      %1609 = vrot.lane.b32.xlu0 %v1433, 127
      %v1610 = vpop.permute.xlu0 %1609
      %1611 = vrot.lane.b32.xlu0 %v1435, 127
      %v1612 = vpop.permute.xlu0 %1611
      %1613 = vrot.lane.b32.xlu0 %v1437, 127
      %v1614 = vpop.permute.xlu0 %1613
      %1615 = vrot.lane.b32.xlu0 %v1439, 127
      %v1616 = vpop.permute.xlu0 %1615
      %1617 = vrot.lane.b32.xlu0 %v1441, 127
      %v1618 = vpop.permute.xlu0 %1617
      %1619 = vrot.lane.b32.xlu0 %v1443, 127
      %v1620 = vpop.permute.xlu0 %1619
      %1621 = vrot.lane.b32.xlu0 %v1445, 127
      %v1622 = vpop.permute.xlu0 %1621
      %1623 = vrot.lane.b32.xlu0 %v1447, 127
      %v1624 = vpop.permute.xlu0 %1623
      %1625 = vrot.lane.b32.xlu0 %v1434, 127
      %v1626 = vpop.permute.xlu0 %1625
      %1627 = vrot.lane.b32.xlu0 %v1436, 127
      %v1628 = vpop.permute.xlu0 %1627
      %1629 = vrot.lane.b32.xlu0 %v1438, 127
      %v1630 = vpop.permute.xlu0 %1629
      %1631 = vrot.lane.b32.xlu0 %v1440, 127
      %v1632 = vpop.permute.xlu0 %1631
      %1633 = vrot.lane.b32.xlu0 %v1442, 127
      %v1634 = vpop.permute.xlu0 %1633
      %1635 = vrot.lane.b32.xlu0 %v1444, 127
      %v1636 = vpop.permute.xlu0 %1635
      %1637 = vrot.lane.b32.xlu0 %v1446, 127
      %v1638 = vpop.permute.xlu0 %1637
      %1639 = vrot.lane.b32.xlu0 %v1448, 127
      %v1640 = vpop.permute.xlu0 %1639
      %v1641 = vsel %vm965, %v1610, %v1626
      %v1642 = vsel %vm965, %v1612, %v1628
      %v1643 = vsel %vm965, %v1614, %v1630
      %v1644 = vsel %vm965, %v1616, %v1632
      %v1645 = vsel %vm965, %v1618, %v1634
      %v1646 = vsel %vm965, %v1620, %v1636
      %v1647 = vsel %vm965, %v1622, %v1638
      %v1648 = vsel %vm965, %v1624, %v1640
      %v1649 = vsel %vm965, %v1626, %v1610
      %v1650 = vsel %vm965, %v1628, %v1612
      %v1651 = vsel %vm965, %v1630, %v1614
      %v1652 = vsel %vm965, %v1632, %v1616
      %v1653 = vsel %vm965, %v1634, %v1618
      %v1654 = vsel %vm965, %v1636, %v1620
      %v1655 = vsel %vm965, %v1638, %v1622
      %v1656 = vsel %vm965, %v1640, %v1624
      %v1657 = vadd.f32 %v1641, %v983
      %v1658 = vadd.f32 %v1649, %v984
      %v1659 = vadd.f32 %v1642, %v983
      %v1660 = vadd.f32 %v1650, %v984
      %v1661 = vadd.f32 %v1643, %v983
      %v1662 = vadd.f32 %v1651, %v984
      %v1663 = vadd.f32 %v1644, %v983
      %v1664 = vadd.f32 %v1652, %v984
      %v1665 = vadd.f32 %v1645, %v983
      %v1666 = vadd.f32 %v1653, %v984
      %v1667 = vadd.f32 %v1646, %v983
      %v1668 = vadd.f32 %v1654, %v984
      %v1669 = vadd.f32 %v1647, %v983
      %v1670 = vadd.f32 %v1655, %v984
      %v1671 = vadd.f32 %v1648, %v983
      %v1672 = vadd.f32 %v1656, %v984
      %v1673 = vmax.f32 %v1593, %v1657
      %v1674 = vmax.f32 %v1594, %v1658
      %v1675 = vmax.f32 %v1595, %v1659
      %v1676 = vmax.f32 %v1596, %v1660
      %v1677 = vmax.f32 %v1597, %v1661
      %v1678 = vmax.f32 %v1598, %v1662
      %v1679 = vmax.f32 %v1599, %v1663
      %v1680 = vmax.f32 %v1600, %v1664
      %v1681 = vmax.f32 %v1601, %v1665
      %v1682 = vmax.f32 %v1602, %v1666
      %v1683 = vmax.f32 %v1603, %v1667
      %v1684 = vmax.f32 %v1604, %v1668
      %v1685 = vmax.f32 %v1605, %v1669
      %v1686 = vmax.f32 %v1606, %v1670
      %v1687 = vmax.f32 %v1607, %v1671
      %v1688 = vmax.f32 %v1608, %v1672
      %1689 = vrot.lane.b32.xlu0 %v1433, 126
      %v1690 = vpop.permute.xlu0 %1689
      %1691 = vrot.lane.b32.xlu0 %v1435, 126
      %v1692 = vpop.permute.xlu0 %1691
      %1693 = vrot.lane.b32.xlu0 %v1437, 126
      %v1694 = vpop.permute.xlu0 %1693
      %1695 = vrot.lane.b32.xlu0 %v1439, 126
      %v1696 = vpop.permute.xlu0 %1695
      %1697 = vrot.lane.b32.xlu0 %v1441, 126
      %v1698 = vpop.permute.xlu0 %1697
      %1699 = vrot.lane.b32.xlu0 %v1443, 126
      %v1700 = vpop.permute.xlu0 %1699
      %1701 = vrot.lane.b32.xlu0 %v1445, 126
      %v1702 = vpop.permute.xlu0 %1701
      %1703 = vrot.lane.b32.xlu0 %v1447, 126
      %v1704 = vpop.permute.xlu0 %1703
      %1705 = vrot.lane.b32.xlu0 %v1434, 126
      %v1706 = vpop.permute.xlu0 %1705
      %1707 = vrot.lane.b32.xlu0 %v1436, 126
      %v1708 = vpop.permute.xlu0 %1707
      %1709 = vrot.lane.b32.xlu0 %v1438, 126
      %v1710 = vpop.permute.xlu0 %1709
      %1711 = vrot.lane.b32.xlu0 %v1440, 126
      %v1712 = vpop.permute.xlu0 %1711
      %1713 = vrot.lane.b32.xlu0 %v1442, 126
      %v1714 = vpop.permute.xlu0 %1713
      %1715 = vrot.lane.b32.xlu0 %v1444, 126
      %v1716 = vpop.permute.xlu0 %1715
      %1717 = vrot.lane.b32.xlu0 %v1446, 126
      %v1718 = vpop.permute.xlu0 %1717
      %1719 = vrot.lane.b32.xlu0 %v1448, 126
      %v1720 = vpop.permute.xlu0 %1719
      %v1721 = vsel %vm1051, %v1690, %v1706
      %v1722 = vsel %vm1051, %v1692, %v1708
      %v1723 = vsel %vm1051, %v1694, %v1710
      %v1724 = vsel %vm1051, %v1696, %v1712
      %v1725 = vsel %vm1051, %v1698, %v1714
      %v1726 = vsel %vm1051, %v1700, %v1716
      %v1727 = vsel %vm1051, %v1702, %v1718
      %v1728 = vsel %vm1051, %v1704, %v1720
      %v1729 = vsel %vm1051, %v1706, %v1690
      %v1730 = vsel %vm1051, %v1708, %v1692
      %v1731 = vsel %vm1051, %v1710, %v1694
      %v1732 = vsel %vm1051, %v1712, %v1696
      %v1733 = vsel %vm1051, %v1714, %v1698
      %v1734 = vsel %vm1051, %v1716, %v1700
      %v1735 = vsel %vm1051, %v1718, %v1702
      %v1736 = vsel %vm1051, %v1720, %v1704
      %v1737 = vadd.f32 %v1721, %v1069
      %v1738 = vadd.f32 %v1729, %v1070
      %v1739 = vadd.f32 %v1722, %v1069
      %v1740 = vadd.f32 %v1730, %v1070
      %v1741 = vadd.f32 %v1723, %v1069
      %v1742 = vadd.f32 %v1731, %v1070
      %v1743 = vadd.f32 %v1724, %v1069
      %v1744 = vadd.f32 %v1732, %v1070
      %v1745 = vadd.f32 %v1725, %v1069
      %v1746 = vadd.f32 %v1733, %v1070
      %v1747 = vadd.f32 %v1726, %v1069
      %v1748 = vadd.f32 %v1734, %v1070
      %v1749 = vadd.f32 %v1727, %v1069
      %v1750 = vadd.f32 %v1735, %v1070
      %v1751 = vadd.f32 %v1728, %v1069
      %v1752 = vadd.f32 %v1736, %v1070
      %v1753 = vmax.f32 %v1673, %v1737
      %v1754 = vmax.f32 %v1674, %v1738
      %v1755 = vmax.f32 %v1675, %v1739
      %v1756 = vmax.f32 %v1676, %v1740
      %v1757 = vmax.f32 %v1677, %v1741
      %v1758 = vmax.f32 %v1678, %v1742
      %v1759 = vmax.f32 %v1679, %v1743
      %v1760 = vmax.f32 %v1680, %v1744
      %v1761 = vmax.f32 %v1681, %v1745
      %v1762 = vmax.f32 %v1682, %v1746
      %v1763 = vmax.f32 %v1683, %v1747
      %v1764 = vmax.f32 %v1684, %v1748
      %v1765 = vmax.f32 %v1685, %v1749
      %v1766 = vmax.f32 %v1686, %v1750
      %v1767 = vmax.f32 %v1687, %v1751
      %v1768 = vmax.f32 %v1688, %v1752
      %1769 = vrot.lane.b32.xlu0 %v1753, 16
      %v1770 = vpop.permute.xlu0 %1769
      %1771 = vrot.lane.b32.xlu0 %v1755, 16
      %v1772 = vpop.permute.xlu0 %1771
      %1773 = vrot.lane.b32.xlu0 %v1757, 16
      %v1774 = vpop.permute.xlu0 %1773
      %1775 = vrot.lane.b32.xlu0 %v1759, 16
      %v1776 = vpop.permute.xlu0 %1775
      %1777 = vrot.lane.b32.xlu0 %v1761, 16
      %v1778 = vpop.permute.xlu0 %1777
      %1779 = vrot.lane.b32.xlu0 %v1763, 16
      %v1780 = vpop.permute.xlu0 %1779
      %1781 = vrot.lane.b32.xlu0 %v1765, 16
      %v1782 = vpop.permute.xlu0 %1781
      %1783 = vrot.lane.b32.xlu0 %v1767, 16
      %v1784 = vpop.permute.xlu0 %1783
      %1785 = vrot.lane.b32.xlu0 %v1754, 16
      %v1786 = vpop.permute.xlu0 %1785
      %1787 = vrot.lane.b32.xlu0 %v1756, 16
      %v1788 = vpop.permute.xlu0 %1787
      %1789 = vrot.lane.b32.xlu0 %v1758, 16
      %v1790 = vpop.permute.xlu0 %1789
      %1791 = vrot.lane.b32.xlu0 %v1760, 16
      %v1792 = vpop.permute.xlu0 %1791
      %1793 = vrot.lane.b32.xlu0 %v1762, 16
      %v1794 = vpop.permute.xlu0 %1793
      %1795 = vrot.lane.b32.xlu0 %v1764, 16
      %v1796 = vpop.permute.xlu0 %1795
      %1797 = vrot.lane.b32.xlu0 %v1766, 16
      %v1798 = vpop.permute.xlu0 %1797
      %1799 = vrot.lane.b32.xlu0 %v1768, 16
      %v1800 = vpop.permute.xlu0 %1799
      %v1801 = vsel %vm1137, %v1770, %v1786
      %v1802 = vsel %vm1137, %v1772, %v1788
      %v1803 = vsel %vm1137, %v1774, %v1790
      %v1804 = vsel %vm1137, %v1776, %v1792
      %v1805 = vsel %vm1137, %v1778, %v1794
      %v1806 = vsel %vm1137, %v1780, %v1796
      %v1807 = vsel %vm1137, %v1782, %v1798
      %v1808 = vsel %vm1137, %v1784, %v1800
      %v1809 = vsel %vm1137, %v1786, %v1770
      %v1810 = vsel %vm1137, %v1788, %v1772
      %v1811 = vsel %vm1137, %v1790, %v1774
      %v1812 = vsel %vm1137, %v1792, %v1776
      %v1813 = vsel %vm1137, %v1794, %v1778
      %v1814 = vsel %vm1137, %v1796, %v1780
      %v1815 = vsel %vm1137, %v1798, %v1782
      %v1816 = vsel %vm1137, %v1800, %v1784
      %v1817 = vadd.f32 %v1809, %v1155
      %v1818 = vadd.f32 %v1801, %v1156
      %v1819 = vadd.f32 %v1810, %v1155
      %v1820 = vadd.f32 %v1802, %v1156
      %v1821 = vadd.f32 %v1811, %v1155
      %v1822 = vadd.f32 %v1803, %v1156
      %v1823 = vadd.f32 %v1812, %v1155
      %v1824 = vadd.f32 %v1804, %v1156
      %v1825 = vadd.f32 %v1813, %v1155
      %v1826 = vadd.f32 %v1805, %v1156
      %v1827 = vadd.f32 %v1814, %v1155
      %v1828 = vadd.f32 %v1806, %v1156
      %v1829 = vadd.f32 %v1815, %v1155
      %v1830 = vadd.f32 %v1807, %v1156
      %v1831 = vadd.f32 %v1816, %v1155
      %v1832 = vadd.f32 %v1808, %v1156
      %v1833 = vmax.f32 %v1753, %v1817
      %v1834 = vmax.f32 %v1754, %v1818
      %v1835 = vmax.f32 %v1755, %v1819
      %v1836 = vmax.f32 %v1756, %v1820
      %v1837 = vmax.f32 %v1757, %v1821
      %v1838 = vmax.f32 %v1758, %v1822
      %v1839 = vmax.f32 %v1759, %v1823
      %v1840 = vmax.f32 %v1760, %v1824
      %v1841 = vmax.f32 %v1761, %v1825
      %v1842 = vmax.f32 %v1762, %v1826
      %v1843 = vmax.f32 %v1763, %v1827
      %v1844 = vmax.f32 %v1764, %v1828
      %v1845 = vmax.f32 %v1765, %v1829
      %v1846 = vmax.f32 %v1766, %v1830
      %v1847 = vmax.f32 %v1767, %v1831
      %v1848 = vmax.f32 %v1768, %v1832
      %1849 = vrot.lane.b32.xlu0 %v1753, 32
      %v1850 = vpop.permute.xlu0 %1849
      %1851 = vrot.lane.b32.xlu0 %v1755, 32
      %v1852 = vpop.permute.xlu0 %1851
      %1853 = vrot.lane.b32.xlu0 %v1757, 32
      %v1854 = vpop.permute.xlu0 %1853
      %1855 = vrot.lane.b32.xlu0 %v1759, 32
      %v1856 = vpop.permute.xlu0 %1855
      %1857 = vrot.lane.b32.xlu0 %v1761, 32
      %v1858 = vpop.permute.xlu0 %1857
      %1859 = vrot.lane.b32.xlu0 %v1763, 32
      %v1860 = vpop.permute.xlu0 %1859
      %1861 = vrot.lane.b32.xlu0 %v1765, 32
      %v1862 = vpop.permute.xlu0 %1861
      %1863 = vrot.lane.b32.xlu0 %v1767, 32
      %v1864 = vpop.permute.xlu0 %1863
      %1865 = vrot.lane.b32.xlu0 %v1754, 32
      %v1866 = vpop.permute.xlu0 %1865
      %1867 = vrot.lane.b32.xlu0 %v1756, 32
      %v1868 = vpop.permute.xlu0 %1867
      %1869 = vrot.lane.b32.xlu0 %v1758, 32
      %v1870 = vpop.permute.xlu0 %1869
      %1871 = vrot.lane.b32.xlu0 %v1760, 32
      %v1872 = vpop.permute.xlu0 %1871
      %1873 = vrot.lane.b32.xlu0 %v1762, 32
      %v1874 = vpop.permute.xlu0 %1873
      %1875 = vrot.lane.b32.xlu0 %v1764, 32
      %v1876 = vpop.permute.xlu0 %1875
      %1877 = vrot.lane.b32.xlu0 %v1766, 32
      %v1878 = vpop.permute.xlu0 %1877
      %1879 = vrot.lane.b32.xlu0 %v1768, 32
      %v1880 = vpop.permute.xlu0 %1879
      %v1881 = vsel %vm1223, %v1850, %v1866
      %v1882 = vsel %vm1223, %v1852, %v1868
      %v1883 = vsel %vm1223, %v1854, %v1870
      %v1884 = vsel %vm1223, %v1856, %v1872
      %v1885 = vsel %vm1223, %v1858, %v1874
      %v1886 = vsel %vm1223, %v1860, %v1876
      %v1887 = vsel %vm1223, %v1862, %v1878
      %v1888 = vsel %vm1223, %v1864, %v1880
      %v1889 = vsel %vm1223, %v1866, %v1850
      %v1890 = vsel %vm1223, %v1868, %v1852
      %v1891 = vsel %vm1223, %v1870, %v1854
      %v1892 = vsel %vm1223, %v1872, %v1856
      %v1893 = vsel %vm1223, %v1874, %v1858
      %v1894 = vsel %vm1223, %v1876, %v1860
      %v1895 = vsel %vm1223, %v1878, %v1862
      %v1896 = vsel %vm1223, %v1880, %v1864
      %v1897 = vadd.f32 %v1889, %v1241
      %v1898 = vadd.f32 %v1881, %v1242
      %v1899 = vadd.f32 %v1890, %v1241
      %v1900 = vadd.f32 %v1882, %v1242
      %v1901 = vadd.f32 %v1891, %v1241
      %v1902 = vadd.f32 %v1883, %v1242
      %v1903 = vadd.f32 %v1892, %v1241
      %v1904 = vadd.f32 %v1884, %v1242
      %v1905 = vadd.f32 %v1893, %v1241
      %v1906 = vadd.f32 %v1885, %v1242
      %v1907 = vadd.f32 %v1894, %v1241
      %v1908 = vadd.f32 %v1886, %v1242
      %v1909 = vadd.f32 %v1895, %v1241
      %v1910 = vadd.f32 %v1887, %v1242
      %v1911 = vadd.f32 %v1896, %v1241
      %v1912 = vadd.f32 %v1888, %v1242
      %v1913 = vmax.f32 %v1833, %v1897
      %v1914 = vmax.f32 %v1834, %v1898
      %v1915 = vmax.f32 %v1835, %v1899
      %v1916 = vmax.f32 %v1836, %v1900
      %v1917 = vmax.f32 %v1837, %v1901
      %v1918 = vmax.f32 %v1838, %v1902
      %v1919 = vmax.f32 %v1839, %v1903
      %v1920 = vmax.f32 %v1840, %v1904
      %v1921 = vmax.f32 %v1841, %v1905
      %v1922 = vmax.f32 %v1842, %v1906
      %v1923 = vmax.f32 %v1843, %v1907
      %v1924 = vmax.f32 %v1844, %v1908
      %v1925 = vmax.f32 %v1845, %v1909
      %v1926 = vmax.f32 %v1846, %v1910
      %v1927 = vmax.f32 %v1847, %v1911
      %v1928 = vmax.f32 %v1848, %v1912
      %1929 = vrot.lane.b32.xlu0 %v1753, 112
      %v1930 = vpop.permute.xlu0 %1929
      %1931 = vrot.lane.b32.xlu0 %v1755, 112
      %v1932 = vpop.permute.xlu0 %1931
      %1933 = vrot.lane.b32.xlu0 %v1757, 112
      %v1934 = vpop.permute.xlu0 %1933
      %1935 = vrot.lane.b32.xlu0 %v1759, 112
      %v1936 = vpop.permute.xlu0 %1935
      %1937 = vrot.lane.b32.xlu0 %v1761, 112
      %v1938 = vpop.permute.xlu0 %1937
      %1939 = vrot.lane.b32.xlu0 %v1763, 112
      %v1940 = vpop.permute.xlu0 %1939
      %1941 = vrot.lane.b32.xlu0 %v1765, 112
      %v1942 = vpop.permute.xlu0 %1941
      %1943 = vrot.lane.b32.xlu0 %v1767, 112
      %v1944 = vpop.permute.xlu0 %1943
      %1945 = vrot.lane.b32.xlu0 %v1754, 112
      %v1946 = vpop.permute.xlu0 %1945
      %1947 = vrot.lane.b32.xlu0 %v1756, 112
      %v1948 = vpop.permute.xlu0 %1947
      %1949 = vrot.lane.b32.xlu0 %v1758, 112
      %v1950 = vpop.permute.xlu0 %1949
      %1951 = vrot.lane.b32.xlu0 %v1760, 112
      %v1952 = vpop.permute.xlu0 %1951
      %1953 = vrot.lane.b32.xlu0 %v1762, 112
      %v1954 = vpop.permute.xlu0 %1953
      %1955 = vrot.lane.b32.xlu0 %v1764, 112
      %v1956 = vpop.permute.xlu0 %1955
      %1957 = vrot.lane.b32.xlu0 %v1766, 112
      %v1958 = vpop.permute.xlu0 %1957
      %1959 = vrot.lane.b32.xlu0 %v1768, 112
      %v1960 = vpop.permute.xlu0 %1959
      %v1961 = vsel %vm1309, %v1930, %v1946
      %v1962 = vsel %vm1309, %v1932, %v1948
      %v1963 = vsel %vm1309, %v1934, %v1950
      %v1964 = vsel %vm1309, %v1936, %v1952
      %v1965 = vsel %vm1309, %v1938, %v1954
      %v1966 = vsel %vm1309, %v1940, %v1956
      %v1967 = vsel %vm1309, %v1942, %v1958
      %v1968 = vsel %vm1309, %v1944, %v1960
      %v1969 = vsel %vm1309, %v1946, %v1930
      %v1970 = vsel %vm1309, %v1948, %v1932
      %v1971 = vsel %vm1309, %v1950, %v1934
      %v1972 = vsel %vm1309, %v1952, %v1936
      %v1973 = vsel %vm1309, %v1954, %v1938
      %v1974 = vsel %vm1309, %v1956, %v1940
      %v1975 = vsel %vm1309, %v1958, %v1942
      %v1976 = vsel %vm1309, %v1960, %v1944
      %v1977 = vadd.f32 %v1961, %v1327
      %v1978 = vadd.f32 %v1969, %v1328
      %v1979 = vadd.f32 %v1962, %v1327
      %v1980 = vadd.f32 %v1970, %v1328
      %v1981 = vadd.f32 %v1963, %v1327
      %v1982 = vadd.f32 %v1971, %v1328
      %v1983 = vadd.f32 %v1964, %v1327
      %v1984 = vadd.f32 %v1972, %v1328
      %v1985 = vadd.f32 %v1965, %v1327
      %v1986 = vadd.f32 %v1973, %v1328
      %v1987 = vadd.f32 %v1966, %v1327
      %v1988 = vadd.f32 %v1974, %v1328
      %v1989 = vadd.f32 %v1967, %v1327
      %v1990 = vadd.f32 %v1975, %v1328
      %v1991 = vadd.f32 %v1968, %v1327
      %v1992 = vadd.f32 %v1976, %v1328
      %v1993 = vmax.f32 %v1913, %v1977
      %v1994 = vmax.f32 %v1914, %v1978
      %v1995 = vmax.f32 %v1915, %v1979
      %v1996 = vmax.f32 %v1916, %v1980
      %v1997 = vmax.f32 %v1917, %v1981
      %v1998 = vmax.f32 %v1918, %v1982
      %v1999 = vmax.f32 %v1919, %v1983
      %v2000 = vmax.f32 %v1920, %v1984
      %v2001 = vmax.f32 %v1921, %v1985
      %v2002 = vmax.f32 %v1922, %v1986
      %v2003 = vmax.f32 %v1923, %v1987
      %v2004 = vmax.f32 %v1924, %v1988
      %v2005 = vmax.f32 %v1925, %v1989
      %v2006 = vmax.f32 %v1926, %v1990
      %v2007 = vmax.f32 %v1927, %v1991
      %v2008 = vmax.f32 %v1928, %v1992
      %2009 = vrot.lane.b32.xlu0 %v1753, 96
      %v2010 = vpop.permute.xlu0 %2009
      %2011 = vrot.lane.b32.xlu0 %v1755, 96
      %v2012 = vpop.permute.xlu0 %2011
      %2013 = vrot.lane.b32.xlu0 %v1757, 96
      %v2014 = vpop.permute.xlu0 %2013
      %2015 = vrot.lane.b32.xlu0 %v1759, 96
      %v2016 = vpop.permute.xlu0 %2015
      %2017 = vrot.lane.b32.xlu0 %v1761, 96
      %v2018 = vpop.permute.xlu0 %2017
      %2019 = vrot.lane.b32.xlu0 %v1763, 96
      %v2020 = vpop.permute.xlu0 %2019
      %2021 = vrot.lane.b32.xlu0 %v1765, 96
      %v2022 = vpop.permute.xlu0 %2021
      %2023 = vrot.lane.b32.xlu0 %v1767, 96
      %v2024 = vpop.permute.xlu0 %2023
      %2025 = vrot.lane.b32.xlu0 %v1754, 96
      %v2026 = vpop.permute.xlu0 %2025
      %2027 = vrot.lane.b32.xlu0 %v1756, 96
      %v2028 = vpop.permute.xlu0 %2027
      %2029 = vrot.lane.b32.xlu0 %v1758, 96
      %v2030 = vpop.permute.xlu0 %2029
      %2031 = vrot.lane.b32.xlu0 %v1760, 96
      %v2032 = vpop.permute.xlu0 %2031
      %2033 = vrot.lane.b32.xlu0 %v1762, 96
      %v2034 = vpop.permute.xlu0 %2033
      %2035 = vrot.lane.b32.xlu0 %v1764, 96
      %v2036 = vpop.permute.xlu0 %2035
      %2037 = vrot.lane.b32.xlu0 %v1766, 96
      %v2038 = vpop.permute.xlu0 %2037
      %2039 = vrot.lane.b32.xlu0 %v1768, 96
      %v2040 = vpop.permute.xlu0 %2039
      %v2041 = vsel %vm1395, %v2010, %v2026
      %v2042 = vsel %vm1395, %v2012, %v2028
      %v2043 = vsel %vm1395, %v2014, %v2030
      %v2044 = vsel %vm1395, %v2016, %v2032
      %v2045 = vsel %vm1395, %v2018, %v2034
      %v2046 = vsel %vm1395, %v2020, %v2036
      %v2047 = vsel %vm1395, %v2022, %v2038
      %v2048 = vsel %vm1395, %v2024, %v2040
      %v2049 = vsel %vm1395, %v2026, %v2010
      %v2050 = vsel %vm1395, %v2028, %v2012
      %v2051 = vsel %vm1395, %v2030, %v2014
      %v2052 = vsel %vm1395, %v2032, %v2016
      %v2053 = vsel %vm1395, %v2034, %v2018
      %v2054 = vsel %vm1395, %v2036, %v2020
      %v2055 = vsel %vm1395, %v2038, %v2022
      %v2056 = vsel %vm1395, %v2040, %v2024
      %v2057 = vadd.f32 %v2041, %v1413
      %v2058 = vadd.f32 %v2049, %v1414
      %v2059 = vadd.f32 %v2042, %v1413
      %v2060 = vadd.f32 %v2050, %v1414
      %v2061 = vadd.f32 %v2043, %v1413
      %v2062 = vadd.f32 %v2051, %v1414
      %v2063 = vadd.f32 %v2044, %v1413
      %v2064 = vadd.f32 %v2052, %v1414
      %v2065 = vadd.f32 %v2045, %v1413
      %v2066 = vadd.f32 %v2053, %v1414
      %v2067 = vadd.f32 %v2046, %v1413
      %v2068 = vadd.f32 %v2054, %v1414
      %v2069 = vadd.f32 %v2047, %v1413
      %v2070 = vadd.f32 %v2055, %v1414
      %v2071 = vadd.f32 %v2048, %v1413
      %v2072 = vadd.f32 %v2056, %v1414
      %v2073 = vmax.f32 %v1993, %v2057
      %v2074 = vmax.f32 %v1994, %v2058
      %v2075 = vmax.f32 %v1995, %v2059
      %v2076 = vmax.f32 %v1996, %v2060
      %v2077 = vmax.f32 %v1997, %v2061
      %v2078 = vmax.f32 %v1998, %v2062
      %v2079 = vmax.f32 %v1999, %v2063
      %v2080 = vmax.f32 %v2000, %v2064
      %v2081 = vmax.f32 %v2001, %v2065
      %v2082 = vmax.f32 %v2002, %v2066
      %v2083 = vmax.f32 %v2003, %v2067
      %v2084 = vmax.f32 %v2004, %v2068
      %v2085 = vmax.f32 %v2005, %v2069
      %v2086 = vmax.f32 %v2006, %v2070
      %v2087 = vmax.f32 %v2007, %v2071
      %v2088 = vmax.f32 %v2008, %v2072
      %2089 = vrot.lane.b32.xlu0 %v2073, 1
      %v2090 = vpop.permute.xlu0 %2089
      %2091 = vrot.lane.b32.xlu0 %v2075, 1
      %v2092 = vpop.permute.xlu0 %2091
      %2093 = vrot.lane.b32.xlu0 %v2077, 1
      %v2094 = vpop.permute.xlu0 %2093
      %2095 = vrot.lane.b32.xlu0 %v2079, 1
      %v2096 = vpop.permute.xlu0 %2095
      %2097 = vrot.lane.b32.xlu0 %v2081, 1
      %v2098 = vpop.permute.xlu0 %2097
      %2099 = vrot.lane.b32.xlu0 %v2083, 1
      %v2100 = vpop.permute.xlu0 %2099
      %2101 = vrot.lane.b32.xlu0 %v2085, 1
      %v2102 = vpop.permute.xlu0 %2101
      %2103 = vrot.lane.b32.xlu0 %v2087, 1
      %v2104 = vpop.permute.xlu0 %2103
      %2105 = vrot.lane.b32.xlu0 %v2074, 1
      %v2106 = vpop.permute.xlu0 %2105
      %2107 = vrot.lane.b32.xlu0 %v2076, 1
      %v2108 = vpop.permute.xlu0 %2107
      %2109 = vrot.lane.b32.xlu0 %v2078, 1
      %v2110 = vpop.permute.xlu0 %2109
      %2111 = vrot.lane.b32.xlu0 %v2080, 1
      %v2112 = vpop.permute.xlu0 %2111
      %2113 = vrot.lane.b32.xlu0 %v2082, 1
      %v2114 = vpop.permute.xlu0 %2113
      %2115 = vrot.lane.b32.xlu0 %v2084, 1
      %v2116 = vpop.permute.xlu0 %2115
      %2117 = vrot.lane.b32.xlu0 %v2086, 1
      %v2118 = vpop.permute.xlu0 %2117
      %2119 = vrot.lane.b32.xlu0 %v2088, 1
      %v2120 = vpop.permute.xlu0 %2119
      %v2121 = vsel %vm793, %v2090, %v2106
      %v2122 = vsel %vm793, %v2092, %v2108
      %v2123 = vsel %vm793, %v2094, %v2110
      %v2124 = vsel %vm793, %v2096, %v2112
      %v2125 = vsel %vm793, %v2098, %v2114
      %v2126 = vsel %vm793, %v2100, %v2116
      %v2127 = vsel %vm793, %v2102, %v2118
      %v2128 = vsel %vm793, %v2104, %v2120
      %v2129 = vsel %vm793, %v2106, %v2090
      %v2130 = vsel %vm793, %v2108, %v2092
      %v2131 = vsel %vm793, %v2110, %v2094
      %v2132 = vsel %vm793, %v2112, %v2096
      %v2133 = vsel %vm793, %v2114, %v2098
      %v2134 = vsel %vm793, %v2116, %v2100
      %v2135 = vsel %vm793, %v2118, %v2102
      %v2136 = vsel %vm793, %v2120, %v2104
      %v2137 = vadd.f32 %v2129, %v811
      %v2138 = vadd.f32 %v2121, %v812
      %v2139 = vadd.f32 %v2130, %v811
      %v2140 = vadd.f32 %v2122, %v812
      %v2141 = vadd.f32 %v2131, %v811
      %v2142 = vadd.f32 %v2123, %v812
      %v2143 = vadd.f32 %v2132, %v811
      %v2144 = vadd.f32 %v2124, %v812
      %v2145 = vadd.f32 %v2133, %v811
      %v2146 = vadd.f32 %v2125, %v812
      %v2147 = vadd.f32 %v2134, %v811
      %v2148 = vadd.f32 %v2126, %v812
      %v2149 = vadd.f32 %v2135, %v811
      %v2150 = vadd.f32 %v2127, %v812
      %v2151 = vadd.f32 %v2136, %v811
      %v2152 = vadd.f32 %v2128, %v812
      %v2153 = vmax.f32 %v2073, %v2137
      %v2154 = vmax.f32 %v2074, %v2138
      %v2155 = vmax.f32 %v2075, %v2139
      %v2156 = vmax.f32 %v2076, %v2140
      %v2157 = vmax.f32 %v2077, %v2141
      %v2158 = vmax.f32 %v2078, %v2142
      %v2159 = vmax.f32 %v2079, %v2143
      %v2160 = vmax.f32 %v2080, %v2144
      %v2161 = vmax.f32 %v2081, %v2145
      %v2162 = vmax.f32 %v2082, %v2146
      %v2163 = vmax.f32 %v2083, %v2147
      %v2164 = vmax.f32 %v2084, %v2148
      %v2165 = vmax.f32 %v2085, %v2149
      %v2166 = vmax.f32 %v2086, %v2150
      %v2167 = vmax.f32 %v2087, %v2151
      %v2168 = vmax.f32 %v2088, %v2152
      %2169 = vrot.lane.b32.xlu0 %v2073, 2
      %v2170 = vpop.permute.xlu0 %2169
      %2171 = vrot.lane.b32.xlu0 %v2075, 2
      %v2172 = vpop.permute.xlu0 %2171
      %2173 = vrot.lane.b32.xlu0 %v2077, 2
      %v2174 = vpop.permute.xlu0 %2173
      %2175 = vrot.lane.b32.xlu0 %v2079, 2
      %v2176 = vpop.permute.xlu0 %2175
      %2177 = vrot.lane.b32.xlu0 %v2081, 2
      %v2178 = vpop.permute.xlu0 %2177
      %2179 = vrot.lane.b32.xlu0 %v2083, 2
      %v2180 = vpop.permute.xlu0 %2179
      %2181 = vrot.lane.b32.xlu0 %v2085, 2
      %v2182 = vpop.permute.xlu0 %2181
      %2183 = vrot.lane.b32.xlu0 %v2087, 2
      %v2184 = vpop.permute.xlu0 %2183
      %2185 = vrot.lane.b32.xlu0 %v2074, 2
      %v2186 = vpop.permute.xlu0 %2185
      %2187 = vrot.lane.b32.xlu0 %v2076, 2
      %v2188 = vpop.permute.xlu0 %2187
      %2189 = vrot.lane.b32.xlu0 %v2078, 2
      %v2190 = vpop.permute.xlu0 %2189
      %2191 = vrot.lane.b32.xlu0 %v2080, 2
      %v2192 = vpop.permute.xlu0 %2191
      %2193 = vrot.lane.b32.xlu0 %v2082, 2
      %v2194 = vpop.permute.xlu0 %2193
      %2195 = vrot.lane.b32.xlu0 %v2084, 2
      %v2196 = vpop.permute.xlu0 %2195
      %2197 = vrot.lane.b32.xlu0 %v2086, 2
      %v2198 = vpop.permute.xlu0 %2197
      %2199 = vrot.lane.b32.xlu0 %v2088, 2
      %v2200 = vpop.permute.xlu0 %2199
      %v2201 = vsel %vm879, %v2170, %v2186
      %v2202 = vsel %vm879, %v2172, %v2188
      %v2203 = vsel %vm879, %v2174, %v2190
      %v2204 = vsel %vm879, %v2176, %v2192
      %v2205 = vsel %vm879, %v2178, %v2194
      %v2206 = vsel %vm879, %v2180, %v2196
      %v2207 = vsel %vm879, %v2182, %v2198
      %v2208 = vsel %vm879, %v2184, %v2200
      %v2209 = vsel %vm879, %v2186, %v2170
      %v2210 = vsel %vm879, %v2188, %v2172
      %v2211 = vsel %vm879, %v2190, %v2174
      %v2212 = vsel %vm879, %v2192, %v2176
      %v2213 = vsel %vm879, %v2194, %v2178
      %v2214 = vsel %vm879, %v2196, %v2180
      %v2215 = vsel %vm879, %v2198, %v2182
      %v2216 = vsel %vm879, %v2200, %v2184
      %v2217 = vadd.f32 %v2209, %v897
      %v2218 = vadd.f32 %v2201, %v898
      %v2219 = vadd.f32 %v2210, %v897
      %v2220 = vadd.f32 %v2202, %v898
      %v2221 = vadd.f32 %v2211, %v897
      %v2222 = vadd.f32 %v2203, %v898
      %v2223 = vadd.f32 %v2212, %v897
      %v2224 = vadd.f32 %v2204, %v898
      %v2225 = vadd.f32 %v2213, %v897
      %v2226 = vadd.f32 %v2205, %v898
      %v2227 = vadd.f32 %v2214, %v897
      %v2228 = vadd.f32 %v2206, %v898
      %v2229 = vadd.f32 %v2215, %v897
      %v2230 = vadd.f32 %v2207, %v898
      %v2231 = vadd.f32 %v2216, %v897
      %v2232 = vadd.f32 %v2208, %v898
      %v2233 = vmax.f32 %v2153, %v2217
      %v2234 = vmax.f32 %v2154, %v2218
      %v2235 = vmax.f32 %v2155, %v2219
      %v2236 = vmax.f32 %v2156, %v2220
      %v2237 = vmax.f32 %v2157, %v2221
      %v2238 = vmax.f32 %v2158, %v2222
      %v2239 = vmax.f32 %v2159, %v2223
      %v2240 = vmax.f32 %v2160, %v2224
      %v2241 = vmax.f32 %v2161, %v2225
      %v2242 = vmax.f32 %v2162, %v2226
      %v2243 = vmax.f32 %v2163, %v2227
      %v2244 = vmax.f32 %v2164, %v2228
      %v2245 = vmax.f32 %v2165, %v2229
      %v2246 = vmax.f32 %v2166, %v2230
      %v2247 = vmax.f32 %v2167, %v2231
      %v2248 = vmax.f32 %v2168, %v2232
      %2249 = vrot.lane.b32.xlu0 %v2073, 127
      %v2250 = vpop.permute.xlu0 %2249
      %2251 = vrot.lane.b32.xlu0 %v2075, 127
      %v2252 = vpop.permute.xlu0 %2251
      %2253 = vrot.lane.b32.xlu0 %v2077, 127
      %v2254 = vpop.permute.xlu0 %2253
      %2255 = vrot.lane.b32.xlu0 %v2079, 127
      %v2256 = vpop.permute.xlu0 %2255
      %2257 = vrot.lane.b32.xlu0 %v2081, 127
      %v2258 = vpop.permute.xlu0 %2257
      %2259 = vrot.lane.b32.xlu0 %v2083, 127
      %v2260 = vpop.permute.xlu0 %2259
      %2261 = vrot.lane.b32.xlu0 %v2085, 127
      %v2262 = vpop.permute.xlu0 %2261
      %2263 = vrot.lane.b32.xlu0 %v2087, 127
      %v2264 = vpop.permute.xlu0 %2263
      %2265 = vrot.lane.b32.xlu0 %v2074, 127
      %v2266 = vpop.permute.xlu0 %2265
      %2267 = vrot.lane.b32.xlu0 %v2076, 127
      %v2268 = vpop.permute.xlu0 %2267
      %2269 = vrot.lane.b32.xlu0 %v2078, 127
      %v2270 = vpop.permute.xlu0 %2269
      %2271 = vrot.lane.b32.xlu0 %v2080, 127
      %v2272 = vpop.permute.xlu0 %2271
      %2273 = vrot.lane.b32.xlu0 %v2082, 127
      %v2274 = vpop.permute.xlu0 %2273
      %2275 = vrot.lane.b32.xlu0 %v2084, 127
      %v2276 = vpop.permute.xlu0 %2275
      %2277 = vrot.lane.b32.xlu0 %v2086, 127
      %v2278 = vpop.permute.xlu0 %2277
      %2279 = vrot.lane.b32.xlu0 %v2088, 127
      %v2280 = vpop.permute.xlu0 %2279
      %v2281 = vsel %vm965, %v2250, %v2266
      %v2282 = vsel %vm965, %v2252, %v2268
      %v2283 = vsel %vm965, %v2254, %v2270
      %v2284 = vsel %vm965, %v2256, %v2272
      %v2285 = vsel %vm965, %v2258, %v2274
      %v2286 = vsel %vm965, %v2260, %v2276
      %v2287 = vsel %vm965, %v2262, %v2278
      %v2288 = vsel %vm965, %v2264, %v2280
      %v2289 = vsel %vm965, %v2266, %v2250
      %v2290 = vsel %vm965, %v2268, %v2252
      %v2291 = vsel %vm965, %v2270, %v2254
      %v2292 = vsel %vm965, %v2272, %v2256
      %v2293 = vsel %vm965, %v2274, %v2258
      %v2294 = vsel %vm965, %v2276, %v2260
      %v2295 = vsel %vm965, %v2278, %v2262
      %v2296 = vsel %vm965, %v2280, %v2264
      %v2297 = vadd.f32 %v2281, %v983
      %v2298 = vadd.f32 %v2289, %v984
      %v2299 = vadd.f32 %v2282, %v983
      %v2300 = vadd.f32 %v2290, %v984
      %v2301 = vadd.f32 %v2283, %v983
      %v2302 = vadd.f32 %v2291, %v984
      %v2303 = vadd.f32 %v2284, %v983
      %v2304 = vadd.f32 %v2292, %v984
      %v2305 = vadd.f32 %v2285, %v983
      %v2306 = vadd.f32 %v2293, %v984
      %v2307 = vadd.f32 %v2286, %v983
      %v2308 = vadd.f32 %v2294, %v984
      %v2309 = vadd.f32 %v2287, %v983
      %v2310 = vadd.f32 %v2295, %v984
      %v2311 = vadd.f32 %v2288, %v983
      %v2312 = vadd.f32 %v2296, %v984
      %v2313 = vmax.f32 %v2233, %v2297
      %v2314 = vmax.f32 %v2234, %v2298
      %v2315 = vmax.f32 %v2235, %v2299
      %v2316 = vmax.f32 %v2236, %v2300
      %v2317 = vmax.f32 %v2237, %v2301
      %v2318 = vmax.f32 %v2238, %v2302
      %v2319 = vmax.f32 %v2239, %v2303
      %v2320 = vmax.f32 %v2240, %v2304
      %v2321 = vmax.f32 %v2241, %v2305
      %v2322 = vmax.f32 %v2242, %v2306
      %v2323 = vmax.f32 %v2243, %v2307
      %v2324 = vmax.f32 %v2244, %v2308
      %v2325 = vmax.f32 %v2245, %v2309
      %v2326 = vmax.f32 %v2246, %v2310
      %v2327 = vmax.f32 %v2247, %v2311
      %v2328 = vmax.f32 %v2248, %v2312
      %2329 = vrot.lane.b32.xlu0 %v2073, 126
      %v2330 = vpop.permute.xlu0 %2329
      %2331 = vrot.lane.b32.xlu0 %v2075, 126
      %v2332 = vpop.permute.xlu0 %2331
      %2333 = vrot.lane.b32.xlu0 %v2077, 126
      %v2334 = vpop.permute.xlu0 %2333
      %2335 = vrot.lane.b32.xlu0 %v2079, 126
      %v2336 = vpop.permute.xlu0 %2335
      %2337 = vrot.lane.b32.xlu0 %v2081, 126
      %v2338 = vpop.permute.xlu0 %2337
      %2339 = vrot.lane.b32.xlu0 %v2083, 126
      %v2340 = vpop.permute.xlu0 %2339
      %2341 = vrot.lane.b32.xlu0 %v2085, 126
      %v2342 = vpop.permute.xlu0 %2341
      %2343 = vrot.lane.b32.xlu0 %v2087, 126
      %v2344 = vpop.permute.xlu0 %2343
      %2345 = vrot.lane.b32.xlu0 %v2074, 126
      %v2346 = vpop.permute.xlu0 %2345
      %2347 = vrot.lane.b32.xlu0 %v2076, 126
      %v2348 = vpop.permute.xlu0 %2347
      %2349 = vrot.lane.b32.xlu0 %v2078, 126
      %v2350 = vpop.permute.xlu0 %2349
      %2351 = vrot.lane.b32.xlu0 %v2080, 126
      %v2352 = vpop.permute.xlu0 %2351
      %2353 = vrot.lane.b32.xlu0 %v2082, 126
      %v2354 = vpop.permute.xlu0 %2353
      %2355 = vrot.lane.b32.xlu0 %v2084, 126
      %v2356 = vpop.permute.xlu0 %2355
      %2357 = vrot.lane.b32.xlu0 %v2086, 126
      %v2358 = vpop.permute.xlu0 %2357
      %2359 = vrot.lane.b32.xlu0 %v2088, 126
      %v2360 = vpop.permute.xlu0 %2359
      %v2361 = vsel %vm1051, %v2330, %v2346
      %v2362 = vsel %vm1051, %v2332, %v2348
      %v2363 = vsel %vm1051, %v2334, %v2350
      %v2364 = vsel %vm1051, %v2336, %v2352
      %v2365 = vsel %vm1051, %v2338, %v2354
      %v2366 = vsel %vm1051, %v2340, %v2356
      %v2367 = vsel %vm1051, %v2342, %v2358
      %v2368 = vsel %vm1051, %v2344, %v2360
      %v2369 = vsel %vm1051, %v2346, %v2330
      %v2370 = vsel %vm1051, %v2348, %v2332
      %v2371 = vsel %vm1051, %v2350, %v2334
      %v2372 = vsel %vm1051, %v2352, %v2336
      %v2373 = vsel %vm1051, %v2354, %v2338
      %v2374 = vsel %vm1051, %v2356, %v2340
      %v2375 = vsel %vm1051, %v2358, %v2342
      %v2376 = vsel %vm1051, %v2360, %v2344
      %v2377 = vadd.f32 %v2361, %v1069
      %v2378 = vadd.f32 %v2369, %v1070
      %v2379 = vadd.f32 %v2362, %v1069
      %v2380 = vadd.f32 %v2370, %v1070
      %v2381 = vadd.f32 %v2363, %v1069
      %v2382 = vadd.f32 %v2371, %v1070
      %v2383 = vadd.f32 %v2364, %v1069
      %v2384 = vadd.f32 %v2372, %v1070
      %v2385 = vadd.f32 %v2365, %v1069
      %v2386 = vadd.f32 %v2373, %v1070
      %v2387 = vadd.f32 %v2366, %v1069
      %v2388 = vadd.f32 %v2374, %v1070
      %v2389 = vadd.f32 %v2367, %v1069
      %v2390 = vadd.f32 %v2375, %v1070
      %v2391 = vadd.f32 %v2368, %v1069
      %v2392 = vadd.f32 %v2376, %v1070
      %v2393 = vmax.f32 %v2313, %v2377
      %v2394 = vmax.f32 %v2314, %v2378
      %v2395 = vmax.f32 %v2315, %v2379
      %v2396 = vmax.f32 %v2316, %v2380
      %v2397 = vmax.f32 %v2317, %v2381
      %v2398 = vmax.f32 %v2318, %v2382
      %v2399 = vmax.f32 %v2319, %v2383
      %v2400 = vmax.f32 %v2320, %v2384
      %v2401 = vmax.f32 %v2321, %v2385
      %v2402 = vmax.f32 %v2322, %v2386
      %v2403 = vmax.f32 %v2323, %v2387
      %v2404 = vmax.f32 %v2324, %v2388
      %v2405 = vmax.f32 %v2325, %v2389
      %v2406 = vmax.f32 %v2326, %v2390
      %v2407 = vmax.f32 %v2327, %v2391
      %v2408 = vmax.f32 %v2328, %v2392
      %2409 = vrot.lane.b32.xlu0 %v2393, 16
      %v2410 = vpop.permute.xlu0 %2409
      %2411 = vrot.lane.b32.xlu0 %v2395, 16
      %v2412 = vpop.permute.xlu0 %2411
      %2413 = vrot.lane.b32.xlu0 %v2397, 16
      %v2414 = vpop.permute.xlu0 %2413
      %2415 = vrot.lane.b32.xlu0 %v2399, 16
      %v2416 = vpop.permute.xlu0 %2415
      %2417 = vrot.lane.b32.xlu0 %v2401, 16
      %v2418 = vpop.permute.xlu0 %2417
      %2419 = vrot.lane.b32.xlu0 %v2403, 16
      %v2420 = vpop.permute.xlu0 %2419
      %2421 = vrot.lane.b32.xlu0 %v2405, 16
      %v2422 = vpop.permute.xlu0 %2421
      %2423 = vrot.lane.b32.xlu0 %v2407, 16
      %v2424 = vpop.permute.xlu0 %2423
      %2425 = vrot.lane.b32.xlu0 %v2394, 16
      %v2426 = vpop.permute.xlu0 %2425
      %2427 = vrot.lane.b32.xlu0 %v2396, 16
      %v2428 = vpop.permute.xlu0 %2427
      %2429 = vrot.lane.b32.xlu0 %v2398, 16
      %v2430 = vpop.permute.xlu0 %2429
      %2431 = vrot.lane.b32.xlu0 %v2400, 16
      %v2432 = vpop.permute.xlu0 %2431
      %2433 = vrot.lane.b32.xlu0 %v2402, 16
      %v2434 = vpop.permute.xlu0 %2433
      %2435 = vrot.lane.b32.xlu0 %v2404, 16
      %v2436 = vpop.permute.xlu0 %2435
      %2437 = vrot.lane.b32.xlu0 %v2406, 16
      %v2438 = vpop.permute.xlu0 %2437
      %2439 = vrot.lane.b32.xlu0 %v2408, 16
      %v2440 = vpop.permute.xlu0 %2439
      %v2441 = vsel %vm1137, %v2410, %v2426
      %v2442 = vsel %vm1137, %v2412, %v2428
      %v2443 = vsel %vm1137, %v2414, %v2430
      %v2444 = vsel %vm1137, %v2416, %v2432
      %v2445 = vsel %vm1137, %v2418, %v2434
      %v2446 = vsel %vm1137, %v2420, %v2436
      %v2447 = vsel %vm1137, %v2422, %v2438
      %v2448 = vsel %vm1137, %v2424, %v2440
      %v2449 = vsel %vm1137, %v2426, %v2410
      %v2450 = vsel %vm1137, %v2428, %v2412
      %v2451 = vsel %vm1137, %v2430, %v2414
      %v2452 = vsel %vm1137, %v2432, %v2416
      %v2453 = vsel %vm1137, %v2434, %v2418
      %v2454 = vsel %vm1137, %v2436, %v2420
      %v2455 = vsel %vm1137, %v2438, %v2422
      %v2456 = vsel %vm1137, %v2440, %v2424
      %v2457 = vadd.f32 %v2449, %v1155
      %v2458 = vadd.f32 %v2441, %v1156
      %v2459 = vadd.f32 %v2450, %v1155
      %v2460 = vadd.f32 %v2442, %v1156
      %v2461 = vadd.f32 %v2451, %v1155
      %v2462 = vadd.f32 %v2443, %v1156
      %v2463 = vadd.f32 %v2452, %v1155
      %v2464 = vadd.f32 %v2444, %v1156
      %v2465 = vadd.f32 %v2453, %v1155
      %v2466 = vadd.f32 %v2445, %v1156
      %v2467 = vadd.f32 %v2454, %v1155
      %v2468 = vadd.f32 %v2446, %v1156
      %v2469 = vadd.f32 %v2455, %v1155
      %v2470 = vadd.f32 %v2447, %v1156
      %v2471 = vadd.f32 %v2456, %v1155
      %v2472 = vadd.f32 %v2448, %v1156
      %v2473 = vmax.f32 %v2393, %v2457
      %v2474 = vmax.f32 %v2394, %v2458
      %v2475 = vmax.f32 %v2395, %v2459
      %v2476 = vmax.f32 %v2396, %v2460
      %v2477 = vmax.f32 %v2397, %v2461
      %v2478 = vmax.f32 %v2398, %v2462
      %v2479 = vmax.f32 %v2399, %v2463
      %v2480 = vmax.f32 %v2400, %v2464
      %v2481 = vmax.f32 %v2401, %v2465
      %v2482 = vmax.f32 %v2402, %v2466
      %v2483 = vmax.f32 %v2403, %v2467
      %v2484 = vmax.f32 %v2404, %v2468
      %v2485 = vmax.f32 %v2405, %v2469
      %v2486 = vmax.f32 %v2406, %v2470
      %v2487 = vmax.f32 %v2407, %v2471
      %v2488 = vmax.f32 %v2408, %v2472
      %2489 = vrot.lane.b32.xlu0 %v2393, 32
      %v2490 = vpop.permute.xlu0 %2489
      %2491 = vrot.lane.b32.xlu0 %v2395, 32
      %v2492 = vpop.permute.xlu0 %2491
      %2493 = vrot.lane.b32.xlu0 %v2397, 32
      %v2494 = vpop.permute.xlu0 %2493
      %2495 = vrot.lane.b32.xlu0 %v2399, 32
      %v2496 = vpop.permute.xlu0 %2495
      %2497 = vrot.lane.b32.xlu0 %v2401, 32
      %v2498 = vpop.permute.xlu0 %2497
      %2499 = vrot.lane.b32.xlu0 %v2403, 32
      %v2500 = vpop.permute.xlu0 %2499
      %2501 = vrot.lane.b32.xlu0 %v2405, 32
      %v2502 = vpop.permute.xlu0 %2501
      %2503 = vrot.lane.b32.xlu0 %v2407, 32
      %v2504 = vpop.permute.xlu0 %2503
      %2505 = vrot.lane.b32.xlu0 %v2394, 32
      %v2506 = vpop.permute.xlu0 %2505
      %2507 = vrot.lane.b32.xlu0 %v2396, 32
      %v2508 = vpop.permute.xlu0 %2507
      %2509 = vrot.lane.b32.xlu0 %v2398, 32
      %v2510 = vpop.permute.xlu0 %2509
      %2511 = vrot.lane.b32.xlu0 %v2400, 32
      %v2512 = vpop.permute.xlu0 %2511
      %2513 = vrot.lane.b32.xlu0 %v2402, 32
      %v2514 = vpop.permute.xlu0 %2513
      %2515 = vrot.lane.b32.xlu0 %v2404, 32
      %v2516 = vpop.permute.xlu0 %2515
      %2517 = vrot.lane.b32.xlu0 %v2406, 32
      %v2518 = vpop.permute.xlu0 %2517
      %2519 = vrot.lane.b32.xlu0 %v2408, 32
      %v2520 = vpop.permute.xlu0 %2519
      %v2521 = vsel %vm1223, %v2490, %v2506
      %v2522 = vsel %vm1223, %v2492, %v2508
      %v2523 = vsel %vm1223, %v2494, %v2510
      %v2524 = vsel %vm1223, %v2496, %v2512
      %v2525 = vsel %vm1223, %v2498, %v2514
      %v2526 = vsel %vm1223, %v2500, %v2516
      %v2527 = vsel %vm1223, %v2502, %v2518
      %v2528 = vsel %vm1223, %v2504, %v2520
      %v2529 = vsel %vm1223, %v2506, %v2490
      %v2530 = vsel %vm1223, %v2508, %v2492
      %v2531 = vsel %vm1223, %v2510, %v2494
      %v2532 = vsel %vm1223, %v2512, %v2496
      %v2533 = vsel %vm1223, %v2514, %v2498
      %v2534 = vsel %vm1223, %v2516, %v2500
      %v2535 = vsel %vm1223, %v2518, %v2502
      %v2536 = vsel %vm1223, %v2520, %v2504
      %v2537 = vadd.f32 %v2529, %v1241
      %v2538 = vadd.f32 %v2521, %v1242
      %v2539 = vadd.f32 %v2530, %v1241
      %v2540 = vadd.f32 %v2522, %v1242
      %v2541 = vadd.f32 %v2531, %v1241
      %v2542 = vadd.f32 %v2523, %v1242
      %v2543 = vadd.f32 %v2532, %v1241
      %v2544 = vadd.f32 %v2524, %v1242
      %v2545 = vadd.f32 %v2533, %v1241
      %v2546 = vadd.f32 %v2525, %v1242
      %v2547 = vadd.f32 %v2534, %v1241
      %v2548 = vadd.f32 %v2526, %v1242
      %v2549 = vadd.f32 %v2535, %v1241
      %v2550 = vadd.f32 %v2527, %v1242
      %v2551 = vadd.f32 %v2536, %v1241
      %v2552 = vadd.f32 %v2528, %v1242
      %v2553 = vmax.f32 %v2473, %v2537
      %v2554 = vmax.f32 %v2474, %v2538
      %v2555 = vmax.f32 %v2475, %v2539
      %v2556 = vmax.f32 %v2476, %v2540
      %v2557 = vmax.f32 %v2477, %v2541
      %v2558 = vmax.f32 %v2478, %v2542
      %v2559 = vmax.f32 %v2479, %v2543
      %v2560 = vmax.f32 %v2480, %v2544
      %v2561 = vmax.f32 %v2481, %v2545
      %v2562 = vmax.f32 %v2482, %v2546
      %v2563 = vmax.f32 %v2483, %v2547
      %v2564 = vmax.f32 %v2484, %v2548
      %v2565 = vmax.f32 %v2485, %v2549
      %v2566 = vmax.f32 %v2486, %v2550
      %v2567 = vmax.f32 %v2487, %v2551
      %v2568 = vmax.f32 %v2488, %v2552
      %2569 = vrot.lane.b32.xlu0 %v2393, 112
      %v2570 = vpop.permute.xlu0 %2569
      %2571 = vrot.lane.b32.xlu0 %v2395, 112
      %v2572 = vpop.permute.xlu0 %2571
      %2573 = vrot.lane.b32.xlu0 %v2397, 112
      %v2574 = vpop.permute.xlu0 %2573
      %2575 = vrot.lane.b32.xlu0 %v2399, 112
      %v2576 = vpop.permute.xlu0 %2575
      %2577 = vrot.lane.b32.xlu0 %v2401, 112
      %v2578 = vpop.permute.xlu0 %2577
      %2579 = vrot.lane.b32.xlu0 %v2403, 112
      %v2580 = vpop.permute.xlu0 %2579
      %2581 = vrot.lane.b32.xlu0 %v2405, 112
      %v2582 = vpop.permute.xlu0 %2581
      %2583 = vrot.lane.b32.xlu0 %v2407, 112
      %v2584 = vpop.permute.xlu0 %2583
      %2585 = vrot.lane.b32.xlu0 %v2394, 112
      %v2586 = vpop.permute.xlu0 %2585
      %2587 = vrot.lane.b32.xlu0 %v2396, 112
      %v2588 = vpop.permute.xlu0 %2587
      %2589 = vrot.lane.b32.xlu0 %v2398, 112
      %v2590 = vpop.permute.xlu0 %2589
      %2591 = vrot.lane.b32.xlu0 %v2400, 112
      %v2592 = vpop.permute.xlu0 %2591
      %2593 = vrot.lane.b32.xlu0 %v2402, 112
      %v2594 = vpop.permute.xlu0 %2593
      %2595 = vrot.lane.b32.xlu0 %v2404, 112
      %v2596 = vpop.permute.xlu0 %2595
      %2597 = vrot.lane.b32.xlu0 %v2406, 112
      %v2598 = vpop.permute.xlu0 %2597
      %2599 = vrot.lane.b32.xlu0 %v2408, 112
      %v2600 = vpop.permute.xlu0 %2599
      %v2601 = vsel %vm1309, %v2570, %v2586
      %v2602 = vsel %vm1309, %v2572, %v2588
      %v2603 = vsel %vm1309, %v2574, %v2590
      %v2604 = vsel %vm1309, %v2576, %v2592
      %v2605 = vsel %vm1309, %v2578, %v2594
      %v2606 = vsel %vm1309, %v2580, %v2596
      %v2607 = vsel %vm1309, %v2582, %v2598
      %v2608 = vsel %vm1309, %v2584, %v2600
      %v2609 = vsel %vm1309, %v2586, %v2570
      %v2610 = vsel %vm1309, %v2588, %v2572
      %v2611 = vsel %vm1309, %v2590, %v2574
      %v2612 = vsel %vm1309, %v2592, %v2576
      %v2613 = vsel %vm1309, %v2594, %v2578
      %v2614 = vsel %vm1309, %v2596, %v2580
      %v2615 = vsel %vm1309, %v2598, %v2582
      %v2616 = vsel %vm1309, %v2600, %v2584
      %v2617 = vadd.f32 %v2601, %v1327
      %v2618 = vadd.f32 %v2609, %v1328
      %v2619 = vadd.f32 %v2602, %v1327
      %v2620 = vadd.f32 %v2610, %v1328
      %v2621 = vadd.f32 %v2603, %v1327
      %v2622 = vadd.f32 %v2611, %v1328
      %v2623 = vadd.f32 %v2604, %v1327
      %v2624 = vadd.f32 %v2612, %v1328
      %v2625 = vadd.f32 %v2605, %v1327
      %v2626 = vadd.f32 %v2613, %v1328
      %v2627 = vadd.f32 %v2606, %v1327
      %v2628 = vadd.f32 %v2614, %v1328
      %v2629 = vadd.f32 %v2607, %v1327
      %v2630 = vadd.f32 %v2615, %v1328
      %v2631 = vadd.f32 %v2608, %v1327
      %v2632 = vadd.f32 %v2616, %v1328
      %v2633 = vmax.f32 %v2553, %v2617
      %v2634 = vmax.f32 %v2554, %v2618
      %v2635 = vmax.f32 %v2555, %v2619
      %v2636 = vmax.f32 %v2556, %v2620
      %v2637 = vmax.f32 %v2557, %v2621
      %v2638 = vmax.f32 %v2558, %v2622
      %v2639 = vmax.f32 %v2559, %v2623
      %v2640 = vmax.f32 %v2560, %v2624
      %v2641 = vmax.f32 %v2561, %v2625
      %v2642 = vmax.f32 %v2562, %v2626
      %v2643 = vmax.f32 %v2563, %v2627
      %v2644 = vmax.f32 %v2564, %v2628
      %v2645 = vmax.f32 %v2565, %v2629
      %v2646 = vmax.f32 %v2566, %v2630
      %v2647 = vmax.f32 %v2567, %v2631
      %v2648 = vmax.f32 %v2568, %v2632
      %2649 = vrot.lane.b32.xlu0 %v2393, 96
      %v2650 = vpop.permute.xlu0 %2649
      %2651 = vrot.lane.b32.xlu0 %v2395, 96
      %v2652 = vpop.permute.xlu0 %2651
      %2653 = vrot.lane.b32.xlu0 %v2397, 96
      %v2654 = vpop.permute.xlu0 %2653
      %2655 = vrot.lane.b32.xlu0 %v2399, 96
      %v2656 = vpop.permute.xlu0 %2655
      %2657 = vrot.lane.b32.xlu0 %v2401, 96
      %v2658 = vpop.permute.xlu0 %2657
      %2659 = vrot.lane.b32.xlu0 %v2403, 96
      %v2660 = vpop.permute.xlu0 %2659
      %2661 = vrot.lane.b32.xlu0 %v2405, 96
      %v2662 = vpop.permute.xlu0 %2661
      %2663 = vrot.lane.b32.xlu0 %v2407, 96
      %v2664 = vpop.permute.xlu0 %2663
      %2665 = vrot.lane.b32.xlu0 %v2394, 96
      %v2666 = vpop.permute.xlu0 %2665
      %2667 = vrot.lane.b32.xlu0 %v2396, 96
      %v2668 = vpop.permute.xlu0 %2667
      %2669 = vrot.lane.b32.xlu0 %v2398, 96
      %v2670 = vpop.permute.xlu0 %2669
      %2671 = vrot.lane.b32.xlu0 %v2400, 96
      %v2672 = vpop.permute.xlu0 %2671
      %2673 = vrot.lane.b32.xlu0 %v2402, 96
      %v2674 = vpop.permute.xlu0 %2673
      %2675 = vrot.lane.b32.xlu0 %v2404, 96
      %v2676 = vpop.permute.xlu0 %2675
      %2677 = vrot.lane.b32.xlu0 %v2406, 96
      %v2678 = vpop.permute.xlu0 %2677
      %2679 = vrot.lane.b32.xlu0 %v2408, 96
      %v2680 = vpop.permute.xlu0 %2679
      %v2681 = vsel %vm1395, %v2650, %v2666
      %v2682 = vsel %vm1395, %v2652, %v2668
      %v2683 = vsel %vm1395, %v2654, %v2670
      %v2684 = vsel %vm1395, %v2656, %v2672
      %v2685 = vsel %vm1395, %v2658, %v2674
      %v2686 = vsel %vm1395, %v2660, %v2676
      %v2687 = vsel %vm1395, %v2662, %v2678
      %v2688 = vsel %vm1395, %v2664, %v2680
      %v2689 = vsel %vm1395, %v2666, %v2650
      %v2690 = vsel %vm1395, %v2668, %v2652
      %v2691 = vsel %vm1395, %v2670, %v2654
      %v2692 = vsel %vm1395, %v2672, %v2656
      %v2693 = vsel %vm1395, %v2674, %v2658
      %v2694 = vsel %vm1395, %v2676, %v2660
      %v2695 = vsel %vm1395, %v2678, %v2662
      %v2696 = vsel %vm1395, %v2680, %v2664
      %v2697 = vadd.f32 %v2681, %v1413
      %v2698 = vadd.f32 %v2689, %v1414
      %v2699 = vadd.f32 %v2682, %v1413
      %v2700 = vadd.f32 %v2690, %v1414
      %v2701 = vadd.f32 %v2683, %v1413
      %v2702 = vadd.f32 %v2691, %v1414
      %v2703 = vadd.f32 %v2684, %v1413
      %v2704 = vadd.f32 %v2692, %v1414
      %v2705 = vadd.f32 %v2685, %v1413
      %v2706 = vadd.f32 %v2693, %v1414
      %v2707 = vadd.f32 %v2686, %v1413
      %v2708 = vadd.f32 %v2694, %v1414
      %v2709 = vadd.f32 %v2687, %v1413
      %v2710 = vadd.f32 %v2695, %v1414
      %v2711 = vadd.f32 %v2688, %v1413
      %v2712 = vadd.f32 %v2696, %v1414
      %v2713 = vmax.f32 %v2633, %v2697
      %v2714 = vmax.f32 %v2634, %v2698
      %v2715 = vmax.f32 %v2635, %v2699
      %v2716 = vmax.f32 %v2636, %v2700
      %v2717 = vmax.f32 %v2637, %v2701
      %v2718 = vmax.f32 %v2638, %v2702
      %v2719 = vmax.f32 %v2639, %v2703
      %v2720 = vmax.f32 %v2640, %v2704
      %v2721 = vmax.f32 %v2641, %v2705
      %v2722 = vmax.f32 %v2642, %v2706
      %v2723 = vmax.f32 %v2643, %v2707
      %v2724 = vmax.f32 %v2644, %v2708
      %v2725 = vmax.f32 %v2645, %v2709
      %v2726 = vmax.f32 %v2646, %v2710
      %v2727 = vmax.f32 %v2647, %v2711
      %v2728 = vmax.f32 %v2648, %v2712
      %v2729 = vld [vmem:[%s3] sm:$0xf]
      %v2730 = vld [vmem:[%s3 + $0x4] sm:$0xf]
      %v2731 = vld [vmem:[%s3 + $0x8] sm:$0xf]
      %v2732 = vld [vmem:[%s3 + $0xc] sm:$0xf]
      %v2733 = vld [vmem:[%s3 + $0x10] sm:$0xf]
      %v2734 = vld [vmem:[%s3 + $0x14] sm:$0xf]
      %v2735 = vld [vmem:[%s3 + $0x18] sm:$0xf]
      %v2736 = vld [vmem:[%s3 + $0x1c] sm:$0xf]
      %v2737 = vld [vmem:[%s3 + $0x20] sm:$0xf]
      %v2738 = vld [vmem:[%s3 + $0x24] sm:$0xf]
      %v2739 = vld [vmem:[%s3 + $0x28] sm:$0xf]
      %v2740 = vld [vmem:[%s3 + $0x2c] sm:$0xf]
      %v2741 = vld [vmem:[%s3 + $0x30] sm:$0xf]
      %v2742 = vld [vmem:[%s3 + $0x34] sm:$0xf]
      %v2743 = vld [vmem:[%s3 + $0x38] sm:$0xf]
      %v2744 = vld [vmem:[%s3 + $0x3c] sm:$0xf]
      %v2745 = vpack.c.bf16 %v730, %v728
      %v2746 = vpack.c.bf16 %v731, %v729
      %v2747 = vpack.c.bf16 %v734, %v732
      %v2748 = vpack.c.bf16 %v735, %v733
      %v2749 = vpack.c.bf16 %v738, %v736
      %v2750 = vpack.c.bf16 %v739, %v737
      %v2751 = vpack.c.bf16 %v742, %v740
      %v2752 = vpack.c.bf16 %v743, %v741
      %s2753 = scalar_lea.vmem %s3, 64
      %v2754 = vld [vmem:[%s2753] sm:$0xf]
      %v2755 = vld [vmem:[%s2753 + $0x4] sm:$0xf]
      %v2756 = vld [vmem:[%s2753 + $0x8] sm:$0xf]
      %v2757 = vld [vmem:[%s2753 + $0xc] sm:$0xf]
      %v2758 = vld [vmem:[%s2753 + $0x10] sm:$0xf]
      %v2759 = vld [vmem:[%s2753 + $0x14] sm:$0xf]
      %v2760 = vld [vmem:[%s2753 + $0x18] sm:$0xf]
      %v2761 = vld [vmem:[%s2753 + $0x1c] sm:$0xf]
      %v2762 = vld [vmem:[%s2753 + $0x20] sm:$0xf]
      %v2763 = vld [vmem:[%s2753 + $0x24] sm:$0xf]
      %v2764 = vld [vmem:[%s2753 + $0x28] sm:$0xf]
      %v2765 = vld [vmem:[%s2753 + $0x2c] sm:$0xf]
      %v2766 = vld [vmem:[%s2753 + $0x30] sm:$0xf]
      %v2767 = vld [vmem:[%s2753 + $0x34] sm:$0xf]
      %v2768 = vld [vmem:[%s2753 + $0x38] sm:$0xf]
      %v2769 = vld [vmem:[%s2753 + $0x3c] sm:$0xf]
      %v2770 = vpack.c.bf16 %v1435, %v1433
      %v2771 = vpack.c.bf16 %v1436, %v1434
      %v2772 = vpack.c.bf16 %v1439, %v1437
      %v2773 = vpack.c.bf16 %v1440, %v1438
      %v2774 = vpack.c.bf16 %v1443, %v1441
      %v2775 = vpack.c.bf16 %v1444, %v1442
      %v2776 = vpack.c.bf16 %v1447, %v1445
      %v2777 = vpack.c.bf16 %v1448, %v1446
      %v2794 = vunpack.c.l.b16 %v2754
      %v2795 = vunpack.c.l.b16 %v2755
      %v2796 = vunpack.c.l.b16 %v2756
      %v2797 = vunpack.c.l.b16 %v2757
      %v2798 = vunpack.c.l.b16 %v2758
      %v2799 = vunpack.c.l.b16 %v2759
      %v2800 = vunpack.c.l.b16 %v2760
      %v2801 = vunpack.c.l.b16 %v2761
      %v2802 = vunpack.c.l.b16 %v2762
      %v2803 = vunpack.c.l.b16 %v2763
      %v2804 = vunpack.c.l.b16 %v2764
      %v2805 = vunpack.c.l.b16 %v2765
      %v2806 = vunpack.c.l.b16 %v2766
      %v2807 = vunpack.c.l.b16 %v2767
      %v2808 = vunpack.c.l.b16 %v2768
      %v2809 = vunpack.c.l.b16 %v2769
      %v2810 = vpack.c.b16 %v2795, %v2794
      %v2811 = vpack.c.b16 %v2797, %v2796
      %v2812 = vpack.c.b16 %v2799, %v2798
      %v2813 = vpack.c.b16 %v2801, %v2800
      %v2814 = vpack.c.b16 %v2803, %v2802
      %v2815 = vpack.c.b16 %v2805, %v2804
      %v2816 = vpack.c.b16 %v2807, %v2806
      %v2817 = vpack.c.b16 %v2809, %v2808
      %v2819 = vsel %vm353, %v2810, 0
      %v2822 = vsel %vm353, %v2811, 0
      %v2825 = vsel %vm353, %v2812, 0
      %v2828 = vsel %vm353, %v2813, 0
      %v2831 = vsel %vm353, %v2814, 0
      %v2834 = vsel %vm353, %v2815, 0
      %v2837 = vsel %vm353, %v2816, 0
      %v2840 = vsel %vm353, %v2817, 0
      %2842 = vmatpush.bf16.msra.mxu0 0
      %2843 = vmatpush.bf16.msra.mxu0 0
      %2844 = vmatpush.bf16.msra.mxu0 0
      %2845 = vmatpush.bf16.msra.mxu0 0
      %2846 = vmatpush.bf16.msra.mxu0 %v2776
      %2847 = vmatpush.bf16.msra.mxu0 %v2774
      %2848 = vmatpush.bf16.msra.mxu0 %v2772
      %2849 = vmatpush.bf16.msra.mxu0 %v2770
      %2850 = vmatmul.bf16.gmra.mxu0 %v2819
      %v2851 = vpop.f32.mrf.mxu0
      %v2852 = vadd.f32 0.0, %v2851
      %v2853 = vpop.f32.mrf.mxu0
      %v2854 = vadd.f32 0.0, %v2853
      %2855 = vmatmul.bf16.gmra.mxu0 %v2822
      %v2856 = vpop.f32.mrf.mxu0
      %v2857 = vadd.f32 0.0, %v2856
      %v2858 = vpop.f32.mrf.mxu0
      %v2859 = vadd.f32 0.0, %v2858
      %2860 = vmatmul.bf16.gmra.mxu0 %v2825
      %v2861 = vpop.f32.mrf.mxu0
      %v2862 = vadd.f32 0.0, %v2861
      %v2863 = vpop.f32.mrf.mxu0
      %v2864 = vadd.f32 0.0, %v2863
      %2865 = vmatmul.bf16.gmra.mxu0 %v2828
      %v2866 = vpop.f32.mrf.mxu0
      %v2867 = vadd.f32 0.0, %v2866
      %v2868 = vpop.f32.mrf.mxu0
      %v2869 = vadd.f32 0.0, %v2868
      %2870 = vmatmul.bf16.gmra.mxu0 %v2831
      %v2871 = vpop.f32.mrf.mxu0
      %v2872 = vadd.f32 0.0, %v2871
      %v2873 = vpop.f32.mrf.mxu0
      %v2874 = vadd.f32 0.0, %v2873
      %2875 = vmatmul.bf16.gmra.mxu0 %v2834
      %v2876 = vpop.f32.mrf.mxu0
      %v2877 = vadd.f32 0.0, %v2876
      %v2878 = vpop.f32.mrf.mxu0
      %v2879 = vadd.f32 0.0, %v2878
      %2880 = vmatmul.bf16.gmra.mxu0 %v2837
      %v2881 = vpop.f32.mrf.mxu0
      %v2882 = vadd.f32 0.0, %v2881
      %v2883 = vpop.f32.mrf.mxu0
      %v2884 = vadd.f32 0.0, %v2883
      %2885 = vmatmul.bf16.gmra.mxu0 %v2840
      %v2886 = vpop.f32.mrf.mxu0
      %v2887 = vadd.f32 0.0, %v2886
      %v2888 = vpop.f32.mrf.mxu0
      %v2889 = vadd.f32 0.0, %v2888
      %2890 = vdwg.mxu0
      %2891 = vmatpush.bf16.msra.mxu0 0
      %2892 = vmatpush.bf16.msra.mxu0 0
      %2893 = vmatpush.bf16.msra.mxu0 0
      %2894 = vmatpush.bf16.msra.mxu0 0
      %2895 = vmatpush.bf16.msra.mxu0 %v2777
      %2896 = vmatpush.bf16.msra.mxu0 %v2775
      %2897 = vmatpush.bf16.msra.mxu0 %v2773
      %2898 = vmatpush.bf16.msra.mxu0 %v2771
      %2899 = vmatmul.bf16.gmra.mxu0 %v2819
      %v2900 = vpop.f32.mrf.mxu0
      %v2901 = vadd.f32 0.0, %v2900
      %v2902 = vpop.f32.mrf.mxu0
      %v2903 = vadd.f32 0.0, %v2902
      %2904 = vmatmul.bf16.gmra.mxu0 %v2822
      %v2905 = vpop.f32.mrf.mxu0
      %v2906 = vadd.f32 0.0, %v2905
      %v2907 = vpop.f32.mrf.mxu0
      %v2908 = vadd.f32 0.0, %v2907
      %2909 = vmatmul.bf16.gmra.mxu0 %v2825
      %v2910 = vpop.f32.mrf.mxu0
      %v2911 = vadd.f32 0.0, %v2910
      %v2912 = vpop.f32.mrf.mxu0
      %v2913 = vadd.f32 0.0, %v2912
      %2914 = vmatmul.bf16.gmra.mxu0 %v2828
      %v2915 = vpop.f32.mrf.mxu0
      %v2916 = vadd.f32 0.0, %v2915
      %v2917 = vpop.f32.mrf.mxu0
      %v2918 = vadd.f32 0.0, %v2917
      %2919 = vmatmul.bf16.gmra.mxu0 %v2831
      %v2920 = vpop.f32.mrf.mxu0
      %v2921 = vadd.f32 0.0, %v2920
      %v2922 = vpop.f32.mrf.mxu0
      %v2923 = vadd.f32 0.0, %v2922
      %2924 = vmatmul.bf16.gmra.mxu0 %v2834
      %v2925 = vpop.f32.mrf.mxu0
      %v2926 = vadd.f32 0.0, %v2925
      %v2927 = vpop.f32.mrf.mxu0
      %v2928 = vadd.f32 0.0, %v2927
      %2929 = vmatmul.bf16.gmra.mxu0 %v2837
      %v2930 = vpop.f32.mrf.mxu0
      %v2931 = vadd.f32 0.0, %v2930
      %v2932 = vpop.f32.mrf.mxu0
      %v2933 = vadd.f32 0.0, %v2932
      %2934 = vmatmul.bf16.gmra.mxu0 %v2840
      %v2935 = vpop.f32.mrf.mxu0
      %v2936 = vadd.f32 0.0, %v2935
      %v2937 = vpop.f32.mrf.mxu0
      %v2938 = vadd.f32 0.0, %v2937
      %2939 = vdwg.mxu0
      %v2956 = vunpack.c.l.b16 %v2729
      %v2957 = vunpack.c.l.b16 %v2730
      %v2958 = vunpack.c.l.b16 %v2731
      %v2959 = vunpack.c.l.b16 %v2732
      %v2960 = vunpack.c.l.b16 %v2733
      %v2961 = vunpack.c.l.b16 %v2734
      %v2962 = vunpack.c.l.b16 %v2735
      %v2963 = vunpack.c.l.b16 %v2736
      %v2964 = vunpack.c.l.b16 %v2737
      %v2965 = vunpack.c.l.b16 %v2738
      %v2966 = vunpack.c.l.b16 %v2739
      %v2967 = vunpack.c.l.b16 %v2740
      %v2968 = vunpack.c.l.b16 %v2741
      %v2969 = vunpack.c.l.b16 %v2742
      %v2970 = vunpack.c.l.b16 %v2743
      %v2971 = vunpack.c.l.b16 %v2744
      %v2972 = vpack.c.b16 %v2957, %v2956
      %v2973 = vpack.c.b16 %v2959, %v2958
      %v2974 = vpack.c.b16 %v2961, %v2960
      %v2975 = vpack.c.b16 %v2963, %v2962
      %v2976 = vpack.c.b16 %v2965, %v2964
      %v2977 = vpack.c.b16 %v2967, %v2966
      %v2978 = vpack.c.b16 %v2969, %v2968
      %v2979 = vpack.c.b16 %v2971, %v2970
      %v2981 = vsel %vm353, %v2972, 0
      %v2984 = vsel %vm353, %v2973, 0
      %v2987 = vsel %vm353, %v2974, 0
      %v2990 = vsel %vm353, %v2975, 0
      %v2993 = vsel %vm353, %v2976, 0
      %v2996 = vsel %vm353, %v2977, 0
      %v2999 = vsel %vm353, %v2978, 0
      %v3002 = vsel %vm353, %v2979, 0
      %3004 = vmatpush.bf16.msra.mxu0 0
      %3005 = vmatpush.bf16.msra.mxu0 0
      %3006 = vmatpush.bf16.msra.mxu0 0
      %3007 = vmatpush.bf16.msra.mxu0 0
      %3008 = vmatpush.bf16.msra.mxu0 %v2751
      %3009 = vmatpush.bf16.msra.mxu0 %v2749
      %3010 = vmatpush.bf16.msra.mxu0 %v2747
      %3011 = vmatpush.bf16.msra.mxu0 %v2745
      %3012 = vmatmul.bf16.gmra.mxu0 %v2981
      %v3013 = vpop.f32.mrf.mxu0
      %v3014 = vadd.f32 %v2852, %v3013
      %v3015 = vpop.f32.mrf.mxu0
      %v3016 = vadd.f32 %v2854, %v3015
      %3017 = vmatmul.bf16.gmra.mxu0 %v2984
      %v3018 = vpop.f32.mrf.mxu0
      %v3019 = vadd.f32 %v2857, %v3018
      %v3020 = vpop.f32.mrf.mxu0
      %v3021 = vadd.f32 %v2859, %v3020
      %3022 = vmatmul.bf16.gmra.mxu0 %v2987
      %v3023 = vpop.f32.mrf.mxu0
      %v3024 = vadd.f32 %v2862, %v3023
      %v3025 = vpop.f32.mrf.mxu0
      %v3026 = vadd.f32 %v2864, %v3025
      %3027 = vmatmul.bf16.gmra.mxu0 %v2990
      %v3028 = vpop.f32.mrf.mxu0
      %v3029 = vadd.f32 %v2867, %v3028
      %v3030 = vpop.f32.mrf.mxu0
      %v3031 = vadd.f32 %v2869, %v3030
      %3032 = vmatmul.bf16.gmra.mxu0 %v2993
      %v3033 = vpop.f32.mrf.mxu0
      %v3034 = vadd.f32 %v2872, %v3033
      %v3035 = vpop.f32.mrf.mxu0
      %v3036 = vadd.f32 %v2874, %v3035
      %3037 = vmatmul.bf16.gmra.mxu0 %v2996
      %v3038 = vpop.f32.mrf.mxu0
      %v3039 = vadd.f32 %v2877, %v3038
      %v3040 = vpop.f32.mrf.mxu0
      %v3041 = vadd.f32 %v2879, %v3040
      %3042 = vmatmul.bf16.gmra.mxu0 %v2999
      %v3043 = vpop.f32.mrf.mxu0
      %v3044 = vadd.f32 %v2882, %v3043
      %v3045 = vpop.f32.mrf.mxu0
      %v3046 = vadd.f32 %v2884, %v3045
      %3047 = vmatmul.bf16.gmra.mxu0 %v3002
      %v3048 = vpop.f32.mrf.mxu0
      %v3049 = vadd.f32 %v2887, %v3048
      %v3050 = vpop.f32.mrf.mxu0
      %v3051 = vadd.f32 %v2889, %v3050
      %3052 = vdwg.mxu0
      %3053 = vmatpush.bf16.msra.mxu0 0
      %3054 = vmatpush.bf16.msra.mxu0 0
      %3055 = vmatpush.bf16.msra.mxu0 0
      %3056 = vmatpush.bf16.msra.mxu0 0
      %3057 = vmatpush.bf16.msra.mxu0 %v2752
      %3058 = vmatpush.bf16.msra.mxu0 %v2750
      %3059 = vmatpush.bf16.msra.mxu0 %v2748
      %3060 = vmatpush.bf16.msra.mxu0 %v2746
      %3061 = vmatmul.bf16.gmra.mxu0 %v2981
      %v3062 = vpop.f32.mrf.mxu0
      %v3063 = vadd.f32 %v2901, %v3062
      %v3064 = vpop.f32.mrf.mxu0
      %v3065 = vadd.f32 %v2903, %v3064
      %3066 = vmatmul.bf16.gmra.mxu0 %v2984
      %v3067 = vpop.f32.mrf.mxu0
      %v3068 = vadd.f32 %v2906, %v3067
      %v3069 = vpop.f32.mrf.mxu0
      %v3070 = vadd.f32 %v2908, %v3069
      %3071 = vmatmul.bf16.gmra.mxu0 %v2987
      %v3072 = vpop.f32.mrf.mxu0
      %v3073 = vadd.f32 %v2911, %v3072
      %v3074 = vpop.f32.mrf.mxu0
      %v3075 = vadd.f32 %v2913, %v3074
      %3076 = vmatmul.bf16.gmra.mxu0 %v2990
      %v3077 = vpop.f32.mrf.mxu0
      %v3078 = vadd.f32 %v2916, %v3077
      %v3079 = vpop.f32.mrf.mxu0
      %v3080 = vadd.f32 %v2918, %v3079
      %3081 = vmatmul.bf16.gmra.mxu0 %v2993
      %v3082 = vpop.f32.mrf.mxu0
      %v3083 = vadd.f32 %v2921, %v3082
      %v3084 = vpop.f32.mrf.mxu0
      %v3085 = vadd.f32 %v2923, %v3084
      %3086 = vmatmul.bf16.gmra.mxu0 %v2996
      %v3087 = vpop.f32.mrf.mxu0
      %v3088 = vadd.f32 %v2926, %v3087
      %v3089 = vpop.f32.mrf.mxu0
      %v3090 = vadd.f32 %v2928, %v3089
      %3091 = vmatmul.bf16.gmra.mxu0 %v2999
      %v3092 = vpop.f32.mrf.mxu0
      %v3093 = vadd.f32 %v2931, %v3092
      %v3094 = vpop.f32.mrf.mxu0
      %v3095 = vadd.f32 %v2933, %v3094
      %3096 = vmatmul.bf16.gmra.mxu0 %v3002
      %v3097 = vpop.f32.mrf.mxu0
      %v3098 = vadd.f32 %v2936, %v3097
      %v3099 = vpop.f32.mrf.mxu0
      %v3100 = vadd.f32 %v2938, %v3099
      %3101 = vdwg.mxu0
      %s3102 = scalar_lea.vmem %s3, 128
      %v3103 = vld [vmem:[%s3102] sm:$0xf]
      %v3104 = vld [vmem:[%s3102 + $0x4] sm:$0xf]
      %v3105 = vld [vmem:[%s3102 + $0x8] sm:$0xf]
      %v3106 = vld [vmem:[%s3102 + $0xc] sm:$0xf]
      %v3107 = vld [vmem:[%s3102 + $0x10] sm:$0xf]
      %v3108 = vld [vmem:[%s3102 + $0x14] sm:$0xf]
      %v3109 = vld [vmem:[%s3102 + $0x18] sm:$0xf]
      %v3110 = vld [vmem:[%s3102 + $0x1c] sm:$0xf]
      %v3111 = vld [vmem:[%s3102 + $0x20] sm:$0xf]
      %v3112 = vld [vmem:[%s3102 + $0x24] sm:$0xf]
      %v3113 = vld [vmem:[%s3102 + $0x28] sm:$0xf]
      %v3114 = vld [vmem:[%s3102 + $0x2c] sm:$0xf]
      %v3115 = vld [vmem:[%s3102 + $0x30] sm:$0xf]
      %v3116 = vld [vmem:[%s3102 + $0x34] sm:$0xf]
      %v3117 = vld [vmem:[%s3102 + $0x38] sm:$0xf]
      %v3118 = vld [vmem:[%s3102 + $0x3c] sm:$0xf]
      %v3119 = vpack.c.bf16 %v2075, %v2073
      %v3120 = vpack.c.bf16 %v2076, %v2074
      %v3121 = vpack.c.bf16 %v2079, %v2077
      %v3122 = vpack.c.bf16 %v2080, %v2078
      %v3123 = vpack.c.bf16 %v2083, %v2081
      %v3124 = vpack.c.bf16 %v2084, %v2082
      %v3125 = vpack.c.bf16 %v2087, %v2085
      %v3126 = vpack.c.bf16 %v2088, %v2086
      %v3143 = vunpack.c.l.b16 %v3103
      %v3144 = vunpack.c.l.b16 %v3104
      %v3145 = vunpack.c.l.b16 %v3105
      %v3146 = vunpack.c.l.b16 %v3106
      %v3147 = vunpack.c.l.b16 %v3107
      %v3148 = vunpack.c.l.b16 %v3108
      %v3149 = vunpack.c.l.b16 %v3109
      %v3150 = vunpack.c.l.b16 %v3110
      %v3151 = vunpack.c.l.b16 %v3111
      %v3152 = vunpack.c.l.b16 %v3112
      %v3153 = vunpack.c.l.b16 %v3113
      %v3154 = vunpack.c.l.b16 %v3114
      %v3155 = vunpack.c.l.b16 %v3115
      %v3156 = vunpack.c.l.b16 %v3116
      %v3157 = vunpack.c.l.b16 %v3117
      %v3158 = vunpack.c.l.b16 %v3118
      %v3159 = vpack.c.b16 %v3144, %v3143
      %v3160 = vpack.c.b16 %v3146, %v3145
      %v3161 = vpack.c.b16 %v3148, %v3147
      %v3162 = vpack.c.b16 %v3150, %v3149
      %v3163 = vpack.c.b16 %v3152, %v3151
      %v3164 = vpack.c.b16 %v3154, %v3153
      %v3165 = vpack.c.b16 %v3156, %v3155
      %v3166 = vpack.c.b16 %v3158, %v3157
      %v3168 = vsel %vm353, %v3159, 0
      %v3171 = vsel %vm353, %v3160, 0
      %v3174 = vsel %vm353, %v3161, 0
      %v3177 = vsel %vm353, %v3162, 0
      %v3180 = vsel %vm353, %v3163, 0
      %v3183 = vsel %vm353, %v3164, 0
      %v3186 = vsel %vm353, %v3165, 0
      %v3189 = vsel %vm353, %v3166, 0
      %3191 = vmatpush.bf16.msra.mxu0 0
      %3192 = vmatpush.bf16.msra.mxu0 0
      %3193 = vmatpush.bf16.msra.mxu0 0
      %3194 = vmatpush.bf16.msra.mxu0 0
      %3195 = vmatpush.bf16.msra.mxu0 %v3125
      %3196 = vmatpush.bf16.msra.mxu0 %v3123
      %3197 = vmatpush.bf16.msra.mxu0 %v3121
      %3198 = vmatpush.bf16.msra.mxu0 %v3119
      %3199 = vmatmul.bf16.gmra.mxu0 %v3168
      %v3200 = vpop.f32.mrf.mxu0
      %v3201 = vadd.f32 0.0, %v3200
      %v3202 = vpop.f32.mrf.mxu0
      %v3203 = vadd.f32 0.0, %v3202
      %3204 = vmatmul.bf16.gmra.mxu0 %v3171
      %v3205 = vpop.f32.mrf.mxu0
      %v3206 = vadd.f32 0.0, %v3205
      %v3207 = vpop.f32.mrf.mxu0
      %v3208 = vadd.f32 0.0, %v3207
      %3209 = vmatmul.bf16.gmra.mxu0 %v3174
      %v3210 = vpop.f32.mrf.mxu0
      %v3211 = vadd.f32 0.0, %v3210
      %v3212 = vpop.f32.mrf.mxu0
      %v3213 = vadd.f32 0.0, %v3212
      %3214 = vmatmul.bf16.gmra.mxu0 %v3177
      %v3215 = vpop.f32.mrf.mxu0
      %v3216 = vadd.f32 0.0, %v3215
      %v3217 = vpop.f32.mrf.mxu0
      %v3218 = vadd.f32 0.0, %v3217
      %3219 = vmatmul.bf16.gmra.mxu0 %v3180
      %v3220 = vpop.f32.mrf.mxu0
      %v3221 = vadd.f32 0.0, %v3220
      %v3222 = vpop.f32.mrf.mxu0
      %v3223 = vadd.f32 0.0, %v3222
      %3224 = vmatmul.bf16.gmra.mxu0 %v3183
      %v3225 = vpop.f32.mrf.mxu0
      %v3226 = vadd.f32 0.0, %v3225
      %v3227 = vpop.f32.mrf.mxu0
      %v3228 = vadd.f32 0.0, %v3227
      %3229 = vmatmul.bf16.gmra.mxu0 %v3186
      %v3230 = vpop.f32.mrf.mxu0
      %v3231 = vadd.f32 0.0, %v3230
      %v3232 = vpop.f32.mrf.mxu0
      %v3233 = vadd.f32 0.0, %v3232
      %3234 = vmatmul.bf16.gmra.mxu0 %v3189
      %v3235 = vpop.f32.mrf.mxu0
      %v3236 = vadd.f32 0.0, %v3235
      %v3237 = vpop.f32.mrf.mxu0
      %v3238 = vadd.f32 0.0, %v3237
      %3239 = vdwg.mxu0
      %3240 = vmatpush.bf16.msra.mxu0 0
      %3241 = vmatpush.bf16.msra.mxu0 0
      %3242 = vmatpush.bf16.msra.mxu0 0
      %3243 = vmatpush.bf16.msra.mxu0 0
      %3244 = vmatpush.bf16.msra.mxu0 %v3126
      %3245 = vmatpush.bf16.msra.mxu0 %v3124
      %3246 = vmatpush.bf16.msra.mxu0 %v3122
      %3247 = vmatpush.bf16.msra.mxu0 %v3120
      %3248 = vmatmul.bf16.gmra.mxu0 %v3168
      %v3249 = vpop.f32.mrf.mxu0
      %v3250 = vadd.f32 0.0, %v3249
      %v3251 = vpop.f32.mrf.mxu0
      %v3252 = vadd.f32 0.0, %v3251
      %3253 = vmatmul.bf16.gmra.mxu0 %v3171
      %v3254 = vpop.f32.mrf.mxu0
      %v3255 = vadd.f32 0.0, %v3254
      %v3256 = vpop.f32.mrf.mxu0
      %v3257 = vadd.f32 0.0, %v3256
      %3258 = vmatmul.bf16.gmra.mxu0 %v3174
      %v3259 = vpop.f32.mrf.mxu0
      %v3260 = vadd.f32 0.0, %v3259
      %v3261 = vpop.f32.mrf.mxu0
      %v3262 = vadd.f32 0.0, %v3261
      %3263 = vmatmul.bf16.gmra.mxu0 %v3177
      %v3264 = vpop.f32.mrf.mxu0
      %v3265 = vadd.f32 0.0, %v3264
      %v3266 = vpop.f32.mrf.mxu0
      %v3267 = vadd.f32 0.0, %v3266
      %3268 = vmatmul.bf16.gmra.mxu0 %v3180
      %v3269 = vpop.f32.mrf.mxu0
      %v3270 = vadd.f32 0.0, %v3269
      %v3271 = vpop.f32.mrf.mxu0
      %v3272 = vadd.f32 0.0, %v3271
      %3273 = vmatmul.bf16.gmra.mxu0 %v3183
      %v3274 = vpop.f32.mrf.mxu0
      %v3275 = vadd.f32 0.0, %v3274
      %v3276 = vpop.f32.mrf.mxu0
      %v3277 = vadd.f32 0.0, %v3276
      %3278 = vmatmul.bf16.gmra.mxu0 %v3186
      %v3279 = vpop.f32.mrf.mxu0
      %v3280 = vadd.f32 0.0, %v3279
      %v3281 = vpop.f32.mrf.mxu0
      %v3282 = vadd.f32 0.0, %v3281
      %3283 = vmatmul.bf16.gmra.mxu0 %v3189
      %v3284 = vpop.f32.mrf.mxu0
      %v3285 = vadd.f32 0.0, %v3284
      %v3286 = vpop.f32.mrf.mxu0
      %v3287 = vadd.f32 0.0, %v3286
      %3288 = vdwg.mxu0
      %v3289 = vadd.f32 %v3014, %v3201
      %v3290 = vadd.f32 %v3063, %v3250
      %v3291 = vadd.f32 %v3016, %v3203
      %v3292 = vadd.f32 %v3065, %v3252
      %v3293 = vadd.f32 %v3019, %v3206
      %v3294 = vadd.f32 %v3068, %v3255
      %v3295 = vadd.f32 %v3021, %v3208
      %v3296 = vadd.f32 %v3070, %v3257
      %v3297 = vadd.f32 %v3024, %v3211
      %v3298 = vadd.f32 %v3073, %v3260
      %v3299 = vadd.f32 %v3026, %v3213
      %v3300 = vadd.f32 %v3075, %v3262
      %v3301 = vadd.f32 %v3029, %v3216
      %v3302 = vadd.f32 %v3078, %v3265
      %v3303 = vadd.f32 %v3031, %v3218
      %v3304 = vadd.f32 %v3080, %v3267
      %v3305 = vadd.f32 %v3034, %v3221
      %v3306 = vadd.f32 %v3083, %v3270
      %v3307 = vadd.f32 %v3036, %v3223
      %v3308 = vadd.f32 %v3085, %v3272
      %v3309 = vadd.f32 %v3039, %v3226
      %v3310 = vadd.f32 %v3088, %v3275
      %v3311 = vadd.f32 %v3041, %v3228
      %v3312 = vadd.f32 %v3090, %v3277
      %v3313 = vadd.f32 %v3044, %v3231
      %v3314 = vadd.f32 %v3093, %v3280
      %v3315 = vadd.f32 %v3046, %v3233
      %v3316 = vadd.f32 %v3095, %v3282
      %v3317 = vadd.f32 %v3049, %v3236
      %v3318 = vadd.f32 %v3098, %v3285
      %v3319 = vadd.f32 %v3051, %v3238
      %v3320 = vadd.f32 %v3100, %v3287
      %s3321 = scalar_lea.vmem %s3, 192
      %v3322 = vld [vmem:[%s3321] sm:$0xf]
      %v3323 = vld [vmem:[%s3321 + $0x4] sm:$0xf]
      %v3324 = vld [vmem:[%s3321 + $0x8] sm:$0xf]
      %v3325 = vld [vmem:[%s3321 + $0xc] sm:$0xf]
      %v3326 = vld [vmem:[%s3321 + $0x10] sm:$0xf]
      %v3327 = vld [vmem:[%s3321 + $0x14] sm:$0xf]
      %v3328 = vld [vmem:[%s3321 + $0x18] sm:$0xf]
      %v3329 = vld [vmem:[%s3321 + $0x1c] sm:$0xf]
      %v3330 = vld [vmem:[%s3321 + $0x20] sm:$0xf]
      %v3331 = vld [vmem:[%s3321 + $0x24] sm:$0xf]
      %v3332 = vld [vmem:[%s3321 + $0x28] sm:$0xf]
      %v3333 = vld [vmem:[%s3321 + $0x2c] sm:$0xf]
      %v3334 = vld [vmem:[%s3321 + $0x30] sm:$0xf]
      %v3335 = vld [vmem:[%s3321 + $0x34] sm:$0xf]
      %v3336 = vld [vmem:[%s3321 + $0x38] sm:$0xf]
      %v3337 = vld [vmem:[%s3321 + $0x3c] sm:$0xf]
      %v3338 = vpack.c.bf16 %v2715, %v2713
      %v3339 = vpack.c.bf16 %v2716, %v2714
      %v3340 = vpack.c.bf16 %v2719, %v2717
      %v3341 = vpack.c.bf16 %v2720, %v2718
      %v3342 = vpack.c.bf16 %v2723, %v2721
      %v3343 = vpack.c.bf16 %v2724, %v2722
      %v3344 = vpack.c.bf16 %v2727, %v2725
      %v3345 = vpack.c.bf16 %v2728, %v2726
      %v3362 = vunpack.c.l.b16 %v3322
      %v3363 = vunpack.c.l.b16 %v3323
      %v3364 = vunpack.c.l.b16 %v3324
      %v3365 = vunpack.c.l.b16 %v3325
      %v3366 = vunpack.c.l.b16 %v3326
      %v3367 = vunpack.c.l.b16 %v3327
      %v3368 = vunpack.c.l.b16 %v3328
      %v3369 = vunpack.c.l.b16 %v3329
      %v3370 = vunpack.c.l.b16 %v3330
      %v3371 = vunpack.c.l.b16 %v3331
      %v3372 = vunpack.c.l.b16 %v3332
      %v3373 = vunpack.c.l.b16 %v3333
      %v3374 = vunpack.c.l.b16 %v3334
      %v3375 = vunpack.c.l.b16 %v3335
      %v3376 = vunpack.c.l.b16 %v3336
      %v3377 = vunpack.c.l.b16 %v3337
      %v3378 = vpack.c.b16 %v3363, %v3362
      %v3379 = vpack.c.b16 %v3365, %v3364
      %v3380 = vpack.c.b16 %v3367, %v3366
      %v3381 = vpack.c.b16 %v3369, %v3368
      %v3382 = vpack.c.b16 %v3371, %v3370
      %v3383 = vpack.c.b16 %v3373, %v3372
      %v3384 = vpack.c.b16 %v3375, %v3374
      %v3385 = vpack.c.b16 %v3377, %v3376
      %v3387 = vsel %vm353, %v3378, 0
      %v3390 = vsel %vm353, %v3379, 0
      %v3393 = vsel %vm353, %v3380, 0
      %v3396 = vsel %vm353, %v3381, 0
      %v3399 = vsel %vm353, %v3382, 0
      %v3402 = vsel %vm353, %v3383, 0
      %v3405 = vsel %vm353, %v3384, 0
      %v3408 = vsel %vm353, %v3385, 0
      %3410 = vmatpush.bf16.msra.mxu0 0
      %3411 = vmatpush.bf16.msra.mxu0 0
      %3412 = vmatpush.bf16.msra.mxu0 0
      %3413 = vmatpush.bf16.msra.mxu0 0
      %3414 = vmatpush.bf16.msra.mxu0 %v3344
      %3415 = vmatpush.bf16.msra.mxu0 %v3342
      %3416 = vmatpush.bf16.msra.mxu0 %v3340
      %3417 = vmatpush.bf16.msra.mxu0 %v3338
      %3418 = vmatmul.bf16.gmra.mxu0 %v3387
      %v3419 = vpop.f32.mrf.mxu0
      %v3420 = vadd.f32 0.0, %v3419
      %v3421 = vpop.f32.mrf.mxu0
      %v3422 = vadd.f32 0.0, %v3421
      %3423 = vmatmul.bf16.gmra.mxu0 %v3390
      %v3424 = vpop.f32.mrf.mxu0
      %v3425 = vadd.f32 0.0, %v3424
      %v3426 = vpop.f32.mrf.mxu0
      %v3427 = vadd.f32 0.0, %v3426
      %3428 = vmatmul.bf16.gmra.mxu0 %v3393
      %v3429 = vpop.f32.mrf.mxu0
      %v3430 = vadd.f32 0.0, %v3429
      %v3431 = vpop.f32.mrf.mxu0
      %v3432 = vadd.f32 0.0, %v3431
      %3433 = vmatmul.bf16.gmra.mxu0 %v3396
      %v3434 = vpop.f32.mrf.mxu0
      %v3435 = vadd.f32 0.0, %v3434
      %v3436 = vpop.f32.mrf.mxu0
      %v3437 = vadd.f32 0.0, %v3436
      %3438 = vmatmul.bf16.gmra.mxu0 %v3399
      %v3439 = vpop.f32.mrf.mxu0
      %v3440 = vadd.f32 0.0, %v3439
      %v3441 = vpop.f32.mrf.mxu0
      %v3442 = vadd.f32 0.0, %v3441
      %3443 = vmatmul.bf16.gmra.mxu0 %v3402
      %v3444 = vpop.f32.mrf.mxu0
      %v3445 = vadd.f32 0.0, %v3444
      %v3446 = vpop.f32.mrf.mxu0
      %v3447 = vadd.f32 0.0, %v3446
      %3448 = vmatmul.bf16.gmra.mxu0 %v3405
      %v3449 = vpop.f32.mrf.mxu0
      %v3450 = vadd.f32 0.0, %v3449
      %v3451 = vpop.f32.mrf.mxu0
      %v3452 = vadd.f32 0.0, %v3451
      %3453 = vmatmul.bf16.gmra.mxu0 %v3408
      %v3454 = vpop.f32.mrf.mxu0
      %v3455 = vadd.f32 0.0, %v3454
      %v3456 = vpop.f32.mrf.mxu0
      %v3457 = vadd.f32 0.0, %v3456
      %3458 = vdwg.mxu0
      %3459 = vmatpush.bf16.msra.mxu0 0
      %3460 = vmatpush.bf16.msra.mxu0 0
      %3461 = vmatpush.bf16.msra.mxu0 0
      %3462 = vmatpush.bf16.msra.mxu0 0
      %3463 = vmatpush.bf16.msra.mxu0 %v3345
      %3464 = vmatpush.bf16.msra.mxu0 %v3343
      %3465 = vmatpush.bf16.msra.mxu0 %v3341
      %3466 = vmatpush.bf16.msra.mxu0 %v3339
      %3467 = vmatmul.bf16.gmra.mxu0 %v3387
      %v3468 = vpop.f32.mrf.mxu0
      %v3469 = vadd.f32 0.0, %v3468
      %v3470 = vpop.f32.mrf.mxu0
      %v3471 = vadd.f32 0.0, %v3470
      %3472 = vmatmul.bf16.gmra.mxu0 %v3390
      %v3473 = vpop.f32.mrf.mxu0
      %v3474 = vadd.f32 0.0, %v3473
      %v3475 = vpop.f32.mrf.mxu0
      %v3476 = vadd.f32 0.0, %v3475
      %3477 = vmatmul.bf16.gmra.mxu0 %v3393
      %v3478 = vpop.f32.mrf.mxu0
      %v3479 = vadd.f32 0.0, %v3478
      %v3480 = vpop.f32.mrf.mxu0
      %v3481 = vadd.f32 0.0, %v3480
      %3482 = vmatmul.bf16.gmra.mxu0 %v3396
      %v3483 = vpop.f32.mrf.mxu0
      %v3484 = vadd.f32 0.0, %v3483
      %v3485 = vpop.f32.mrf.mxu0
      %v3486 = vadd.f32 0.0, %v3485
      %3487 = vmatmul.bf16.gmra.mxu0 %v3399
      %v3488 = vpop.f32.mrf.mxu0
      %v3489 = vadd.f32 0.0, %v3488
      %v3490 = vpop.f32.mrf.mxu0
      %v3491 = vadd.f32 0.0, %v3490
      %3492 = vmatmul.bf16.gmra.mxu0 %v3402
      %v3493 = vpop.f32.mrf.mxu0
      %v3494 = vadd.f32 0.0, %v3493
      %v3495 = vpop.f32.mrf.mxu0
      %v3496 = vadd.f32 0.0, %v3495
      %3497 = vmatmul.bf16.gmra.mxu0 %v3405
      %v3498 = vpop.f32.mrf.mxu0
      %v3499 = vadd.f32 0.0, %v3498
      %v3500 = vpop.f32.mrf.mxu0
      %v3501 = vadd.f32 0.0, %v3500
      %3502 = vmatmul.bf16.gmra.mxu0 %v3408
      %v3503 = vpop.f32.mrf.mxu0
      %v3504 = vadd.f32 0.0, %v3503
      %v3505 = vpop.f32.mrf.mxu0
      %v3506 = vadd.f32 0.0, %v3505
      %3507 = vdwg.mxu0
      %v3508 = vadd.f32 %v3289, %v3420
      %v3509 = vadd.f32 %v3290, %v3469
      %v3510 = vadd.f32 %v3291, %v3422
      %v3511 = vadd.f32 %v3292, %v3471
      %v3512 = vadd.f32 %v3293, %v3425
      %v3513 = vadd.f32 %v3294, %v3474
      %v3514 = vadd.f32 %v3295, %v3427
      %v3515 = vadd.f32 %v3296, %v3476
      %v3516 = vadd.f32 %v3297, %v3430
      %v3517 = vadd.f32 %v3298, %v3479
      %v3518 = vadd.f32 %v3299, %v3432
      %v3519 = vadd.f32 %v3300, %v3481
      %v3520 = vadd.f32 %v3301, %v3435
      %v3521 = vadd.f32 %v3302, %v3484
      %v3522 = vadd.f32 %v3303, %v3437
      %v3523 = vadd.f32 %v3304, %v3486
      %v3524 = vadd.f32 %v3305, %v3440
      %v3525 = vadd.f32 %v3306, %v3489
      %v3526 = vadd.f32 %v3307, %v3442
      %v3527 = vadd.f32 %v3308, %v3491
      %v3528 = vadd.f32 %v3309, %v3445
      %v3529 = vadd.f32 %v3310, %v3494
      %v3530 = vadd.f32 %v3311, %v3447
      %v3531 = vadd.f32 %v3312, %v3496
      %v3532 = vadd.f32 %v3313, %v3450
      %v3533 = vadd.f32 %v3314, %v3499
      %v3534 = vadd.f32 %v3315, %v3452
      %v3535 = vadd.f32 %v3316, %v3501
      %v3536 = vadd.f32 %v3317, %v3455
      %v3537 = vadd.f32 %v3318, %v3504
      %v3538 = vadd.f32 %v3319, %v3457
      %v3539 = vadd.f32 %v3320, %v3506
      %v3540 = vld [vmem:[%s4] sm:$0xff]
      %v3541 = vld [vmem:[%s4 + $0x8] sm:$0xff]
      %v3542 = vld [vmem:[%s4 + $0x10] sm:$0xff]
      %v3543 = vld [vmem:[%s4 + $0x18] sm:$0xff]
      %v3544 = vld [vmem:[%s4 + $0x20] sm:$0xff]
      %v3545 = vld [vmem:[%s4 + $0x28] sm:$0xff]
      %v3546 = vld [vmem:[%s4 + $0x30] sm:$0xff]
      %v3547 = vld [vmem:[%s4 + $0x38] sm:$0xff]
      %v3548 = vld [vmem:[%s4 + $0x40] sm:$0xff]
      %v3549 = vld [vmem:[%s4 + $0x48] sm:$0xff]
      %v3550 = vld [vmem:[%s4 + $0x50] sm:$0xff]
      %v3551 = vld [vmem:[%s4 + $0x58] sm:$0xff]
      %v3552 = vld [vmem:[%s4 + $0x60] sm:$0xff]
      %v3553 = vld [vmem:[%s4 + $0x68] sm:$0xff]
      %v3554 = vld [vmem:[%s4 + $0x70] sm:$0xff]
      %v3555 = vld [vmem:[%s4 + $0x78] sm:$0xff]
      %3557 = vset.pattern.permute.xlu0 0
      %3558 = vperm.xlu0 %3557, %v3540
      %v3559 = vpop.permute.xlu0 %3558
      %3562 = vset.pattern.permute.xlu0 0
      %3563 = vperm.xlu0 %3562, %v3541
      %v3564 = vpop.permute.xlu0 %3563
      %3567 = vset.pattern.permute.xlu0 0
      %3568 = vperm.xlu0 %3567, %v3542
      %v3569 = vpop.permute.xlu0 %3568
      %3572 = vset.pattern.permute.xlu0 0
      %3573 = vperm.xlu0 %3572, %v3543
      %v3574 = vpop.permute.xlu0 %3573
      %3577 = vset.pattern.permute.xlu0 0
      %3578 = vperm.xlu0 %3577, %v3544
      %v3579 = vpop.permute.xlu0 %3578
      %3582 = vset.pattern.permute.xlu0 0
      %3583 = vperm.xlu0 %3582, %v3545
      %v3584 = vpop.permute.xlu0 %3583
      %3587 = vset.pattern.permute.xlu0 0
      %3588 = vperm.xlu0 %3587, %v3546
      %v3589 = vpop.permute.xlu0 %3588
      %3592 = vset.pattern.permute.xlu0 0
      %3593 = vperm.xlu0 %3592, %v3547
      %v3594 = vpop.permute.xlu0 %3593
      %3597 = vset.pattern.permute.xlu0 0
      %3598 = vperm.xlu0 %3597, %v3548
      %v3599 = vpop.permute.xlu0 %3598
      %3602 = vset.pattern.permute.xlu0 0
      %3603 = vperm.xlu0 %3602, %v3549
      %v3604 = vpop.permute.xlu0 %3603
      %3607 = vset.pattern.permute.xlu0 0
      %3608 = vperm.xlu0 %3607, %v3550
      %v3609 = vpop.permute.xlu0 %3608
      %3612 = vset.pattern.permute.xlu0 0
      %3613 = vperm.xlu0 %3612, %v3551
      %v3614 = vpop.permute.xlu0 %3613
      %3617 = vset.pattern.permute.xlu0 0
      %3618 = vperm.xlu0 %3617, %v3552
      %v3619 = vpop.permute.xlu0 %3618
      %3622 = vset.pattern.permute.xlu0 0
      %3623 = vperm.xlu0 %3622, %v3553
      %v3624 = vpop.permute.xlu0 %3623
      %3627 = vset.pattern.permute.xlu0 0
      %3628 = vperm.xlu0 %3627, %v3554
      %v3629 = vpop.permute.xlu0 %3628
      %3632 = vset.pattern.permute.xlu0 0
      %3633 = vperm.xlu0 %3632, %v3555
      %v3634 = vpop.permute.xlu0 %3633
      %v3636 = vadd.f32 %v3508, %v3559
      %v3637 = vadd.f32 %v3509, %v3559
      %v3638 = vadd.f32 %v3510, %v3564
      %v3639 = vadd.f32 %v3511, %v3564
      %v3640 = vadd.f32 %v3512, %v3569
      %v3641 = vadd.f32 %v3513, %v3569
      %v3642 = vadd.f32 %v3514, %v3574
      %v3643 = vadd.f32 %v3515, %v3574
      %v3644 = vadd.f32 %v3516, %v3579
      %v3645 = vadd.f32 %v3517, %v3579
      %v3646 = vadd.f32 %v3518, %v3584
      %v3647 = vadd.f32 %v3519, %v3584
      %v3648 = vadd.f32 %v3520, %v3589
      %v3649 = vadd.f32 %v3521, %v3589
      %v3650 = vadd.f32 %v3522, %v3594
      %v3651 = vadd.f32 %v3523, %v3594
      %v3652 = vadd.f32 %v3524, %v3599
      %v3653 = vadd.f32 %v3525, %v3599
      %v3654 = vadd.f32 %v3526, %v3604
      %v3655 = vadd.f32 %v3527, %v3604
      %v3656 = vadd.f32 %v3528, %v3609
      %v3657 = vadd.f32 %v3529, %v3609
      %v3658 = vadd.f32 %v3530, %v3614
      %v3659 = vadd.f32 %v3531, %v3614
      %v3660 = vadd.f32 %v3532, %v3619
      %v3661 = vadd.f32 %v3533, %v3619
      %v3662 = vadd.f32 %v3534, %v3624
      %v3663 = vadd.f32 %v3535, %v3624
      %v3664 = vadd.f32 %v3536, %v3629
      %v3665 = vadd.f32 %v3537, %v3629
      %v3666 = vadd.f32 %v3538, %v3634
      %v3667 = vadd.f32 %v3539, %v3634
      %v3668 = vxor.u32 %v3636, 2147483648
      %v3669 = vxor.u32 %v3637, 2147483648
      %v3670 = vxor.u32 %v3638, 2147483648
      %v3671 = vxor.u32 %v3639, 2147483648
      %v3672 = vxor.u32 %v3640, 2147483648
      %v3673 = vxor.u32 %v3641, 2147483648
      %v3674 = vxor.u32 %v3642, 2147483648
      %v3675 = vxor.u32 %v3643, 2147483648
      %v3676 = vxor.u32 %v3644, 2147483648
      %v3677 = vxor.u32 %v3645, 2147483648
      %v3678 = vxor.u32 %v3646, 2147483648
      %v3679 = vxor.u32 %v3647, 2147483648
      %v3680 = vxor.u32 %v3648, 2147483648
      %v3681 = vxor.u32 %v3649, 2147483648
      %v3682 = vxor.u32 %v3650, 2147483648
      %v3683 = vxor.u32 %v3651, 2147483648
      %v3684 = vxor.u32 %v3652, 2147483648
      %v3685 = vxor.u32 %v3653, 2147483648
      %v3686 = vxor.u32 %v3654, 2147483648
      %v3687 = vxor.u32 %v3655, 2147483648
      %v3688 = vxor.u32 %v3656, 2147483648
      %v3689 = vxor.u32 %v3657, 2147483648
      %v3690 = vxor.u32 %v3658, 2147483648
      %v3691 = vxor.u32 %v3659, 2147483648
      %v3692 = vxor.u32 %v3660, 2147483648
      %v3693 = vxor.u32 %v3661, 2147483648
      %v3694 = vxor.u32 %v3662, 2147483648
      %v3695 = vxor.u32 %v3663, 2147483648
      %v3696 = vxor.u32 %v3664, 2147483648
      %v3697 = vxor.u32 %v3665, 2147483648
      %v3698 = vxor.u32 %v3666, 2147483648
      %v3699 = vxor.u32 %v3667, 2147483648
      %v3700 = vmul.f32 %v3668, 1.442695
      %v3701 = vpow.pop %v3700
      %v3702 = vmul.f32 %v3669, 1.442695
      %v3703 = vpow.pop %v3702
      %v3704 = vmul.f32 %v3670, 1.442695
      %v3705 = vpow.pop %v3704
      %v3706 = vmul.f32 %v3671, 1.442695
      %v3707 = vpow.pop %v3706
      %v3708 = vmul.f32 %v3672, 1.442695
      %v3709 = vpow.pop %v3708
      %v3710 = vmul.f32 %v3673, 1.442695
      %v3711 = vpow.pop %v3710
      %v3712 = vmul.f32 %v3674, 1.442695
      %v3713 = vpow.pop %v3712
      %v3714 = vmul.f32 %v3675, 1.442695
      %v3715 = vpow.pop %v3714
      %v3716 = vmul.f32 %v3676, 1.442695
      %v3717 = vpow.pop %v3716
      %v3718 = vmul.f32 %v3677, 1.442695
      %v3719 = vpow.pop %v3718
      %v3720 = vmul.f32 %v3678, 1.442695
      %v3721 = vpow.pop %v3720
      %v3722 = vmul.f32 %v3679, 1.442695
      %v3723 = vpow.pop %v3722
      %v3724 = vmul.f32 %v3680, 1.442695
      %v3725 = vpow.pop %v3724
      %v3726 = vmul.f32 %v3681, 1.442695
      %v3727 = vpow.pop %v3726
      %v3728 = vmul.f32 %v3682, 1.442695
      %v3729 = vpow.pop %v3728
      %v3730 = vmul.f32 %v3683, 1.442695
      %v3731 = vpow.pop %v3730
      %v3732 = vmul.f32 %v3684, 1.442695
      %v3733 = vpow.pop %v3732
      %v3734 = vmul.f32 %v3685, 1.442695
      %v3735 = vpow.pop %v3734
      %v3736 = vmul.f32 %v3686, 1.442695
      %v3737 = vpow.pop %v3736
      %v3738 = vmul.f32 %v3687, 1.442695
      %v3739 = vpow.pop %v3738
      %v3740 = vmul.f32 %v3688, 1.442695
      %v3741 = vpow.pop %v3740
      %v3742 = vmul.f32 %v3689, 1.442695
      %v3743 = vpow.pop %v3742
      %v3744 = vmul.f32 %v3690, 1.442695
      %v3745 = vpow.pop %v3744
      %v3746 = vmul.f32 %v3691, 1.442695
      %v3747 = vpow.pop %v3746
      %v3748 = vmul.f32 %v3692, 1.442695
      %v3749 = vpow.pop %v3748
      %v3750 = vmul.f32 %v3693, 1.442695
      %v3751 = vpow.pop %v3750
      %v3752 = vmul.f32 %v3694, 1.442695
      %v3753 = vpow.pop %v3752
      %v3754 = vmul.f32 %v3695, 1.442695
      %v3755 = vpow.pop %v3754
      %v3756 = vmul.f32 %v3696, 1.442695
      %v3757 = vpow.pop %v3756
      %v3758 = vmul.f32 %v3697, 1.442695
      %v3759 = vpow.pop %v3758
      %v3760 = vmul.f32 %v3698, 1.442695
      %v3761 = vpow.pop %v3760
      %v3762 = vmul.f32 %v3699, 1.442695
      %v3763 = vpow.pop %v3762
      %v3764 = vadd.f32 %v3701, 1.0
      %v3765 = vadd.f32 %v3703, 1.0
      %v3766 = vadd.f32 %v3705, 1.0
      %v3767 = vadd.f32 %v3707, 1.0
      %v3768 = vadd.f32 %v3709, 1.0
      %v3769 = vadd.f32 %v3711, 1.0
      %v3770 = vadd.f32 %v3713, 1.0
      %v3771 = vadd.f32 %v3715, 1.0
      %v3772 = vadd.f32 %v3717, 1.0
      %v3773 = vadd.f32 %v3719, 1.0
      %v3774 = vadd.f32 %v3721, 1.0
      %v3775 = vadd.f32 %v3723, 1.0
      %v3776 = vadd.f32 %v3725, 1.0
      %v3777 = vadd.f32 %v3727, 1.0
      %v3778 = vadd.f32 %v3729, 1.0
      %v3779 = vadd.f32 %v3731, 1.0
      %v3780 = vadd.f32 %v3733, 1.0
      %v3781 = vadd.f32 %v3735, 1.0
      %v3782 = vadd.f32 %v3737, 1.0
      %v3783 = vadd.f32 %v3739, 1.0
      %v3784 = vadd.f32 %v3741, 1.0
      %v3785 = vadd.f32 %v3743, 1.0
      %v3786 = vadd.f32 %v3745, 1.0
      %v3787 = vadd.f32 %v3747, 1.0
      %v3788 = vadd.f32 %v3749, 1.0
      %v3789 = vadd.f32 %v3751, 1.0
      %v3790 = vadd.f32 %v3753, 1.0
      %v3791 = vadd.f32 %v3755, 1.0
      %v3792 = vadd.f32 %v3757, 1.0
      %v3793 = vadd.f32 %v3759, 1.0
      %v3794 = vadd.f32 %v3761, 1.0
      %v3795 = vadd.f32 %v3763, 1.0
      %v3796 = vrcp.pop %v3764
      %v3797 = vmul.f32 %v3764, %v3796
      %v3798 = vsub.f32 1.0, %v3797
      %v3799 = vmul.f32 %v3796, %v3798
      %v3800 = vadd.f32 %v3796, %v3799
      %vm3801 = vweird.f32 %v3764
      %vm3802 = vweird.f32 %v3796
      %vm3803 = vmor %vm3801, %vm3802
      %v3804 = vsel %vm3803, %v3796, %v3800
      %v3805 = vand.u32 2147483647, %v3764
      %vm3806 = vcmp.eq.f32.partialorder %v3805, 8.507059e+37
      %v3807 = vand.u32 %v3764, 2147483648
      %v3808 = vor.u32 1.1754944e-38, %v3807
      %v3809 = vsel %vm3806, %v3808, %v3804
      %v3810 = vmul.f32 1.0, %v3809
      %v3811 = vrcp.pop %v3765
      %v3812 = vmul.f32 %v3765, %v3811
      %v3813 = vsub.f32 1.0, %v3812
      %v3814 = vmul.f32 %v3811, %v3813
      %v3815 = vadd.f32 %v3811, %v3814
      %vm3816 = vweird.f32 %v3765
      %vm3817 = vweird.f32 %v3811
      %vm3818 = vmor %vm3816, %vm3817
      %v3819 = vsel %vm3818, %v3811, %v3815
      %v3820 = vand.u32 2147483647, %v3765
      %vm3821 = vcmp.eq.f32.partialorder %v3820, 8.507059e+37
      %v3822 = vand.u32 %v3765, 2147483648
      %v3823 = vor.u32 1.1754944e-38, %v3822
      %v3824 = vsel %vm3821, %v3823, %v3819
      %v3825 = vmul.f32 1.0, %v3824
      %v3826 = vrcp.pop %v3766
      %v3827 = vmul.f32 %v3766, %v3826
      %v3828 = vsub.f32 1.0, %v3827
      %v3829 = vmul.f32 %v3826, %v3828
      %v3830 = vadd.f32 %v3826, %v3829
      %vm3831 = vweird.f32 %v3766
      %vm3832 = vweird.f32 %v3826
      %vm3833 = vmor %vm3831, %vm3832
      %v3834 = vsel %vm3833, %v3826, %v3830
      %v3835 = vand.u32 2147483647, %v3766
      %vm3836 = vcmp.eq.f32.partialorder %v3835, 8.507059e+37
      %v3837 = vand.u32 %v3766, 2147483648
      %v3838 = vor.u32 1.1754944e-38, %v3837
      %v3839 = vsel %vm3836, %v3838, %v3834
      %v3840 = vmul.f32 1.0, %v3839
      %v3841 = vrcp.pop %v3767
      %v3842 = vmul.f32 %v3767, %v3841
      %v3843 = vsub.f32 1.0, %v3842
      %v3844 = vmul.f32 %v3841, %v3843
      %v3845 = vadd.f32 %v3841, %v3844
      %vm3846 = vweird.f32 %v3767
      %vm3847 = vweird.f32 %v3841
      %vm3848 = vmor %vm3846, %vm3847
      %v3849 = vsel %vm3848, %v3841, %v3845
      %v3850 = vand.u32 2147483647, %v3767
      %vm3851 = vcmp.eq.f32.partialorder %v3850, 8.507059e+37
      %v3852 = vand.u32 %v3767, 2147483648
      %v3853 = vor.u32 1.1754944e-38, %v3852
      %v3854 = vsel %vm3851, %v3853, %v3849
      %v3855 = vmul.f32 1.0, %v3854
      %v3856 = vrcp.pop %v3768
      %v3857 = vmul.f32 %v3768, %v3856
      %v3858 = vsub.f32 1.0, %v3857
      %v3859 = vmul.f32 %v3856, %v3858
      %v3860 = vadd.f32 %v3856, %v3859
      %vm3861 = vweird.f32 %v3768
      %vm3862 = vweird.f32 %v3856
      %vm3863 = vmor %vm3861, %vm3862
      %v3864 = vsel %vm3863, %v3856, %v3860
      %v3865 = vand.u32 2147483647, %v3768
      %vm3866 = vcmp.eq.f32.partialorder %v3865, 8.507059e+37
      %v3867 = vand.u32 %v3768, 2147483648
      %v3868 = vor.u32 1.1754944e-38, %v3867
      %v3869 = vsel %vm3866, %v3868, %v3864
      %v3870 = vmul.f32 1.0, %v3869
      %v3871 = vrcp.pop %v3769
      %v3872 = vmul.f32 %v3769, %v3871
      %v3873 = vsub.f32 1.0, %v3872
      %v3874 = vmul.f32 %v3871, %v3873
      %v3875 = vadd.f32 %v3871, %v3874
      %vm3876 = vweird.f32 %v3769
      %vm3877 = vweird.f32 %v3871
      %vm3878 = vmor %vm3876, %vm3877
      %v3879 = vsel %vm3878, %v3871, %v3875
      %v3880 = vand.u32 2147483647, %v3769
      %vm3881 = vcmp.eq.f32.partialorder %v3880, 8.507059e+37
      %v3882 = vand.u32 %v3769, 2147483648
      %v3883 = vor.u32 1.1754944e-38, %v3882
      %v3884 = vsel %vm3881, %v3883, %v3879
      %v3885 = vmul.f32 1.0, %v3884
      %v3886 = vrcp.pop %v3770
      %v3887 = vmul.f32 %v3770, %v3886
      %v3888 = vsub.f32 1.0, %v3887
      %v3889 = vmul.f32 %v3886, %v3888
      %v3890 = vadd.f32 %v3886, %v3889
      %vm3891 = vweird.f32 %v3770
      %vm3892 = vweird.f32 %v3886
      %vm3893 = vmor %vm3891, %vm3892
      %v3894 = vsel %vm3893, %v3886, %v3890
      %v3895 = vand.u32 2147483647, %v3770
      %vm3896 = vcmp.eq.f32.partialorder %v3895, 8.507059e+37
      %v3897 = vand.u32 %v3770, 2147483648
      %v3898 = vor.u32 1.1754944e-38, %v3897
      %v3899 = vsel %vm3896, %v3898, %v3894
      %v3900 = vmul.f32 1.0, %v3899
      %v3901 = vrcp.pop %v3771
      %v3902 = vmul.f32 %v3771, %v3901
      %v3903 = vsub.f32 1.0, %v3902
      %v3904 = vmul.f32 %v3901, %v3903
      %v3905 = vadd.f32 %v3901, %v3904
      %vm3906 = vweird.f32 %v3771
      %vm3907 = vweird.f32 %v3901
      %vm3908 = vmor %vm3906, %vm3907
      %v3909 = vsel %vm3908, %v3901, %v3905
      %v3910 = vand.u32 2147483647, %v3771
      %vm3911 = vcmp.eq.f32.partialorder %v3910, 8.507059e+37
      %v3912 = vand.u32 %v3771, 2147483648
      %v3913 = vor.u32 1.1754944e-38, %v3912
      %v3914 = vsel %vm3911, %v3913, %v3909
      %v3915 = vmul.f32 1.0, %v3914
      %v3916 = vrcp.pop %v3772
      %v3917 = vmul.f32 %v3772, %v3916
      %v3918 = vsub.f32 1.0, %v3917
      %v3919 = vmul.f32 %v3916, %v3918
      %v3920 = vadd.f32 %v3916, %v3919
      %vm3921 = vweird.f32 %v3772
      %vm3922 = vweird.f32 %v3916
      %vm3923 = vmor %vm3921, %vm3922
      %v3924 = vsel %vm3923, %v3916, %v3920
      %v3925 = vand.u32 2147483647, %v3772
      %vm3926 = vcmp.eq.f32.partialorder %v3925, 8.507059e+37
      %v3927 = vand.u32 %v3772, 2147483648
      %v3928 = vor.u32 1.1754944e-38, %v3927
      %v3929 = vsel %vm3926, %v3928, %v3924
      %v3930 = vmul.f32 1.0, %v3929
      %v3931 = vrcp.pop %v3773
      %v3932 = vmul.f32 %v3773, %v3931
      %v3933 = vsub.f32 1.0, %v3932
      %v3934 = vmul.f32 %v3931, %v3933
      %v3935 = vadd.f32 %v3931, %v3934
      %vm3936 = vweird.f32 %v3773
      %vm3937 = vweird.f32 %v3931
      %vm3938 = vmor %vm3936, %vm3937
      %v3939 = vsel %vm3938, %v3931, %v3935
      %v3940 = vand.u32 2147483647, %v3773
      %vm3941 = vcmp.eq.f32.partialorder %v3940, 8.507059e+37
      %v3942 = vand.u32 %v3773, 2147483648
      %v3943 = vor.u32 1.1754944e-38, %v3942
      %v3944 = vsel %vm3941, %v3943, %v3939
      %v3945 = vmul.f32 1.0, %v3944
      %v3946 = vrcp.pop %v3774
      %v3947 = vmul.f32 %v3774, %v3946
      %v3948 = vsub.f32 1.0, %v3947
      %v3949 = vmul.f32 %v3946, %v3948
      %v3950 = vadd.f32 %v3946, %v3949
      %vm3951 = vweird.f32 %v3774
      %vm3952 = vweird.f32 %v3946
      %vm3953 = vmor %vm3951, %vm3952
      %v3954 = vsel %vm3953, %v3946, %v3950
      %v3955 = vand.u32 2147483647, %v3774
      %vm3956 = vcmp.eq.f32.partialorder %v3955, 8.507059e+37
      %v3957 = vand.u32 %v3774, 2147483648
      %v3958 = vor.u32 1.1754944e-38, %v3957
      %v3959 = vsel %vm3956, %v3958, %v3954
      %v3960 = vmul.f32 1.0, %v3959
      %v3961 = vrcp.pop %v3775
      %v3962 = vmul.f32 %v3775, %v3961
      %v3963 = vsub.f32 1.0, %v3962
      %v3964 = vmul.f32 %v3961, %v3963
      %v3965 = vadd.f32 %v3961, %v3964
      %vm3966 = vweird.f32 %v3775
      %vm3967 = vweird.f32 %v3961
      %vm3968 = vmor %vm3966, %vm3967
      %v3969 = vsel %vm3968, %v3961, %v3965
      %v3970 = vand.u32 2147483647, %v3775
      %vm3971 = vcmp.eq.f32.partialorder %v3970, 8.507059e+37
      %v3972 = vand.u32 %v3775, 2147483648
      %v3973 = vor.u32 1.1754944e-38, %v3972
      %v3974 = vsel %vm3971, %v3973, %v3969
      %v3975 = vmul.f32 1.0, %v3974
      %v3976 = vrcp.pop %v3776
      %v3977 = vmul.f32 %v3776, %v3976
      %v3978 = vsub.f32 1.0, %v3977
      %v3979 = vmul.f32 %v3976, %v3978
      %v3980 = vadd.f32 %v3976, %v3979
      %vm3981 = vweird.f32 %v3776
      %vm3982 = vweird.f32 %v3976
      %vm3983 = vmor %vm3981, %vm3982
      %v3984 = vsel %vm3983, %v3976, %v3980
      %v3985 = vand.u32 2147483647, %v3776
      %vm3986 = vcmp.eq.f32.partialorder %v3985, 8.507059e+37
      %v3987 = vand.u32 %v3776, 2147483648
      %v3988 = vor.u32 1.1754944e-38, %v3987
      %v3989 = vsel %vm3986, %v3988, %v3984
      %v3990 = vmul.f32 1.0, %v3989
      %v3991 = vrcp.pop %v3777
      %v3992 = vmul.f32 %v3777, %v3991
      %v3993 = vsub.f32 1.0, %v3992
      %v3994 = vmul.f32 %v3991, %v3993
      %v3995 = vadd.f32 %v3991, %v3994
      %vm3996 = vweird.f32 %v3777
      %vm3997 = vweird.f32 %v3991
      %vm3998 = vmor %vm3996, %vm3997
      %v3999 = vsel %vm3998, %v3991, %v3995
      %v4000 = vand.u32 2147483647, %v3777
      %vm4001 = vcmp.eq.f32.partialorder %v4000, 8.507059e+37
      %v4002 = vand.u32 %v3777, 2147483648
      %v4003 = vor.u32 1.1754944e-38, %v4002
      %v4004 = vsel %vm4001, %v4003, %v3999
      %v4005 = vmul.f32 1.0, %v4004
      %v4006 = vrcp.pop %v3778
      %v4007 = vmul.f32 %v3778, %v4006
      %v4008 = vsub.f32 1.0, %v4007
      %v4009 = vmul.f32 %v4006, %v4008
      %v4010 = vadd.f32 %v4006, %v4009
      %vm4011 = vweird.f32 %v3778
      %vm4012 = vweird.f32 %v4006
      %vm4013 = vmor %vm4011, %vm4012
      %v4014 = vsel %vm4013, %v4006, %v4010
      %v4015 = vand.u32 2147483647, %v3778
      %vm4016 = vcmp.eq.f32.partialorder %v4015, 8.507059e+37
      %v4017 = vand.u32 %v3778, 2147483648
      %v4018 = vor.u32 1.1754944e-38, %v4017
      %v4019 = vsel %vm4016, %v4018, %v4014
      %v4020 = vmul.f32 1.0, %v4019
      %v4021 = vrcp.pop %v3779
      %v4022 = vmul.f32 %v3779, %v4021
      %v4023 = vsub.f32 1.0, %v4022
      %v4024 = vmul.f32 %v4021, %v4023
      %v4025 = vadd.f32 %v4021, %v4024
      %vm4026 = vweird.f32 %v3779
      %vm4027 = vweird.f32 %v4021
      %vm4028 = vmor %vm4026, %vm4027
      %v4029 = vsel %vm4028, %v4021, %v4025
      %v4030 = vand.u32 2147483647, %v3779
      %vm4031 = vcmp.eq.f32.partialorder %v4030, 8.507059e+37
      %v4032 = vand.u32 %v3779, 2147483648
      %v4033 = vor.u32 1.1754944e-38, %v4032
      %v4034 = vsel %vm4031, %v4033, %v4029
      %v4035 = vmul.f32 1.0, %v4034
      %v4036 = vrcp.pop %v3780
      %v4037 = vmul.f32 %v3780, %v4036
      %v4038 = vsub.f32 1.0, %v4037
      %v4039 = vmul.f32 %v4036, %v4038
      %v4040 = vadd.f32 %v4036, %v4039
      %vm4041 = vweird.f32 %v3780
      %vm4042 = vweird.f32 %v4036
      %vm4043 = vmor %vm4041, %vm4042
      %v4044 = vsel %vm4043, %v4036, %v4040
      %v4045 = vand.u32 2147483647, %v3780
      %vm4046 = vcmp.eq.f32.partialorder %v4045, 8.507059e+37
      %v4047 = vand.u32 %v3780, 2147483648
      %v4048 = vor.u32 1.1754944e-38, %v4047
      %v4049 = vsel %vm4046, %v4048, %v4044
      %v4050 = vmul.f32 1.0, %v4049
      %v4051 = vrcp.pop %v3781
      %v4052 = vmul.f32 %v3781, %v4051
      %v4053 = vsub.f32 1.0, %v4052
      %v4054 = vmul.f32 %v4051, %v4053
      %v4055 = vadd.f32 %v4051, %v4054
      %vm4056 = vweird.f32 %v3781
      %vm4057 = vweird.f32 %v4051
      %vm4058 = vmor %vm4056, %vm4057
      %v4059 = vsel %vm4058, %v4051, %v4055
      %v4060 = vand.u32 2147483647, %v3781
      %vm4061 = vcmp.eq.f32.partialorder %v4060, 8.507059e+37
      %v4062 = vand.u32 %v3781, 2147483648
      %v4063 = vor.u32 1.1754944e-38, %v4062
      %v4064 = vsel %vm4061, %v4063, %v4059
      %v4065 = vmul.f32 1.0, %v4064
      %v4066 = vrcp.pop %v3782
      %v4067 = vmul.f32 %v3782, %v4066
      %v4068 = vsub.f32 1.0, %v4067
      %v4069 = vmul.f32 %v4066, %v4068
      %v4070 = vadd.f32 %v4066, %v4069
      %vm4071 = vweird.f32 %v3782
      %vm4072 = vweird.f32 %v4066
      %vm4073 = vmor %vm4071, %vm4072
      %v4074 = vsel %vm4073, %v4066, %v4070
      %v4075 = vand.u32 2147483647, %v3782
      %vm4076 = vcmp.eq.f32.partialorder %v4075, 8.507059e+37
      %v4077 = vand.u32 %v3782, 2147483648
      %v4078 = vor.u32 1.1754944e-38, %v4077
      %v4079 = vsel %vm4076, %v4078, %v4074
      %v4080 = vmul.f32 1.0, %v4079
      %v4081 = vrcp.pop %v3783
      %v4082 = vmul.f32 %v3783, %v4081
      %v4083 = vsub.f32 1.0, %v4082
      %v4084 = vmul.f32 %v4081, %v4083
      %v4085 = vadd.f32 %v4081, %v4084
      %vm4086 = vweird.f32 %v3783
      %vm4087 = vweird.f32 %v4081
      %vm4088 = vmor %vm4086, %vm4087
      %v4089 = vsel %vm4088, %v4081, %v4085
      %v4090 = vand.u32 2147483647, %v3783
      %vm4091 = vcmp.eq.f32.partialorder %v4090, 8.507059e+37
      %v4092 = vand.u32 %v3783, 2147483648
      %v4093 = vor.u32 1.1754944e-38, %v4092
      %v4094 = vsel %vm4091, %v4093, %v4089
      %v4095 = vmul.f32 1.0, %v4094
      %v4096 = vrcp.pop %v3784
      %v4097 = vmul.f32 %v3784, %v4096
      %v4098 = vsub.f32 1.0, %v4097
      %v4099 = vmul.f32 %v4096, %v4098
      %v4100 = vadd.f32 %v4096, %v4099
      %vm4101 = vweird.f32 %v3784
      %vm4102 = vweird.f32 %v4096
      %vm4103 = vmor %vm4101, %vm4102
      %v4104 = vsel %vm4103, %v4096, %v4100
      %v4105 = vand.u32 2147483647, %v3784
      %vm4106 = vcmp.eq.f32.partialorder %v4105, 8.507059e+37
      %v4107 = vand.u32 %v3784, 2147483648
      %v4108 = vor.u32 1.1754944e-38, %v4107
      %v4109 = vsel %vm4106, %v4108, %v4104
      %v4110 = vmul.f32 1.0, %v4109
      %v4111 = vrcp.pop %v3785
      %v4112 = vmul.f32 %v3785, %v4111
      %v4113 = vsub.f32 1.0, %v4112
      %v4114 = vmul.f32 %v4111, %v4113
      %v4115 = vadd.f32 %v4111, %v4114
      %vm4116 = vweird.f32 %v3785
      %vm4117 = vweird.f32 %v4111
      %vm4118 = vmor %vm4116, %vm4117
      %v4119 = vsel %vm4118, %v4111, %v4115
      %v4120 = vand.u32 2147483647, %v3785
      %vm4121 = vcmp.eq.f32.partialorder %v4120, 8.507059e+37
      %v4122 = vand.u32 %v3785, 2147483648
      %v4123 = vor.u32 1.1754944e-38, %v4122
      %v4124 = vsel %vm4121, %v4123, %v4119
      %v4125 = vmul.f32 1.0, %v4124
      %v4126 = vrcp.pop %v3786
      %v4127 = vmul.f32 %v3786, %v4126
      %v4128 = vsub.f32 1.0, %v4127
      %v4129 = vmul.f32 %v4126, %v4128
      %v4130 = vadd.f32 %v4126, %v4129
      %vm4131 = vweird.f32 %v3786
      %vm4132 = vweird.f32 %v4126
      %vm4133 = vmor %vm4131, %vm4132
      %v4134 = vsel %vm4133, %v4126, %v4130
      %v4135 = vand.u32 2147483647, %v3786
      %vm4136 = vcmp.eq.f32.partialorder %v4135, 8.507059e+37
      %v4137 = vand.u32 %v3786, 2147483648
      %v4138 = vor.u32 1.1754944e-38, %v4137
      %v4139 = vsel %vm4136, %v4138, %v4134
      %v4140 = vmul.f32 1.0, %v4139
      %v4141 = vrcp.pop %v3787
      %v4142 = vmul.f32 %v3787, %v4141
      %v4143 = vsub.f32 1.0, %v4142
      %v4144 = vmul.f32 %v4141, %v4143
      %v4145 = vadd.f32 %v4141, %v4144
      %vm4146 = vweird.f32 %v3787
      %vm4147 = vweird.f32 %v4141
      %vm4148 = vmor %vm4146, %vm4147
      %v4149 = vsel %vm4148, %v4141, %v4145
      %v4150 = vand.u32 2147483647, %v3787
      %vm4151 = vcmp.eq.f32.partialorder %v4150, 8.507059e+37
      %v4152 = vand.u32 %v3787, 2147483648
      %v4153 = vor.u32 1.1754944e-38, %v4152
      %v4154 = vsel %vm4151, %v4153, %v4149
      %v4155 = vmul.f32 1.0, %v4154
      %v4156 = vrcp.pop %v3788
      %v4157 = vmul.f32 %v3788, %v4156
      %v4158 = vsub.f32 1.0, %v4157
      %v4159 = vmul.f32 %v4156, %v4158
      %v4160 = vadd.f32 %v4156, %v4159
      %vm4161 = vweird.f32 %v3788
      %vm4162 = vweird.f32 %v4156
      %vm4163 = vmor %vm4161, %vm4162
      %v4164 = vsel %vm4163, %v4156, %v4160
      %v4165 = vand.u32 2147483647, %v3788
      %vm4166 = vcmp.eq.f32.partialorder %v4165, 8.507059e+37
      %v4167 = vand.u32 %v3788, 2147483648
      %v4168 = vor.u32 1.1754944e-38, %v4167
      %v4169 = vsel %vm4166, %v4168, %v4164
      %v4170 = vmul.f32 1.0, %v4169
      %v4171 = vrcp.pop %v3789
      %v4172 = vmul.f32 %v3789, %v4171
      %v4173 = vsub.f32 1.0, %v4172
      %v4174 = vmul.f32 %v4171, %v4173
      %v4175 = vadd.f32 %v4171, %v4174
      %vm4176 = vweird.f32 %v3789
      %vm4177 = vweird.f32 %v4171
      %vm4178 = vmor %vm4176, %vm4177
      %v4179 = vsel %vm4178, %v4171, %v4175
      %v4180 = vand.u32 2147483647, %v3789
      %vm4181 = vcmp.eq.f32.partialorder %v4180, 8.507059e+37
      %v4182 = vand.u32 %v3789, 2147483648
      %v4183 = vor.u32 1.1754944e-38, %v4182
      %v4184 = vsel %vm4181, %v4183, %v4179
      %v4185 = vmul.f32 1.0, %v4184
      %v4186 = vrcp.pop %v3790
      %v4187 = vmul.f32 %v3790, %v4186
      %v4188 = vsub.f32 1.0, %v4187
      %v4189 = vmul.f32 %v4186, %v4188
      %v4190 = vadd.f32 %v4186, %v4189
      %vm4191 = vweird.f32 %v3790
      %vm4192 = vweird.f32 %v4186
      %vm4193 = vmor %vm4191, %vm4192
      %v4194 = vsel %vm4193, %v4186, %v4190
      %v4195 = vand.u32 2147483647, %v3790
      %vm4196 = vcmp.eq.f32.partialorder %v4195, 8.507059e+37
      %v4197 = vand.u32 %v3790, 2147483648
      %v4198 = vor.u32 1.1754944e-38, %v4197
      %v4199 = vsel %vm4196, %v4198, %v4194
      %v4200 = vmul.f32 1.0, %v4199
      %v4201 = vrcp.pop %v3791
      %v4202 = vmul.f32 %v3791, %v4201
      %v4203 = vsub.f32 1.0, %v4202
      %v4204 = vmul.f32 %v4201, %v4203
      %v4205 = vadd.f32 %v4201, %v4204
      %vm4206 = vweird.f32 %v3791
      %vm4207 = vweird.f32 %v4201
      %vm4208 = vmor %vm4206, %vm4207
      %v4209 = vsel %vm4208, %v4201, %v4205
      %v4210 = vand.u32 2147483647, %v3791
      %vm4211 = vcmp.eq.f32.partialorder %v4210, 8.507059e+37
      %v4212 = vand.u32 %v3791, 2147483648
      %v4213 = vor.u32 1.1754944e-38, %v4212
      %v4214 = vsel %vm4211, %v4213, %v4209
      %v4215 = vmul.f32 1.0, %v4214
      %v4216 = vrcp.pop %v3792
      %v4217 = vmul.f32 %v3792, %v4216
      %v4218 = vsub.f32 1.0, %v4217
      %v4219 = vmul.f32 %v4216, %v4218
      %v4220 = vadd.f32 %v4216, %v4219
      %vm4221 = vweird.f32 %v3792
      %vm4222 = vweird.f32 %v4216
      %vm4223 = vmor %vm4221, %vm4222
      %v4224 = vsel %vm4223, %v4216, %v4220
      %v4225 = vand.u32 2147483647, %v3792
      %vm4226 = vcmp.eq.f32.partialorder %v4225, 8.507059e+37
      %v4227 = vand.u32 %v3792, 2147483648
      %v4228 = vor.u32 1.1754944e-38, %v4227
      %v4229 = vsel %vm4226, %v4228, %v4224
      %v4230 = vmul.f32 1.0, %v4229
      %v4231 = vrcp.pop %v3793
      %v4232 = vmul.f32 %v3793, %v4231
      %v4233 = vsub.f32 1.0, %v4232
      %v4234 = vmul.f32 %v4231, %v4233
      %v4235 = vadd.f32 %v4231, %v4234
      %vm4236 = vweird.f32 %v3793
      %vm4237 = vweird.f32 %v4231
      %vm4238 = vmor %vm4236, %vm4237
      %v4239 = vsel %vm4238, %v4231, %v4235
      %v4240 = vand.u32 2147483647, %v3793
      %vm4241 = vcmp.eq.f32.partialorder %v4240, 8.507059e+37
      %v4242 = vand.u32 %v3793, 2147483648
      %v4243 = vor.u32 1.1754944e-38, %v4242
      %v4244 = vsel %vm4241, %v4243, %v4239
      %v4245 = vmul.f32 1.0, %v4244
      %v4246 = vrcp.pop %v3794
      %v4247 = vmul.f32 %v3794, %v4246
      %v4248 = vsub.f32 1.0, %v4247
      %v4249 = vmul.f32 %v4246, %v4248
      %v4250 = vadd.f32 %v4246, %v4249
      %vm4251 = vweird.f32 %v3794
      %vm4252 = vweird.f32 %v4246
      %vm4253 = vmor %vm4251, %vm4252
      %v4254 = vsel %vm4253, %v4246, %v4250
      %v4255 = vand.u32 2147483647, %v3794
      %vm4256 = vcmp.eq.f32.partialorder %v4255, 8.507059e+37
      %v4257 = vand.u32 %v3794, 2147483648
      %v4258 = vor.u32 1.1754944e-38, %v4257
      %v4259 = vsel %vm4256, %v4258, %v4254
      %v4260 = vmul.f32 1.0, %v4259
      %v4261 = vrcp.pop %v3795
      %v4262 = vmul.f32 %v3795, %v4261
      %v4263 = vsub.f32 1.0, %v4262
      %v4264 = vmul.f32 %v4261, %v4263
      %v4265 = vadd.f32 %v4261, %v4264
      %vm4266 = vweird.f32 %v3795
      %vm4267 = vweird.f32 %v4261
      %vm4268 = vmor %vm4266, %vm4267
      %v4269 = vsel %vm4268, %v4261, %v4265
      %v4270 = vand.u32 2147483647, %v3795
      %vm4271 = vcmp.eq.f32.partialorder %v4270, 8.507059e+37
      %v4272 = vand.u32 %v3795, 2147483648
      %v4273 = vor.u32 1.1754944e-38, %v4272
      %v4274 = vsel %vm4271, %v4273, %v4269
      %v4275 = vmul.f32 1.0, %v4274
      %v4276 = vmul.f32 %v3636, %v3810
      %v4277 = vmul.f32 %v3637, %v3825
      %v4278 = vmul.f32 %v3638, %v3840
      %v4279 = vmul.f32 %v3639, %v3855
      %v4280 = vmul.f32 %v3640, %v3870
      %v4281 = vmul.f32 %v3641, %v3885
      %v4282 = vmul.f32 %v3642, %v3900
      %v4283 = vmul.f32 %v3643, %v3915
      %v4284 = vmul.f32 %v3644, %v3930
      %v4285 = vmul.f32 %v3645, %v3945
      %v4286 = vmul.f32 %v3646, %v3960
      %v4287 = vmul.f32 %v3647, %v3975
      %v4288 = vmul.f32 %v3648, %v3990
      %v4289 = vmul.f32 %v3649, %v4005
      %v4290 = vmul.f32 %v3650, %v4020
      %v4291 = vmul.f32 %v3651, %v4035
      %v4292 = vmul.f32 %v3652, %v4050
      %v4293 = vmul.f32 %v3653, %v4065
      %v4294 = vmul.f32 %v3654, %v4080
      %v4295 = vmul.f32 %v3655, %v4095
      %v4296 = vmul.f32 %v3656, %v4110
      %v4297 = vmul.f32 %v3657, %v4125
      %v4298 = vmul.f32 %v3658, %v4140
      %v4299 = vmul.f32 %v3659, %v4155
      %v4300 = vmul.f32 %v3660, %v4170
      %v4301 = vmul.f32 %v3661, %v4185
      %v4302 = vmul.f32 %v3662, %v4200
      %v4303 = vmul.f32 %v3663, %v4215
      %v4304 = vmul.f32 %v3664, %v4230
      %v4305 = vmul.f32 %v3665, %v4245
      %v4306 = vmul.f32 %v3666, %v4260
      %v4307 = vmul.f32 %v3667, %v4275
      %v4308 = vpack.c.bf16 %v4277, %v4276
      %v4309 = vpack.c.bf16 %v4279, %v4278
      %v4310 = vpack.c.bf16 %v4281, %v4280
      %v4311 = vpack.c.bf16 %v4283, %v4282
      %v4312 = vpack.c.bf16 %v4285, %v4284
      %v4313 = vpack.c.bf16 %v4287, %v4286
      %v4314 = vpack.c.bf16 %v4289, %v4288
      %v4315 = vpack.c.bf16 %v4291, %v4290
      %v4316 = vpack.c.bf16 %v4293, %v4292
      %v4317 = vpack.c.bf16 %v4295, %v4294
      %v4318 = vpack.c.bf16 %v4297, %v4296
      %v4319 = vpack.c.bf16 %v4299, %v4298
      %v4320 = vpack.c.bf16 %v4301, %v4300
      %v4321 = vpack.c.bf16 %v4303, %v4302
      %v4322 = vpack.c.bf16 %v4305, %v4304
      %v4323 = vpack.c.bf16 %v4307, %v4306
      %4324 = vst [vmem:[%s251] sm:$0xff] %v4308
      %4325 = vst [vmem:[%s251 + $0x8] sm:$0xff] %v4309
      %4326 = vst [vmem:[%s251 + $0x10] sm:$0xff] %v4310
      %4327 = vst [vmem:[%s251 + $0x18] sm:$0xff] %v4311
      %4328 = vst [vmem:[%s251 + $0x20] sm:$0xff] %v4312
      %4329 = vst [vmem:[%s251 + $0x28] sm:$0xff] %v4313
      %4330 = vst [vmem:[%s251 + $0x30] sm:$0xff] %v4314
      %4331 = vst [vmem:[%s251 + $0x38] sm:$0xff] %v4315
      %4332 = vst [vmem:[%s251 + $0x40] sm:$0xff] %v4316
      %4333 = vst [vmem:[%s251 + $0x48] sm:$0xff] %v4317
      %4334 = vst [vmem:[%s251 + $0x50] sm:$0xff] %v4318
      %4335 = vst [vmem:[%s251 + $0x58] sm:$0xff] %v4319
      %4336 = vst [vmem:[%s251 + $0x60] sm:$0xff] %v4320
      %4337 = vst [vmem:[%s251 + $0x68] sm:$0xff] %v4321
      %4338 = vst [vmem:[%s251 + $0x70] sm:$0xff] %v4322
      %4339 = vst [vmem:[%s251 + $0x78] sm:$0xff] %v4323
      %p4340 = scmp.lt.s32.totalorder %s17, 1
      %s4341 = scalar_select %p4340, %s17, 1
      %s4342 = smul.addr %s4341, 32
      %s4343 = smul.addr %s4342, 4
      %s4344 = scalar_lea.vmem %s6, %s4343
      // Predicated region
      $region45: #{sppelan_forward.1} parent=43 // pred_check
        %p4345 = pneg %p166
      $region46: #{sppelan_forward.1} parent=43 // pred_check_branch
        %4347 = sbr.rel (%p4345) target = $region48
      $region47: #{sppelan_forward.1} parent=43 // pred_region
        _
      $region48: #{sppelan_forward.1} parent=43 // pred_fallthru
        _
    $region44: #{sppelan_forward.1} parent=5 // pred_fallthru
      _
    %p4348 = scmp.le.s32.totalorder 2, %s12
    // Predicated region
    $region49: #{sppelan_forward.1} parent=5 // pred_check
      %p4349 = pneg %p4348
    $region50: #{sppelan_forward.1} parent=5 // pred_check_branch
      %4351 = sbr.rel (%p4349) target = $region52
    $region51: #{sppelan_forward.1} parent=5 // pred_region
      %s4352 = ssub.s32 %s12, 2
      // Predicated region
      $region53: #{sppelan_forward.1} parent=51 // pred_check
        %p4353 = pneg %p172
      $region54: #{sppelan_forward.1} parent=51 // pred_check_branch
        %4355 = sbr.rel (%p4353) target = $region56
      $region55: #{sppelan_forward.1} parent=51 // pred_region
        %p4356 = scmp.lt.s32.totalorder %s18, 1
        %s4357 = scalar_select %p4356, %s18, 1
        %s4358 = smul.addr %s4357, 32
        %s4359 = smul.addr %s4358, 4
        %s4360 = scalar_lea.vmem %s6, %s4359
      $region56: #{sppelan_forward.1} parent=51 // pred_fallthru
        _
    $region52: #{sppelan_forward.1} parent=5 // pred_fallthru
      _
  $region6: #{sppelan_forward.1} parent=0 // loop_footer
    %s16 = sadd.s32 1, %s12
  $region7: #{sppelan_forward.1} parent=0 // loop_footer_branch
    %11 = sbr.rel target = $region3
  $region8: #{sppelan_forward.1} parent=0 // loop_exit
    _

</llo_original>
